<compile_context>
chip_gen: v5e
topology: v5e:2x2
jax: 0.10.0
libtpu: 0.0.40
codegen_flags: <defaults>
</compile_context>

<pallas_src>
import functools

import numpy as np
import jax
import jax.numpy as jnp
from jax import lax
from jax.experimental import pallas as pl
from jax.experimental.pallas import tpu as pltpu

C_IN, C_MID, C_OUT = 384, 128, 32
BN_EPS = 1e-5


def fused_kernel(x_ref, w1_ref, gamma_ref, beta_ref, w2_ref, mask_ref, o_ref, *, W):
    M = x_ref.shape[0]

    # ---- relu47 on bf16 activations (down-cast done outside the kernel) ----
    xb = jnp.maximum(x_ref[...], 0.0)                                 # (M, Cin) bf16

    # ---- conv2d47: 1x1 conv == channel matmul on the MXU, f32 accumulation ----
    y = jnp.dot(xb, w1_ref[...], preferred_element_type=jnp.float32)  # (M, C1) f32

    # ---- batchnorm2d48 (training mode): biased single-pass batch stats, f32 ----
    inv_m = 1.0 / M
    mean = jnp.sum(y, axis=0, keepdims=True) * inv_m                  # E[y]   (1, C1)
    mean_sq = jnp.sum(y * y, axis=0, keepdims=True) * inv_m           # E[y^2] (1, C1)
    var = mean_sq - mean * mean                                       # biased var
    scale = gamma_ref[...] * lax.rsqrt(var + BN_EPS)                  # (1, C1)
    shift = beta_ref[...] - mean * scale                              # (1, C1)

    # ---- relu48, single bf16 cast feeding the 3x3 stage ----
    zb = jnp.maximum(y * scale + shift, 0.0).astype(jnp.bfloat16)     # (M, C1)

    # ---- conv2d48: 3x3 / stride 1 / pad 1 ----
    # One wide MXU matmul covering all 9 taps:
    #   wide[:, tap*C2:(tap+1)*C2] = z @ w2[tap]
    wide = jnp.dot(zb, w2_ref[...], preferred_element_type=jnp.float32)  # (M, 9*C2)

    # Source-side boundary masking: one dense multiply over the whole wide
    # result (per-tap (M,1) mask already replicated across its 32-lane group).
    wide = wide * mask_ref[...].astype(jnp.float32)

    # Per-tap alignment on the small f32 results via sublane rolls (XLU).
    acc = wide[:, 4 * C_OUT:5 * C_OUT]            # center tap, offset 0
    for tap in range(9):
        if tap == 4:
            continue
        dh, dw = tap // 3 - 1, tap % 3 - 1
        off = dh * W + dw                          # flattened source offset
        t = wide[:, tap * C_OUT:(tap + 1) * C_OUT]
        # t_new[m] = t[(m + off) mod M]; wrapped rows are zeroed by the mask.
        acc = acc + pltpu.roll(t, (-off) % M, axis=0)

    o_ref[...] = acc


def _source_mask_wide(N, H, W):
    """(M, 9*C_OUT) f32 source-side validity mask, tap-major 32-lane groups.

    Source row m' (pixel (h', w')) contributes to output row m' - off for tap
    (dh, dw); that contribution is valid iff the output pixel (h'-dh, w'-dw)
    lies inside the same image.  Equivalent to the post-roll destination mask.
    """
    M = N * H * W
    m = np.arange(M)
    hh = (m // W) % H
    ww = m % W
    mask = np.empty((M, 9 * C_OUT), np.float32)
    for kh in range(3):
        for kw in range(3):
            dh, dw = kh - 1, kw - 1
            tap = kh * 3 + kw
            valid = ((hh - dh >= 0) & (hh - dh < H) &
                     (ww - dw >= 0) & (ww - dw < W)).astype(np.float32)
            mask[:, tap * C_OUT:(tap + 1) * C_OUT] = valid[:, None]
    return mask


def m_forward_nhwc(x_nhwc, w1, gamma, beta, w2):
    """Fused forward on NHWC input (preferred: no layout transposes).

    x_nhwc: (N, H, W, 384) f32 or bf16 (bf16 preferred: halves input DMA)
    w1:     (384, 128)              (1x1 conv weight, in->out)
    gamma/beta: (128,)              (BatchNorm affine params)
    w2:     (3, 3, 128, 32)         (3x3 conv weight, HWIO)
    returns (N, H, W, 32) f32
    """
    N, H, W, Cin = x_nhwc.shape
    assert Cin == C_IN
    M = N * H * W

    # Activations in bf16 (no-op if the producer already emits bf16).
    x2d = x_nhwc.reshape(M, C_IN).astype(jnp.bfloat16)

    # Weight prep (folded into weight init in a real pipeline; tiny here).
    w1b = w1.astype(jnp.bfloat16)                                      # (Cin, C1)
    # HWIO (3,3,C1,C2) -> (C1, 9*C2) with column j = tap*C2 + c.
    w2wide = jnp.transpose(w2, (2, 0, 1, 3)).reshape(C_MID, 9 * C_OUT)
    w2wide = w2wide.astype(jnp.bfloat16)

    mask = jnp.asarray(_source_mask_wide(N, H, W), dtype=jnp.bfloat16)

    vmem = pl.BlockSpec(memory_space=pltpu.MemorySpace.VMEM)
    out2d = pl.pallas_call(
        functools.partial(fused_kernel, W=W),
        out_shape=jax.ShapeDtypeStruct((M, C_OUT), jnp.float32),
        in_specs=[vmem] * 6,
        out_specs=vmem,
    )(x2d, w1b,
      gamma.reshape(1, C_MID).astype(jnp.float32),
      beta.reshape(1, C_MID).astype(jnp.float32),
      w2wide, mask)

    return out2d.reshape(N, H, W, C_OUT)          # contiguous -> free bitcast


def m_forward(x_nchw, w1, gamma, beta, w2):
    """PyTorch-layout adapter: (N, 384, H, W) -> (N, 32, H, W).

    Prefer m_forward_nhwc inside an NHWC end-to-end pipeline: the two
    transposes here move about as many HBM bytes as the kernel itself.
    """
    x_nhwc = jnp.transpose(x_nchw, (0, 2, 3, 1))
    out = m_forward_nhwc(x_nhwc, w1, gamma, beta, w2)
    return jnp.transpose(out, (0, 3, 1, 2))


def reference_forward_nhwc(x, w1, gamma, beta, w2):
    """Plain-JAX f32 reference (same math as the PyTorch module, NHWC)."""
    x = jnp.maximum(x, 0.0)
    y = lax.conv_general_dilated(
        x, w1.reshape(1, 1, C_IN, C_MID), (1, 1), "VALID",
        dimension_numbers=("NHWC", "HWIO", "NHWC"))
    mean = jnp.mean(y, axis=(0, 1, 2))
    var = jnp.mean((y - mean) ** 2, axis=(0, 1, 2))        # biased (training BN)
    z = (y - mean) * lax.rsqrt(var + BN_EPS) * gamma.reshape(-1) + beta.reshape(-1)
    z = jnp.maximum(z, 0.0)
    return lax.conv_general_dilated(
        z, w2, (1, 1), ((1, 1), (1, 1)),
        dimension_numbers=("NHWC", "HWIO", "NHWC"))


if __name__ == "__main__":
    key = jax.random.PRNGKey(0)
    k_x, k_w1, k_w2 = jax.random.split(key, 3)

    # Channels fixed by the module; batch=2, 14x14 spatial -> M=392 (8-aligned).
    N, H, W = 2, 14, 14
    x_f32 = jax.random.normal(k_x, (N, H, W, C_IN), dtype=jnp.float32)
    x_bf16 = x_f32.astype(jnp.bfloat16)     # pipeline hands the kernel bf16 activations
    w1 = jax.random.normal(k_w1, (C_IN, C_MID), dtype=jnp.float32) * 0.05
    w2 = jax.random.normal(k_w2, (3, 3, C_MID, C_OUT), dtype=jnp.float32) * 0.05
    gamma = jnp.ones((C_MID,), dtype=jnp.float32)   # BatchNorm2d default weight
    beta = jnp.zeros((C_MID,), dtype=jnp.float32)   # BatchNorm2d default bias

    # Kernel matmuls run in bf16 with f32 accumulation vs the f32 reference,
    # so tolerance is set accordingly.  Reference sees the same bf16 input.
    out = jax.block_until_ready(jax.jit(m_forward_nhwc)(x_bf16, w1, gamma, beta, w2))
    ref = jax.block_until_ready(
        reference_forward_nhwc(x_bf16.astype(jnp.float32), w1, gamma, beta, w2))
    assert out.shape == (N, H, W, C_OUT), out.shape
    max_err = float(jnp.max(jnp.abs(out - ref)))
    assert jnp.allclose(out, ref, atol=5e-2, rtol=5e-2), max_err

    # PyTorch-layout (NCHW) adapter parity check.
    x_nchw = jnp.transpose(x_bf16, (0, 3, 1, 2))
    out_nchw = jax.block_until_ready(jax.jit(m_forward)(x_nchw, w1, gamma, beta, w2))
    assert out_nchw.shape == (N, C_OUT, H, W), out_nchw.shape
    assert jnp.allclose(out_nchw, jnp.transpose(ref, (0, 3, 1, 2)),
                        atol=5e-2, rtol=5e-2)

    print("KERNEL_OK")
</pallas_src>

<mosaic_0001>
module attributes {stable_mosaic.version = 11 : i64} {
  func.func @fused_kernel(%arg0: memref<392x384xbf16, #tpu.memory_space<vmem>>, %arg1: memref<384x128xbf16, #tpu.memory_space<vmem>>, %arg2: memref<1x128xf32, #tpu.memory_space<vmem>>, %arg3: memref<1x128xf32, #tpu.memory_space<vmem>>, %arg4: memref<128x288xbf16, #tpu.memory_space<vmem>>, %arg5: memref<392x288xbf16, #tpu.memory_space<vmem>>, %arg6: memref<392x32xf32, #tpu.memory_space<vmem>>) attributes {dimension_semantics = [], scalar_prefetch = 0 : i64, scratch_operands = 0 : i64, tpu.core_type = #tpu.core_type<tc>} {
    %c0 = arith.constant 0 : index
    %c0_0 = arith.constant 0 : index
    %0 = vector.load %arg0[%c0, %c0_0] : memref<392x384xbf16, #tpu.memory_space<vmem>>, vector<392x384xbf16>
    %cst = arith.constant 0.000000e+00 : bf16
    %1 = vector.broadcast %cst : bf16 to vector<392x384xbf16>
    %2 = arith.maximumf %0, %1 : vector<392x384xbf16>
    %c0_1 = arith.constant 0 : index
    %c0_2 = arith.constant 0 : index
    %3 = vector.load %arg1[%c0_1, %c0_2] : memref<384x128xbf16, #tpu.memory_space<vmem>>, vector<384x128xbf16>
    %cst_3 = arith.constant dense<0.000000e+00> : vector<392x128xf32>
    %4 = tpu.matmul %2, %3, %cst_3 {dimension_numbers = #tpu.dot_dimension_numbers<[1], [0], [0], [1], [0, 0, 1, 1], [], []>} : vector<392x384xbf16>, vector<384x128xbf16>, vector<392x128xf32> -> vector<392x128xf32>
    %cst_4 = arith.constant dense<0.000000e+00> : vector<128xf32>
    %5 = vector.multi_reduction <add>, %4, %cst_4 [0] : vector<392x128xf32> to vector<128xf32>
    %6 = vector.shape_cast %5 : vector<128xf32> to vector<1x128xf32>
    %cst_5 = arith.constant 0.00255102036 : f32
    %7 = vector.broadcast %cst_5 : f32 to vector<1x128xf32>
    %8 = arith.mulf %6, %7 : vector<1x128xf32>
    %9 = arith.mulf %4, %4 : vector<392x128xf32>
    %cst_6 = arith.constant dense<0.000000e+00> : vector<128xf32>
    %10 = vector.multi_reduction <add>, %9, %cst_6 [0] : vector<392x128xf32> to vector<128xf32>
    %11 = vector.shape_cast %10 : vector<128xf32> to vector<1x128xf32>
    %cst_7 = arith.constant 0.00255102036 : f32
    %12 = vector.broadcast %cst_7 : f32 to vector<1x128xf32>
    %13 = arith.mulf %11, %12 : vector<1x128xf32>
    %14 = arith.mulf %8, %8 : vector<1x128xf32>
    %15 = arith.subf %13, %14 : vector<1x128xf32>
    %c0_8 = arith.constant 0 : index
    %c0_9 = arith.constant 0 : index
    %16 = vector.load %arg2[%c0_8, %c0_9] : memref<1x128xf32, #tpu.memory_space<vmem>>, vector<1x128xf32>
    %cst_10 = arith.constant 9.99999974E-6 : f32
    %17 = vector.broadcast %cst_10 : f32 to vector<1x128xf32>
    %18 = arith.addf %15, %17 : vector<1x128xf32>
    %19 = math.rsqrt %18 : vector<1x128xf32>
    %20 = arith.mulf %16, %19 : vector<1x128xf32>
    %c0_11 = arith.constant 0 : index
    %c0_12 = arith.constant 0 : index
    %21 = vector.load %arg3[%c0_11, %c0_12] : memref<1x128xf32, #tpu.memory_space<vmem>>, vector<1x128xf32>
    %22 = arith.mulf %8, %20 : vector<1x128xf32>
    %23 = arith.subf %21, %22 : vector<1x128xf32>
    %24 = vector.broadcast %20 : vector<1x128xf32> to vector<392x128xf32>
    %25 = arith.mulf %4, %24 : vector<392x128xf32>
    %26 = vector.broadcast %23 : vector<1x128xf32> to vector<392x128xf32>
    %27 = arith.addf %25, %26 : vector<392x128xf32>
    %cst_13 = arith.constant 0.000000e+00 : f32
    %28 = vector.broadcast %cst_13 : f32 to vector<392x128xf32>
    %29 = arith.maximumf %27, %28 : vector<392x128xf32>
    %30 = arith.truncf %29 : vector<392x128xf32> to vector<392x128xbf16>
    %c0_14 = arith.constant 0 : index
    %c0_15 = arith.constant 0 : index
    %31 = vector.load %arg4[%c0_14, %c0_15] : memref<128x288xbf16, #tpu.memory_space<vmem>>, vector<128x288xbf16>
    %cst_16 = arith.constant dense<0.000000e+00> : vector<392x288xf32>
    %32 = tpu.matmul %30, %31, %cst_16 {dimension_numbers = #tpu.dot_dimension_numbers<[1], [0], [0], [1], [0, 0, 1, 1], [], []>} : vector<392x128xbf16>, vector<128x288xbf16>, vector<392x288xf32> -> vector<392x288xf32>
    %c0_17 = arith.constant 0 : index
    %c0_18 = arith.constant 0 : index
    %33 = vector.load %arg5[%c0_17, %c0_18] : memref<392x288xbf16, #tpu.memory_space<vmem>>, vector<392x288xbf16>
    %34 = arith.extf %33 : vector<392x288xbf16> to vector<392x288xf32>
    %35 = arith.mulf %32, %34 : vector<392x288xf32>
    %36 = vector.extract_strided_slice %35 {offsets = [0, 128], sizes = [392, 32], strides = [1, 1]} : vector<392x288xf32> to vector<392x32xf32>
    %37 = vector.extract_strided_slice %35 {offsets = [0, 0], sizes = [392, 32], strides = [1, 1]} : vector<392x288xf32> to vector<392x32xf32>
    %c15_i32 = arith.constant 15 : i32
    %38 = tpu.dynamic_rotate %37 by %c15_i32 dim 0 : vector<392x32xf32>, i32 -> vector<392x32xf32>
    %39 = arith.addf %36, %38 : vector<392x32xf32>
    %40 = vector.extract_strided_slice %35 {offsets = [0, 32], sizes = [392, 32], strides = [1, 1]} : vector<392x288xf32> to vector<392x32xf32>
    %c14_i32 = arith.constant 14 : i32
    %41 = tpu.dynamic_rotate %40 by %c14_i32 dim 0 : vector<392x32xf32>, i32 -> vector<392x32xf32>
    %42 = arith.addf %39, %41 : vector<392x32xf32>
    %43 = vector.extract_strided_slice %35 {offsets = [0, 64], sizes = [392, 32], strides = [1, 1]} : vector<392x288xf32> to vector<392x32xf32>
    %c13_i32 = arith.constant 13 : i32
    %44 = tpu.dynamic_rotate %43 by %c13_i32 dim 0 : vector<392x32xf32>, i32 -> vector<392x32xf32>
    %45 = arith.addf %42, %44 : vector<392x32xf32>
    %46 = vector.extract_strided_slice %35 {offsets = [0, 96], sizes = [392, 32], strides = [1, 1]} : vector<392x288xf32> to vector<392x32xf32>
    %c1_i32 = arith.constant 1 : i32
    %47 = tpu.dynamic_rotate %46 by %c1_i32 dim 0 : vector<392x32xf32>, i32 -> vector<392x32xf32>
    %48 = arith.addf %45, %47 : vector<392x32xf32>
    %49 = vector.extract_strided_slice %35 {offsets = [0, 160], sizes = [392, 32], strides = [1, 1]} : vector<392x288xf32> to vector<392x32xf32>
    %c391_i32 = arith.constant 391 : i32
    %50 = tpu.dynamic_rotate %49 by %c391_i32 dim 0 : vector<392x32xf32>, i32 -> vector<392x32xf32>
    %51 = arith.addf %48, %50 : vector<392x32xf32>
    %52 = vector.extract_strided_slice %35 {offsets = [0, 192], sizes = [392, 32], strides = [1, 1]} : vector<392x288xf32> to vector<392x32xf32>
    %c379_i32 = arith.constant 379 : i32
    %53 = tpu.dynamic_rotate %52 by %c379_i32 dim 0 : vector<392x32xf32>, i32 -> vector<392x32xf32>
    %54 = arith.addf %51, %53 : vector<392x32xf32>
    %55 = vector.extract_strided_slice %35 {offsets = [0, 224], sizes = [392, 32], strides = [1, 1]} : vector<392x288xf32> to vector<392x32xf32>
    %c378_i32 = arith.constant 378 : i32
    %56 = tpu.dynamic_rotate %55 by %c378_i32 dim 0 : vector<392x32xf32>, i32 -> vector<392x32xf32>
    %57 = arith.addf %54, %56 : vector<392x32xf32>
    %58 = vector.extract_strided_slice %35 {offsets = [0, 256], sizes = [392, 32], strides = [1, 1]} : vector<392x288xf32> to vector<392x32xf32>
    %c377_i32 = arith.constant 377 : i32
    %59 = tpu.dynamic_rotate %58 by %c377_i32 dim 0 : vector<392x32xf32>, i32 -> vector<392x32xf32>
    %60 = arith.addf %57, %59 : vector<392x32xf32>
    %c0_19 = arith.constant 0 : index
    %c0_20 = arith.constant 0 : index
    %61 = vector.load %arg6[%c0_19, %c0_20] : memref<392x32xf32, #tpu.memory_space<vmem>>, vector<392x32xf32>
    tpu.vector_store %arg6[%c0_19, %c0_20], %60 {strides = array<i32>} : memref<392x32xf32, #tpu.memory_space<vmem>>, vector<392x32xf32>,
    return
  }
}

</mosaic_0001>

<llo_original>
// kernel: m_forward_nhwc.1
$region0: #{m_forward_nhwc.1}
  #allocation0 [shape = 'u32[]', space=smem, size = 0x4, offset = 0x4, fixed_abs, tag = 'smem constant byte address 0x4 - core index']
  #allocation1 [shape = 'u32[72,128]{1,0:T(1,128)}', space=vmem, size = 0x9000, scoped, tag = 'internal scratch']
  %s0 = inlined_call_operand.vmem [shape: bf16[392,384], index: 0, kind: input, shape index: {}]
  %s1 = inlined_call_operand.vmem [shape: bf16[384,128], index: 1, kind: input, shape index: {}]
  %s2 = inlined_call_operand.vmem [shape: f32[1,128], index: 2, kind: input, shape index: {}]
  %s3 = inlined_call_operand.vmem [shape: f32[1,128], index: 3, kind: input, shape index: {}]
  %s4 = inlined_call_operand.vmem [shape: bf16[128,288], index: 4, kind: input, shape index: {}]
  %s5 = inlined_call_operand.vmem [shape: bf16[392,288], index: 5, kind: input, shape index: {}]
  %s6 = inlined_call_operand.vmem [shape: f32[392,32], index: 6, kind: output, shape index: {}]
  %s7 = sld [smem:[#allocation0]]
  $region34: #{m_forward_nhwc.1} parent=0
    _
  %s9 = ssub.s32 1, %s7
  %s10 = scalar_select 0, %s9, %s7
  // Predicated region
  $region2: #{m_forward_nhwc.1} parent=0 // pred_check
    _
  $region3: #{m_forward_nhwc.1} parent=0 // pred_check_branch
    %12 = sbr.rel (0) target = $region5
  $region4: #{m_forward_nhwc.1} parent=0 // pred_region
    _
  $region5: #{m_forward_nhwc.1} parent=0 // pred_fallthru
    _
  // Predicated region
  $region6: #{m_forward_nhwc.1} parent=0 // pred_check
    _
  $region7: #{m_forward_nhwc.1} parent=0 // pred_check_branch
    %14 = sbr.rel (0) target = $region9
  $region8: #{m_forward_nhwc.1} parent=0 // pred_region
    _
  $region9: #{m_forward_nhwc.1} parent=0 // pred_fallthru
    _
  // Predicated region
  $region10: #{m_forward_nhwc.1} parent=0 // pred_check
    _
  $region11: #{m_forward_nhwc.1} parent=0 // pred_check_branch
    %16 = sbr.rel (0) target = $region13
  $region12: #{m_forward_nhwc.1} parent=0 // pred_region
    _
  $region13: #{m_forward_nhwc.1} parent=0 // pred_fallthru
    _
  // Predicated region
  $region14: #{m_forward_nhwc.1} parent=0 // pred_check
    _
  $region15: #{m_forward_nhwc.1} parent=0 // pred_check_branch
    %18 = sbr.rel (0) target = $region17
  $region16: #{m_forward_nhwc.1} parent=0 // pred_region
    _
  $region17: #{m_forward_nhwc.1} parent=0 // pred_fallthru
    _
  // Predicated region
  $region18: #{m_forward_nhwc.1} parent=0 // pred_check
    _
  $region19: #{m_forward_nhwc.1} parent=0 // pred_check_branch
    %20 = sbr.rel (0) target = $region21
  $region20: #{m_forward_nhwc.1} parent=0 // pred_region
    _
  $region21: #{m_forward_nhwc.1} parent=0 // pred_fallthru
    _
  // Predicated region
  $region22: #{m_forward_nhwc.1} parent=0 // pred_check
    _
  $region23: #{m_forward_nhwc.1} parent=0 // pred_check_branch
    %22 = sbr.rel (0) target = $region25
  $region24: #{m_forward_nhwc.1} parent=0 // pred_region
    _
  $region25: #{m_forward_nhwc.1} parent=0 // pred_fallthru
    _
  %v23 = vld [vmem:[%s0] sm:$0xff]
  %v24 = vld [vmem:[%s0 + $0x8] sm:$0xf]
  %v25 = vld [vmem:[%s0 + $0xc] sm:$0xff]
  %v26 = vld [vmem:[%s0 + $0x14] sm:$0xf]
  %v27 = vld [vmem:[%s0 + $0x18] sm:$0xff]
  %v28 = vld [vmem:[%s0 + $0x20] sm:$0xf]
  %v29 = vld [vmem:[%s0 + $0x24] sm:$0xff]
  %v30 = vld [vmem:[%s0 + $0x2c] sm:$0xf]
  %v31 = vld [vmem:[%s0 + $0x30] sm:$0xff]
  %v32 = vld [vmem:[%s0 + $0x38] sm:$0xf]
  %v33 = vld [vmem:[%s0 + $0x3c] sm:$0xff]
  %v34 = vld [vmem:[%s0 + $0x44] sm:$0xf]
  %v35 = vld [vmem:[%s0 + $0x48] sm:$0xff]
  %v36 = vld [vmem:[%s0 + $0x50] sm:$0xf]
  %v37 = vld [vmem:[%s0 + $0x54] sm:$0xff]
  %v38 = vld [vmem:[%s0 + $0x5c] sm:$0xf]
  %v39 = vld [vmem:[%s0 + $0x60] sm:$0xff]
  %v40 = vld [vmem:[%s0 + $0x68] sm:$0xf]
  %v41 = vld [vmem:[%s0 + $0x6c] sm:$0xff]
  %v42 = vld [vmem:[%s0 + $0x74] sm:$0xf]
  %v43 = vld [vmem:[%s0 + $0x78] sm:$0xff]
  %v44 = vld [vmem:[%s0 + $0x80] sm:$0xf]
  %v45 = vld [vmem:[%s0 + $0x84] sm:$0xff]
  %v46 = vld [vmem:[%s0 + $0x8c] sm:$0xf]
  %v47 = vld [vmem:[%s0 + $0x90] sm:$0xff]
  %v48 = vld [vmem:[%s0 + $0x98] sm:$0xf]
  %v49 = vld [vmem:[%s0 + $0x9c] sm:$0xff]
  %v50 = vld [vmem:[%s0 + $0xa4] sm:$0xf]
  %v51 = vld [vmem:[%s0 + $0xa8] sm:$0xff]
  %v52 = vld [vmem:[%s0 + $0xb0] sm:$0xf]
  %v53 = vld [vmem:[%s0 + $0xb4] sm:$0xff]
  %v54 = vld [vmem:[%s0 + $0xbc] sm:$0xf]
  %v55 = vld [vmem:[%s0 + $0xc0] sm:$0xff]
  %v56 = vld [vmem:[%s0 + $0xc8] sm:$0xf]
  %v57 = vld [vmem:[%s0 + $0xcc] sm:$0xff]
  %v58 = vld [vmem:[%s0 + $0xd4] sm:$0xf]
  %v59 = vld [vmem:[%s0 + $0xd8] sm:$0xff]
  %v60 = vld [vmem:[%s0 + $0xe0] sm:$0xf]
  %v61 = vld [vmem:[%s0 + $0xe4] sm:$0xff]
  %v62 = vld [vmem:[%s0 + $0xec] sm:$0xf]
  %v63 = vld [vmem:[%s0 + $0xf0] sm:$0xff]
  %v64 = vld [vmem:[%s0 + $0xf8] sm:$0xf]
  %v65 = vld [vmem:[%s0 + $0xfc] sm:$0xff]
  %v66 = vld [vmem:[%s0 + $0x104] sm:$0xf]
  %v67 = vld [vmem:[%s0 + $0x108] sm:$0xff]
  %v68 = vld [vmem:[%s0 + $0x110] sm:$0xf]
  %v69 = vld [vmem:[%s0 + $0x114] sm:$0xff]
  %v70 = vld [vmem:[%s0 + $0x11c] sm:$0xf]
  %v71 = vld [vmem:[%s0 + $0x120] sm:$0xff]
  %v72 = vld [vmem:[%s0 + $0x128] sm:$0xf]
  %v73 = vld [vmem:[%s0 + $0x12c] sm:$0xff]
  %v74 = vld [vmem:[%s0 + $0x134] sm:$0xf]
  %v75 = vld [vmem:[%s0 + $0x138] sm:$0xff]
  %v76 = vld [vmem:[%s0 + $0x140] sm:$0xf]
  %v77 = vld [vmem:[%s0 + $0x144] sm:$0xff]
  %v78 = vld [vmem:[%s0 + $0x14c] sm:$0xf]
  %v79 = vld [vmem:[%s0 + $0x150] sm:$0xff]
  %v80 = vld [vmem:[%s0 + $0x158] sm:$0xf]
  %v81 = vld [vmem:[%s0 + $0x15c] sm:$0xff]
  %v82 = vld [vmem:[%s0 + $0x164] sm:$0xf]
  %v83 = vld [vmem:[%s0 + $0x168] sm:$0xff]
  %v84 = vld [vmem:[%s0 + $0x170] sm:$0xf]
  %v85 = vld [vmem:[%s0 + $0x174] sm:$0xff]
  %v86 = vld [vmem:[%s0 + $0x17c] sm:$0xf]
  %v87 = vld [vmem:[%s0 + $0x180] sm:$0xff]
  %v88 = vld [vmem:[%s0 + $0x188] sm:$0xf]
  %v89 = vld [vmem:[%s0 + $0x18c] sm:$0xff]
  %v90 = vld [vmem:[%s0 + $0x194] sm:$0xf]
  %v91 = vld [vmem:[%s0 + $0x198] sm:$0xff]
  %v92 = vld [vmem:[%s0 + $0x1a0] sm:$0xf]
  %v93 = vld [vmem:[%s0 + $0x1a4] sm:$0xff]
  %v94 = vld [vmem:[%s0 + $0x1ac] sm:$0xf]
  %v95 = vld [vmem:[%s0 + $0x1b0] sm:$0xff]
  %v96 = vld [vmem:[%s0 + $0x1b8] sm:$0xf]
  %v97 = vld [vmem:[%s0 + $0x1bc] sm:$0xff]
  %v98 = vld [vmem:[%s0 + $0x1c4] sm:$0xf]
  %v99 = vld [vmem:[%s0 + $0x1c8] sm:$0xff]
  %v100 = vld [vmem:[%s0 + $0x1d0] sm:$0xf]
  %v101 = vld [vmem:[%s0 + $0x1d4] sm:$0xff]
  %v102 = vld [vmem:[%s0 + $0x1dc] sm:$0xf]
  %v103 = vld [vmem:[%s0 + $0x1e0] sm:$0xff]
  %v104 = vld [vmem:[%s0 + $0x1e8] sm:$0xf]
  %v105 = vld [vmem:[%s0 + $0x1ec] sm:$0xff]
  %v106 = vld [vmem:[%s0 + $0x1f4] sm:$0xf]
  %v107 = vld [vmem:[%s0 + $0x1f8] sm:$0xff]
  %v108 = vld [vmem:[%s0 + $0x200] sm:$0xf]
  %v109 = vld [vmem:[%s0 + $0x204] sm:$0xff]
  %v110 = vld [vmem:[%s0 + $0x20c] sm:$0xf]
  %v111 = vld [vmem:[%s0 + $0x210] sm:$0xff]
  %v112 = vld [vmem:[%s0 + $0x218] sm:$0xf]
  %v113 = vld [vmem:[%s0 + $0x21c] sm:$0xff]
  %v114 = vld [vmem:[%s0 + $0x224] sm:$0xf]
  %v115 = vld [vmem:[%s0 + $0x228] sm:$0xff]
  %v116 = vld [vmem:[%s0 + $0x230] sm:$0xf]
  %v117 = vld [vmem:[%s0 + $0x234] sm:$0xff]
  %v118 = vld [vmem:[%s0 + $0x23c] sm:$0xf]
  %v119 = vld [vmem:[%s0 + $0x240] sm:$0xff]
  %v120 = vld [vmem:[%s0 + $0x248] sm:$0xf]
  %v121 = vunpack.c.l.bf16 %v23
  %v122 = vunpack.c.h.bf16 %v23
  %v123 = vunpack.c.l.bf16 %v24
  %v124 = vunpack.c.l.bf16 %v25
  %v125 = vunpack.c.h.bf16 %v25
  %v126 = vunpack.c.l.bf16 %v26
  %v127 = vunpack.c.l.bf16 %v27
  %v128 = vunpack.c.h.bf16 %v27
  %v129 = vunpack.c.l.bf16 %v28
  %v130 = vunpack.c.l.bf16 %v29
  %v131 = vunpack.c.h.bf16 %v29
  %v132 = vunpack.c.l.bf16 %v30
  %v133 = vunpack.c.l.bf16 %v31
  %v134 = vunpack.c.h.bf16 %v31
  %v135 = vunpack.c.l.bf16 %v32
  %v136 = vunpack.c.l.bf16 %v33
  %v137 = vunpack.c.h.bf16 %v33
  %v138 = vunpack.c.l.bf16 %v34
  %v139 = vunpack.c.l.bf16 %v35
  %v140 = vunpack.c.h.bf16 %v35
  %v141 = vunpack.c.l.bf16 %v36
  %v142 = vunpack.c.l.bf16 %v37
  %v143 = vunpack.c.h.bf16 %v37
  %v144 = vunpack.c.l.bf16 %v38
  %v145 = vunpack.c.l.bf16 %v39
  %v146 = vunpack.c.h.bf16 %v39
  %v147 = vunpack.c.l.bf16 %v40
  %v148 = vunpack.c.l.bf16 %v41
  %v149 = vunpack.c.h.bf16 %v41
  %v150 = vunpack.c.l.bf16 %v42
  %v151 = vunpack.c.l.bf16 %v43
  %v152 = vunpack.c.h.bf16 %v43
  %v153 = vunpack.c.l.bf16 %v44
  %v154 = vunpack.c.l.bf16 %v45
  %v155 = vunpack.c.h.bf16 %v45
  %v156 = vunpack.c.l.bf16 %v46
  %v157 = vunpack.c.l.bf16 %v47
  %v158 = vunpack.c.h.bf16 %v47
  %v159 = vunpack.c.l.bf16 %v48
  %v160 = vunpack.c.l.bf16 %v49
  %v161 = vunpack.c.h.bf16 %v49
  %v162 = vunpack.c.l.bf16 %v50
  %v163 = vunpack.c.l.bf16 %v51
  %v164 = vunpack.c.h.bf16 %v51
  %v165 = vunpack.c.l.bf16 %v52
  %v166 = vunpack.c.l.bf16 %v53
  %v167 = vunpack.c.h.bf16 %v53
  %v168 = vunpack.c.l.bf16 %v54
  %v169 = vunpack.c.l.bf16 %v55
  %v170 = vunpack.c.h.bf16 %v55
  %v171 = vunpack.c.l.bf16 %v56
  %v172 = vunpack.c.l.bf16 %v57
  %v173 = vunpack.c.h.bf16 %v57
  %v174 = vunpack.c.l.bf16 %v58
  %v175 = vunpack.c.l.bf16 %v59
  %v176 = vunpack.c.h.bf16 %v59
  %v177 = vunpack.c.l.bf16 %v60
  %v178 = vunpack.c.l.bf16 %v61
  %v179 = vunpack.c.h.bf16 %v61
  %v180 = vunpack.c.l.bf16 %v62
  %v181 = vunpack.c.l.bf16 %v63
  %v182 = vunpack.c.h.bf16 %v63
  %v183 = vunpack.c.l.bf16 %v64
  %v184 = vunpack.c.l.bf16 %v65
  %v185 = vunpack.c.h.bf16 %v65
  %v186 = vunpack.c.l.bf16 %v66
  %v187 = vunpack.c.l.bf16 %v67
  %v188 = vunpack.c.h.bf16 %v67
  %v189 = vunpack.c.l.bf16 %v68
  %v190 = vunpack.c.l.bf16 %v69
  %v191 = vunpack.c.h.bf16 %v69
  %v192 = vunpack.c.l.bf16 %v70
  %v193 = vunpack.c.l.bf16 %v71
  %v194 = vunpack.c.h.bf16 %v71
  %v195 = vunpack.c.l.bf16 %v72
  %v196 = vunpack.c.l.bf16 %v73
  %v197 = vunpack.c.h.bf16 %v73
  %v198 = vunpack.c.l.bf16 %v74
  %v199 = vunpack.c.l.bf16 %v75
  %v200 = vunpack.c.h.bf16 %v75
  %v201 = vunpack.c.l.bf16 %v76
  %v202 = vunpack.c.l.bf16 %v77
  %v203 = vunpack.c.h.bf16 %v77
  %v204 = vunpack.c.l.bf16 %v78
  %v205 = vunpack.c.l.bf16 %v79
  %v206 = vunpack.c.h.bf16 %v79
  %v207 = vunpack.c.l.bf16 %v80
  %v208 = vunpack.c.l.bf16 %v81
  %v209 = vunpack.c.h.bf16 %v81
  %v210 = vunpack.c.l.bf16 %v82
  %v211 = vunpack.c.l.bf16 %v83
  %v212 = vunpack.c.h.bf16 %v83
  %v213 = vunpack.c.l.bf16 %v84
  %v214 = vunpack.c.l.bf16 %v85
  %v215 = vunpack.c.h.bf16 %v85
  %v216 = vunpack.c.l.bf16 %v86
  %v217 = vunpack.c.l.bf16 %v87
  %v218 = vunpack.c.h.bf16 %v87
  %v219 = vunpack.c.l.bf16 %v88
  %v220 = vunpack.c.l.bf16 %v89
  %v221 = vunpack.c.h.bf16 %v89
  %v222 = vunpack.c.l.bf16 %v90
  %v223 = vunpack.c.l.bf16 %v91
  %v224 = vunpack.c.h.bf16 %v91
  %v225 = vunpack.c.l.bf16 %v92
  %v226 = vunpack.c.l.bf16 %v93
  %v227 = vunpack.c.h.bf16 %v93
  %v228 = vunpack.c.l.bf16 %v94
  %v229 = vunpack.c.l.bf16 %v95
  %v230 = vunpack.c.h.bf16 %v95
  %v231 = vunpack.c.l.bf16 %v96
  %v232 = vunpack.c.l.bf16 %v97
  %v233 = vunpack.c.h.bf16 %v97
  %v234 = vunpack.c.l.bf16 %v98
  %v235 = vunpack.c.l.bf16 %v99
  %v236 = vunpack.c.h.bf16 %v99
  %v237 = vunpack.c.l.bf16 %v100
  %v238 = vunpack.c.l.bf16 %v101
  %v239 = vunpack.c.h.bf16 %v101
  %v240 = vunpack.c.l.bf16 %v102
  %v241 = vunpack.c.l.bf16 %v103
  %v242 = vunpack.c.h.bf16 %v103
  %v243 = vunpack.c.l.bf16 %v104
  %v244 = vunpack.c.l.bf16 %v105
  %v245 = vunpack.c.h.bf16 %v105
  %v246 = vunpack.c.l.bf16 %v106
  %v247 = vunpack.c.l.bf16 %v107
  %v248 = vunpack.c.h.bf16 %v107
  %v249 = vunpack.c.l.bf16 %v108
  %v250 = vunpack.c.l.bf16 %v109
  %v251 = vunpack.c.h.bf16 %v109
  %v252 = vunpack.c.l.bf16 %v110
  %v253 = vunpack.c.l.bf16 %v111
  %v254 = vunpack.c.h.bf16 %v111
  %v255 = vunpack.c.l.bf16 %v112
  %v256 = vunpack.c.l.bf16 %v113
  %v257 = vunpack.c.h.bf16 %v113
  %v258 = vunpack.c.l.bf16 %v114
  %v259 = vunpack.c.l.bf16 %v115
  %v260 = vunpack.c.h.bf16 %v115
  %v261 = vunpack.c.l.bf16 %v116
  %v262 = vunpack.c.l.bf16 %v117
  %v263 = vunpack.c.h.bf16 %v117
  %v264 = vunpack.c.l.bf16 %v118
  %v265 = vunpack.c.l.bf16 %v119
  %v266 = vunpack.c.h.bf16 %v119
  %v267 = vunpack.c.l.bf16 %v120
  %v268 = vmax.f32 %v121, 0.0
  %v269 = vmax.f32 %v122, 0.0
  %v270 = vmax.f32 %v123, 0.0
  %v271 = vmax.f32 %v124, 0.0
  %v272 = vmax.f32 %v125, 0.0
  %v273 = vmax.f32 %v126, 0.0
  %v274 = vmax.f32 %v127, 0.0
  %v275 = vmax.f32 %v128, 0.0
  %v276 = vmax.f32 %v129, 0.0
  %v277 = vmax.f32 %v130, 0.0
  %v278 = vmax.f32 %v131, 0.0
  %v279 = vmax.f32 %v132, 0.0
  %v280 = vmax.f32 %v133, 0.0
  %v281 = vmax.f32 %v134, 0.0
  %v282 = vmax.f32 %v135, 0.0
  %v283 = vmax.f32 %v136, 0.0
  %v284 = vmax.f32 %v137, 0.0
  %v285 = vmax.f32 %v138, 0.0
  %v286 = vmax.f32 %v139, 0.0
  %v287 = vmax.f32 %v140, 0.0
  %v288 = vmax.f32 %v141, 0.0
  %v289 = vmax.f32 %v142, 0.0
  %v290 = vmax.f32 %v143, 0.0
  %v291 = vmax.f32 %v144, 0.0
  %v292 = vmax.f32 %v145, 0.0
  %v293 = vmax.f32 %v146, 0.0
  %v294 = vmax.f32 %v147, 0.0
  %v295 = vmax.f32 %v148, 0.0
  %v296 = vmax.f32 %v149, 0.0
  %v297 = vmax.f32 %v150, 0.0
  %v298 = vmax.f32 %v151, 0.0
  %v299 = vmax.f32 %v152, 0.0
  %v300 = vmax.f32 %v153, 0.0
  %v301 = vmax.f32 %v154, 0.0
  %v302 = vmax.f32 %v155, 0.0
  %v303 = vmax.f32 %v156, 0.0
  %v304 = vmax.f32 %v157, 0.0
  %v305 = vmax.f32 %v158, 0.0
  %v306 = vmax.f32 %v159, 0.0
  %v307 = vmax.f32 %v160, 0.0
  %v308 = vmax.f32 %v161, 0.0
  %v309 = vmax.f32 %v162, 0.0
  %v310 = vmax.f32 %v163, 0.0
  %v311 = vmax.f32 %v164, 0.0
  %v312 = vmax.f32 %v165, 0.0
  %v313 = vmax.f32 %v166, 0.0
  %v314 = vmax.f32 %v167, 0.0
  %v315 = vmax.f32 %v168, 0.0
  %v316 = vmax.f32 %v169, 0.0
  %v317 = vmax.f32 %v170, 0.0
  %v318 = vmax.f32 %v171, 0.0
  %v319 = vmax.f32 %v172, 0.0
  %v320 = vmax.f32 %v173, 0.0
  %v321 = vmax.f32 %v174, 0.0
  %v322 = vmax.f32 %v175, 0.0
  %v323 = vmax.f32 %v176, 0.0
  %v324 = vmax.f32 %v177, 0.0
  %v325 = vmax.f32 %v178, 0.0
  %v326 = vmax.f32 %v179, 0.0
  %v327 = vmax.f32 %v180, 0.0
  %v328 = vmax.f32 %v181, 0.0
  %v329 = vmax.f32 %v182, 0.0
  %v330 = vmax.f32 %v183, 0.0
  %v331 = vmax.f32 %v184, 0.0
  %v332 = vmax.f32 %v185, 0.0
  %v333 = vmax.f32 %v186, 0.0
  %v334 = vmax.f32 %v187, 0.0
  %v335 = vmax.f32 %v188, 0.0
  %v336 = vmax.f32 %v189, 0.0
  %v337 = vmax.f32 %v190, 0.0
  %v338 = vmax.f32 %v191, 0.0
  %v339 = vmax.f32 %v192, 0.0
  %v340 = vmax.f32 %v193, 0.0
  %v341 = vmax.f32 %v194, 0.0
  %v342 = vmax.f32 %v195, 0.0
  %v343 = vmax.f32 %v196, 0.0
  %v344 = vmax.f32 %v197, 0.0
  %v345 = vmax.f32 %v198, 0.0
  %v346 = vmax.f32 %v199, 0.0
  %v347 = vmax.f32 %v200, 0.0
  %v348 = vmax.f32 %v201, 0.0
  %v349 = vmax.f32 %v202, 0.0
  %v350 = vmax.f32 %v203, 0.0
  %v351 = vmax.f32 %v204, 0.0
  %v352 = vmax.f32 %v205, 0.0
  %v353 = vmax.f32 %v206, 0.0
  %v354 = vmax.f32 %v207, 0.0
  %v355 = vmax.f32 %v208, 0.0
  %v356 = vmax.f32 %v209, 0.0
  %v357 = vmax.f32 %v210, 0.0
  %v358 = vmax.f32 %v211, 0.0
  %v359 = vmax.f32 %v212, 0.0
  %v360 = vmax.f32 %v213, 0.0
  %v361 = vmax.f32 %v214, 0.0
  %v362 = vmax.f32 %v215, 0.0
  %v363 = vmax.f32 %v216, 0.0
  %v364 = vmax.f32 %v217, 0.0
  %v365 = vmax.f32 %v218, 0.0
  %v366 = vmax.f32 %v219, 0.0
  %v367 = vmax.f32 %v220, 0.0
  %v368 = vmax.f32 %v221, 0.0
  %v369 = vmax.f32 %v222, 0.0
  %v370 = vmax.f32 %v223, 0.0
  %v371 = vmax.f32 %v224, 0.0
  %v372 = vmax.f32 %v225, 0.0
  %v373 = vmax.f32 %v226, 0.0
  %v374 = vmax.f32 %v227, 0.0
  %v375 = vmax.f32 %v228, 0.0
  %v376 = vmax.f32 %v229, 0.0
  %v377 = vmax.f32 %v230, 0.0
  %v378 = vmax.f32 %v231, 0.0
  %v379 = vmax.f32 %v232, 0.0
  %v380 = vmax.f32 %v233, 0.0
  %v381 = vmax.f32 %v234, 0.0
  %v382 = vmax.f32 %v235, 0.0
  %v383 = vmax.f32 %v236, 0.0
  %v384 = vmax.f32 %v237, 0.0
  %v385 = vmax.f32 %v238, 0.0
  %v386 = vmax.f32 %v239, 0.0
  %v387 = vmax.f32 %v240, 0.0
  %v388 = vmax.f32 %v241, 0.0
  %v389 = vmax.f32 %v242, 0.0
  %v390 = vmax.f32 %v243, 0.0
  %v391 = vmax.f32 %v244, 0.0
  %v392 = vmax.f32 %v245, 0.0
  %v393 = vmax.f32 %v246, 0.0
  %v394 = vmax.f32 %v247, 0.0
  %v395 = vmax.f32 %v248, 0.0
  %v396 = vmax.f32 %v249, 0.0
  %v397 = vmax.f32 %v250, 0.0
  %v398 = vmax.f32 %v251, 0.0
  %v399 = vmax.f32 %v252, 0.0
  %v400 = vmax.f32 %v253, 0.0
  %v401 = vmax.f32 %v254, 0.0
  %v402 = vmax.f32 %v255, 0.0
  %v403 = vmax.f32 %v256, 0.0
  %v404 = vmax.f32 %v257, 0.0
  %v405 = vmax.f32 %v258, 0.0
  %v406 = vmax.f32 %v259, 0.0
  %v407 = vmax.f32 %v260, 0.0
  %v408 = vmax.f32 %v261, 0.0
  %v409 = vmax.f32 %v262, 0.0
  %v410 = vmax.f32 %v263, 0.0
  %v411 = vmax.f32 %v264, 0.0
  %v412 = vmax.f32 %v265, 0.0
  %v413 = vmax.f32 %v266, 0.0
  %v414 = vmax.f32 %v267, 0.0
  %v415 = vpack.c.bf16 %v271, %v268
  %v416 = vpack.c.bf16 %v272, %v269
  %v417 = vpack.c.bf16 %v273, %v270
  %v418 = vpack.c.bf16 %v277, %v274
  %v419 = vpack.c.bf16 %v278, %v275
  %v420 = vpack.c.bf16 %v279, %v276
  %v421 = vpack.c.bf16 %v283, %v280
  %v422 = vpack.c.bf16 %v284, %v281
  %v423 = vpack.c.bf16 %v285, %v282
  %v424 = vpack.c.bf16 %v289, %v286
  %v425 = vpack.c.bf16 %v290, %v287
  %v426 = vpack.c.bf16 %v291, %v288
  %v427 = vpack.c.bf16 %v295, %v292
  %v428 = vpack.c.bf16 %v296, %v293
  %v429 = vpack.c.bf16 %v297, %v294
  %v430 = vpack.c.bf16 %v301, %v298
  %v431 = vpack.c.bf16 %v302, %v299
  %v432 = vpack.c.bf16 %v303, %v300
  %v433 = vpack.c.bf16 %v307, %v304
  %v434 = vpack.c.bf16 %v308, %v305
  %v435 = vpack.c.bf16 %v309, %v306
  %v436 = vpack.c.bf16 %v313, %v310
  %v437 = vpack.c.bf16 %v314, %v311
  %v438 = vpack.c.bf16 %v315, %v312
  %v439 = vpack.c.bf16 %v319, %v316
  %v440 = vpack.c.bf16 %v320, %v317
  %v441 = vpack.c.bf16 %v321, %v318
  %v442 = vpack.c.bf16 %v325, %v322
  %v443 = vpack.c.bf16 %v326, %v323
  %v444 = vpack.c.bf16 %v327, %v324
  %v445 = vpack.c.bf16 %v331, %v328
  %v446 = vpack.c.bf16 %v332, %v329
  %v447 = vpack.c.bf16 %v333, %v330
  %v448 = vpack.c.bf16 %v337, %v334
  %v449 = vpack.c.bf16 %v338, %v335
  %v450 = vpack.c.bf16 %v339, %v336
  %v451 = vpack.c.bf16 %v343, %v340
  %v452 = vpack.c.bf16 %v344, %v341
  %v453 = vpack.c.bf16 %v345, %v342
  %v454 = vpack.c.bf16 %v349, %v346
  %v455 = vpack.c.bf16 %v350, %v347
  %v456 = vpack.c.bf16 %v351, %v348
  %v457 = vpack.c.bf16 %v355, %v352
  %v458 = vpack.c.bf16 %v356, %v353
  %v459 = vpack.c.bf16 %v357, %v354
  %v460 = vpack.c.bf16 %v361, %v358
  %v461 = vpack.c.bf16 %v362, %v359
  %v462 = vpack.c.bf16 %v363, %v360
  %v463 = vpack.c.bf16 %v367, %v364
  %v464 = vpack.c.bf16 %v368, %v365
  %v465 = vpack.c.bf16 %v369, %v366
  %v466 = vpack.c.bf16 %v373, %v370
  %v467 = vpack.c.bf16 %v374, %v371
  %v468 = vpack.c.bf16 %v375, %v372
  %v469 = vpack.c.bf16 %v379, %v376
  %v470 = vpack.c.bf16 %v380, %v377
  %v471 = vpack.c.bf16 %v381, %v378
  %v472 = vpack.c.bf16 %v385, %v382
  %v473 = vpack.c.bf16 %v386, %v383
  %v474 = vpack.c.bf16 %v387, %v384
  %v475 = vpack.c.bf16 %v391, %v388
  %v476 = vpack.c.bf16 %v392, %v389
  %v477 = vpack.c.bf16 %v393, %v390
  %v478 = vpack.c.bf16 %v397, %v394
  %v479 = vpack.c.bf16 %v398, %v395
  %v480 = vpack.c.bf16 %v399, %v396
  %v481 = vpack.c.bf16 %v403, %v400
  %v482 = vpack.c.bf16 %v404, %v401
  %v483 = vpack.c.bf16 %v405, %v402
  %v484 = vpack.c.bf16 %v409, %v406
  %v485 = vpack.c.bf16 %v410, %v407
  %v486 = vpack.c.bf16 %v411, %v408
  %v487 = vpack.c.bf16 %v412, %v412
  %v488 = vpack.c.bf16 %v413, %v413
  %v489 = vpack.c.bf16 %v414, %v414
  %v490 = vld [vmem:[%s1] sm:$0xf]
  %v491 = vld [vmem:[%s1 + $0x4] sm:$0xf]
  %v492 = vld [vmem:[%s1 + $0x8] sm:$0xf]
  %v493 = vld [vmem:[%s1 + $0xc] sm:$0xf]
  %v494 = vld [vmem:[%s1 + $0x10] sm:$0xf]
  %v495 = vld [vmem:[%s1 + $0x14] sm:$0xf]
  %v496 = vld [vmem:[%s1 + $0x18] sm:$0xf]
  %v497 = vld [vmem:[%s1 + $0x1c] sm:$0xf]
  %v498 = vld [vmem:[%s1 + $0x20] sm:$0xf]
  %v499 = vld [vmem:[%s1 + $0x24] sm:$0xf]
  %v500 = vld [vmem:[%s1 + $0x28] sm:$0xf]
  %v501 = vld [vmem:[%s1 + $0x2c] sm:$0xf]
  %v502 = vld [vmem:[%s1 + $0x30] sm:$0xf]
  %v503 = vld [vmem:[%s1 + $0x34] sm:$0xf]
  %v504 = vld [vmem:[%s1 + $0x38] sm:$0xf]
  %v505 = vld [vmem:[%s1 + $0x3c] sm:$0xf]
  %v506 = vld [vmem:[%s1 + $0x40] sm:$0xf]
  %v507 = vld [vmem:[%s1 + $0x44] sm:$0xf]
  %v508 = vld [vmem:[%s1 + $0x48] sm:$0xf]
  %v509 = vld [vmem:[%s1 + $0x4c] sm:$0xf]
  %v510 = vld [vmem:[%s1 + $0x50] sm:$0xf]
  %v511 = vld [vmem:[%s1 + $0x54] sm:$0xf]
  %v512 = vld [vmem:[%s1 + $0x58] sm:$0xf]
  %v513 = vld [vmem:[%s1 + $0x5c] sm:$0xf]
  %v514 = vld [vmem:[%s1 + $0x60] sm:$0xf]
  %v515 = vld [vmem:[%s1 + $0x64] sm:$0xf]
  %v516 = vld [vmem:[%s1 + $0x68] sm:$0xf]
  %v517 = vld [vmem:[%s1 + $0x6c] sm:$0xf]
  %v518 = vld [vmem:[%s1 + $0x70] sm:$0xf]
  %v519 = vld [vmem:[%s1 + $0x74] sm:$0xf]
  %v520 = vld [vmem:[%s1 + $0x78] sm:$0xf]
  %v521 = vld [vmem:[%s1 + $0x7c] sm:$0xf]
  %v522 = vld [vmem:[%s1 + $0x80] sm:$0xf]
  %v523 = vld [vmem:[%s1 + $0x84] sm:$0xf]
  %v524 = vld [vmem:[%s1 + $0x88] sm:$0xf]
  %v525 = vld [vmem:[%s1 + $0x8c] sm:$0xf]
  %v526 = vld [vmem:[%s1 + $0x90] sm:$0xf]
  %v527 = vld [vmem:[%s1 + $0x94] sm:$0xf]
  %v528 = vld [vmem:[%s1 + $0x98] sm:$0xf]
  %v529 = vld [vmem:[%s1 + $0x9c] sm:$0xf]
  %v530 = vld [vmem:[%s1 + $0xa0] sm:$0xf]
  %v531 = vld [vmem:[%s1 + $0xa4] sm:$0xf]
  %v532 = vld [vmem:[%s1 + $0xa8] sm:$0xf]
  %v533 = vld [vmem:[%s1 + $0xac] sm:$0xf]
  %v534 = vld [vmem:[%s1 + $0xb0] sm:$0xf]
  %v535 = vld [vmem:[%s1 + $0xb4] sm:$0xf]
  %v536 = vld [vmem:[%s1 + $0xb8] sm:$0xf]
  %v537 = vld [vmem:[%s1 + $0xbc] sm:$0xf]
  %v586 = vunpack.c.l.b16 %v490
  %v587 = vunpack.c.l.b16 %v491
  %v588 = vunpack.c.l.b16 %v492
  %v589 = vunpack.c.l.b16 %v493
  %v590 = vunpack.c.l.b16 %v494
  %v591 = vunpack.c.l.b16 %v495
  %v592 = vunpack.c.l.b16 %v496
  %v593 = vunpack.c.l.b16 %v497
  %v594 = vunpack.c.l.b16 %v498
  %v595 = vunpack.c.l.b16 %v499
  %v596 = vunpack.c.l.b16 %v500
  %v597 = vunpack.c.l.b16 %v501
  %v598 = vunpack.c.l.b16 %v502
  %v599 = vunpack.c.l.b16 %v503
  %v600 = vunpack.c.l.b16 %v504
  %v601 = vunpack.c.l.b16 %v505
  %v602 = vunpack.c.l.b16 %v506
  %v603 = vunpack.c.l.b16 %v507
  %v604 = vunpack.c.l.b16 %v508
  %v605 = vunpack.c.l.b16 %v509
  %v606 = vunpack.c.l.b16 %v510
  %v607 = vunpack.c.l.b16 %v511
  %v608 = vunpack.c.l.b16 %v512
  %v609 = vunpack.c.l.b16 %v513
  %v610 = vunpack.c.l.b16 %v514
  %v611 = vunpack.c.l.b16 %v515
  %v612 = vunpack.c.l.b16 %v516
  %v613 = vunpack.c.l.b16 %v517
  %v614 = vunpack.c.l.b16 %v518
  %v615 = vunpack.c.l.b16 %v519
  %v616 = vunpack.c.l.b16 %v520
  %v617 = vunpack.c.l.b16 %v521
  %v618 = vunpack.c.l.b16 %v522
  %v619 = vunpack.c.l.b16 %v523
  %v620 = vunpack.c.l.b16 %v524
  %v621 = vunpack.c.l.b16 %v525
  %v622 = vunpack.c.l.b16 %v526
  %v623 = vunpack.c.l.b16 %v527
  %v624 = vunpack.c.l.b16 %v528
  %v625 = vunpack.c.l.b16 %v529
  %v626 = vunpack.c.l.b16 %v530
  %v627 = vunpack.c.l.b16 %v531
  %v628 = vunpack.c.l.b16 %v532
  %v629 = vunpack.c.l.b16 %v533
  %v630 = vunpack.c.l.b16 %v534
  %v631 = vunpack.c.l.b16 %v535
  %v632 = vunpack.c.l.b16 %v536
  %v633 = vunpack.c.l.b16 %v537
  %v634 = vpack.c.b16 %v587, %v586
  %v635 = vpack.c.b16 %v589, %v588
  %v636 = vpack.c.b16 %v591, %v590
  %v637 = vpack.c.b16 %v593, %v592
  %v638 = vpack.c.b16 %v595, %v594
  %v639 = vpack.c.b16 %v597, %v596
  %v640 = vpack.c.b16 %v599, %v598
  %v641 = vpack.c.b16 %v601, %v600
  %v642 = vpack.c.b16 %v603, %v602
  %v643 = vpack.c.b16 %v605, %v604
  %v644 = vpack.c.b16 %v607, %v606
  %v645 = vpack.c.b16 %v609, %v608
  %v646 = vpack.c.b16 %v611, %v610
  %v647 = vpack.c.b16 %v613, %v612
  %v648 = vpack.c.b16 %v615, %v614
  %v649 = vpack.c.b16 %v617, %v616
  %v650 = vpack.c.b16 %v619, %v618
  %v651 = vpack.c.b16 %v621, %v620
  %v652 = vpack.c.b16 %v623, %v622
  %v653 = vpack.c.b16 %v625, %v624
  %v654 = vpack.c.b16 %v627, %v626
  %v655 = vpack.c.b16 %v629, %v628
  %v656 = vpack.c.b16 %v631, %v630
  %v657 = vpack.c.b16 %v633, %v632
  %682 = vmatpush.bf16.msra.mxu0 %v641
  %683 = vmatpush.bf16.msra.mxu0 %v640
  %684 = vmatpush.bf16.msra.mxu0 %v639
  %685 = vmatpush.bf16.msra.mxu0 %v638
  %686 = vmatpush.bf16.msra.mxu0 %v637
  %687 = vmatpush.bf16.msra.mxu0 %v636
  %688 = vmatpush.bf16.msra.mxu0 %v635
  %689 = vmatpush.bf16.msra.mxu0 %v634
  %690 = vmatmul.bf16.gmra.mxu0 %v415
  %v691 = vpop.f32.mrf.mxu0
  %v692 = vadd.f32 0.0, %v691
  %v693 = vpop.f32.mrf.mxu0
  %v694 = vadd.f32 0.0, %v693
  %695 = vmatmul.bf16.gmra.mxu0 %v418
  %v696 = vpop.f32.mrf.mxu0
  %v697 = vadd.f32 0.0, %v696
  %v698 = vpop.f32.mrf.mxu0
  %v699 = vadd.f32 0.0, %v698
  %700 = vmatmul.bf16.gmra.mxu0 %v421
  %v701 = vpop.f32.mrf.mxu0
  %v702 = vadd.f32 0.0, %v701
  %v703 = vpop.f32.mrf.mxu0
  %v704 = vadd.f32 0.0, %v703
  %705 = vmatmul.bf16.gmra.mxu0 %v424
  %v706 = vpop.f32.mrf.mxu0
  %v707 = vadd.f32 0.0, %v706
  %v708 = vpop.f32.mrf.mxu0
  %v709 = vadd.f32 0.0, %v708
  %710 = vmatmul.bf16.gmra.mxu0 %v427
  %v711 = vpop.f32.mrf.mxu0
  %v712 = vadd.f32 0.0, %v711
  %v713 = vpop.f32.mrf.mxu0
  %v714 = vadd.f32 0.0, %v713
  %715 = vmatmul.bf16.gmra.mxu0 %v430
  %v716 = vpop.f32.mrf.mxu0
  %v717 = vadd.f32 0.0, %v716
  %v718 = vpop.f32.mrf.mxu0
  %v719 = vadd.f32 0.0, %v718
  %720 = vmatmul.bf16.gmra.mxu0 %v433
  %v721 = vpop.f32.mrf.mxu0
  %v722 = vadd.f32 0.0, %v721
  %v723 = vpop.f32.mrf.mxu0
  %v724 = vadd.f32 0.0, %v723
  %725 = vmatmul.bf16.gmra.mxu0 %v436
  %v726 = vpop.f32.mrf.mxu0
  %v727 = vadd.f32 0.0, %v726
  %v728 = vpop.f32.mrf.mxu0
  %v729 = vadd.f32 0.0, %v728
  %730 = vmatmul.bf16.gmra.mxu0 %v439
  %v731 = vpop.f32.mrf.mxu0
  %v732 = vadd.f32 0.0, %v731
  %v733 = vpop.f32.mrf.mxu0
  %v734 = vadd.f32 0.0, %v733
  %735 = vmatmul.bf16.gmra.mxu0 %v442
  %v736 = vpop.f32.mrf.mxu0
  %v737 = vadd.f32 0.0, %v736
  %v738 = vpop.f32.mrf.mxu0
  %v739 = vadd.f32 0.0, %v738
  %740 = vmatmul.bf16.gmra.mxu0 %v445
  %v741 = vpop.f32.mrf.mxu0
  %v742 = vadd.f32 0.0, %v741
  %v743 = vpop.f32.mrf.mxu0
  %v744 = vadd.f32 0.0, %v743
  %745 = vmatmul.bf16.gmra.mxu0 %v448
  %v746 = vpop.f32.mrf.mxu0
  %v747 = vadd.f32 0.0, %v746
  %v748 = vpop.f32.mrf.mxu0
  %v749 = vadd.f32 0.0, %v748
  %750 = vmatmul.bf16.gmra.mxu0 %v451
  %v751 = vpop.f32.mrf.mxu0
  %v752 = vadd.f32 0.0, %v751
  %v753 = vpop.f32.mrf.mxu0
  %v754 = vadd.f32 0.0, %v753
  %755 = vmatmul.bf16.gmra.mxu0 %v454
  %v756 = vpop.f32.mrf.mxu0
  %v757 = vadd.f32 0.0, %v756
  %v758 = vpop.f32.mrf.mxu0
  %v759 = vadd.f32 0.0, %v758
  %760 = vmatmul.bf16.gmra.mxu0 %v457
  %v761 = vpop.f32.mrf.mxu0
  %v762 = vadd.f32 0.0, %v761
  %v763 = vpop.f32.mrf.mxu0
  %v764 = vadd.f32 0.0, %v763
  %765 = vmatmul.bf16.gmra.mxu0 %v460
  %v766 = vpop.f32.mrf.mxu0
  %v767 = vadd.f32 0.0, %v766
  %v768 = vpop.f32.mrf.mxu0
  %v769 = vadd.f32 0.0, %v768
  %770 = vmatmul.bf16.gmra.mxu0 %v463
  %v771 = vpop.f32.mrf.mxu0
  %v772 = vadd.f32 0.0, %v771
  %v773 = vpop.f32.mrf.mxu0
  %v774 = vadd.f32 0.0, %v773
  %775 = vmatmul.bf16.gmra.mxu0 %v466
  %v776 = vpop.f32.mrf.mxu0
  %v777 = vadd.f32 0.0, %v776
  %v778 = vpop.f32.mrf.mxu0
  %v779 = vadd.f32 0.0, %v778
  %780 = vmatmul.bf16.gmra.mxu0 %v469
  %v781 = vpop.f32.mrf.mxu0
  %v782 = vadd.f32 0.0, %v781
  %v783 = vpop.f32.mrf.mxu0
  %v784 = vadd.f32 0.0, %v783
  %785 = vmatmul.bf16.gmra.mxu0 %v472
  %v786 = vpop.f32.mrf.mxu0
  %v787 = vadd.f32 0.0, %v786
  %v788 = vpop.f32.mrf.mxu0
  %v789 = vadd.f32 0.0, %v788
  %790 = vmatmul.bf16.gmra.mxu0 %v475
  %v791 = vpop.f32.mrf.mxu0
  %v792 = vadd.f32 0.0, %v791
  %v793 = vpop.f32.mrf.mxu0
  %v794 = vadd.f32 0.0, %v793
  %795 = vmatmul.bf16.gmra.mxu0 %v478
  %v796 = vpop.f32.mrf.mxu0
  %v797 = vadd.f32 0.0, %v796
  %v798 = vpop.f32.mrf.mxu0
  %v799 = vadd.f32 0.0, %v798
  %800 = vmatmul.bf16.gmra.mxu0 %v481
  %v801 = vpop.f32.mrf.mxu0
  %v802 = vadd.f32 0.0, %v801
  %v803 = vpop.f32.mrf.mxu0
  %v804 = vadd.f32 0.0, %v803
  %805 = vmatmul.bf16.gmra.mxu0 %v484
  %v806 = vpop.f32.mrf.mxu0
  %v807 = vadd.f32 0.0, %v806
  %v808 = vpop.f32.mrf.mxu0
  %v809 = vadd.f32 0.0, %v808
  %810 = vmatmul.bf16.gmra.mxu0 %v487
  %v811 = vpop.f32.mrf.mxu0
  %v812 = vadd.f32 0.0, %v811
  %v813 = vpop.f32.mrf.mxu0
  %814 = vdwg.mxu0
  %815 = vmatpush.bf16.msra.mxu0 %v649
  %816 = vmatpush.bf16.msra.mxu0 %v648
  %817 = vmatpush.bf16.msra.mxu0 %v647
  %818 = vmatpush.bf16.msra.mxu0 %v646
  %819 = vmatpush.bf16.msra.mxu0 %v645
  %820 = vmatpush.bf16.msra.mxu0 %v644
  %821 = vmatpush.bf16.msra.mxu0 %v643
  %822 = vmatpush.bf16.msra.mxu0 %v642
  %823 = vmatmul.bf16.gmra.mxu0 %v416
  %v824 = vpop.f32.mrf.mxu0
  %v825 = vadd.f32 %v692, %v824
  %v826 = vpop.f32.mrf.mxu0
  %v827 = vadd.f32 %v694, %v826
  %828 = vmatmul.bf16.gmra.mxu0 %v419
  %v829 = vpop.f32.mrf.mxu0
  %v830 = vadd.f32 %v697, %v829
  %v831 = vpop.f32.mrf.mxu0
  %v832 = vadd.f32 %v699, %v831
  %833 = vmatmul.bf16.gmra.mxu0 %v422
  %v834 = vpop.f32.mrf.mxu0
  %v835 = vadd.f32 %v702, %v834
  %v836 = vpop.f32.mrf.mxu0
  %v837 = vadd.f32 %v704, %v836
  %838 = vmatmul.bf16.gmra.mxu0 %v425
  %v839 = vpop.f32.mrf.mxu0
  %v840 = vadd.f32 %v707, %v839
  %v841 = vpop.f32.mrf.mxu0
  %v842 = vadd.f32 %v709, %v841
  %843 = vmatmul.bf16.gmra.mxu0 %v428
  %v844 = vpop.f32.mrf.mxu0
  %v845 = vadd.f32 %v712, %v844
  %v846 = vpop.f32.mrf.mxu0
  %v847 = vadd.f32 %v714, %v846
  %848 = vmatmul.bf16.gmra.mxu0 %v431
  %v849 = vpop.f32.mrf.mxu0
  %v850 = vadd.f32 %v717, %v849
  %v851 = vpop.f32.mrf.mxu0
  %v852 = vadd.f32 %v719, %v851
  %853 = vmatmul.bf16.gmra.mxu0 %v434
  %v854 = vpop.f32.mrf.mxu0
  %v855 = vadd.f32 %v722, %v854
  %v856 = vpop.f32.mrf.mxu0
  %v857 = vadd.f32 %v724, %v856
  %858 = vmatmul.bf16.gmra.mxu0 %v437
  %v859 = vpop.f32.mrf.mxu0
  %v860 = vadd.f32 %v727, %v859
  %v861 = vpop.f32.mrf.mxu0
  %v862 = vadd.f32 %v729, %v861
  %863 = vmatmul.bf16.gmra.mxu0 %v440
  %v864 = vpop.f32.mrf.mxu0
  %v865 = vadd.f32 %v732, %v864
  %v866 = vpop.f32.mrf.mxu0
  %v867 = vadd.f32 %v734, %v866
  %868 = vmatmul.bf16.gmra.mxu0 %v443
  %v869 = vpop.f32.mrf.mxu0
  %v870 = vadd.f32 %v737, %v869
  %v871 = vpop.f32.mrf.mxu0
  %v872 = vadd.f32 %v739, %v871
  %873 = vmatmul.bf16.gmra.mxu0 %v446
  %v874 = vpop.f32.mrf.mxu0
  %v875 = vadd.f32 %v742, %v874
  %v876 = vpop.f32.mrf.mxu0
  %v877 = vadd.f32 %v744, %v876
  %878 = vmatmul.bf16.gmra.mxu0 %v449
  %v879 = vpop.f32.mrf.mxu0
  %v880 = vadd.f32 %v747, %v879
  %v881 = vpop.f32.mrf.mxu0
  %v882 = vadd.f32 %v749, %v881
  %883 = vmatmul.bf16.gmra.mxu0 %v452
  %v884 = vpop.f32.mrf.mxu0
  %v885 = vadd.f32 %v752, %v884
  %v886 = vpop.f32.mrf.mxu0
  %v887 = vadd.f32 %v754, %v886
  %888 = vmatmul.bf16.gmra.mxu0 %v455
  %v889 = vpop.f32.mrf.mxu0
  %v890 = vadd.f32 %v757, %v889
  %v891 = vpop.f32.mrf.mxu0
  %v892 = vadd.f32 %v759, %v891
  %893 = vmatmul.bf16.gmra.mxu0 %v458
  %v894 = vpop.f32.mrf.mxu0
  %v895 = vadd.f32 %v762, %v894
  %v896 = vpop.f32.mrf.mxu0
  %v897 = vadd.f32 %v764, %v896
  %898 = vmatmul.bf16.gmra.mxu0 %v461
  %v899 = vpop.f32.mrf.mxu0
  %v900 = vadd.f32 %v767, %v899
  %v901 = vpop.f32.mrf.mxu0
  %v902 = vadd.f32 %v769, %v901
  %903 = vmatmul.bf16.gmra.mxu0 %v464
  %v904 = vpop.f32.mrf.mxu0
  %v905 = vadd.f32 %v772, %v904
  %v906 = vpop.f32.mrf.mxu0
  %v907 = vadd.f32 %v774, %v906
  %908 = vmatmul.bf16.gmra.mxu0 %v467
  %v909 = vpop.f32.mrf.mxu0
  %v910 = vadd.f32 %v777, %v909
  %v911 = vpop.f32.mrf.mxu0
  %v912 = vadd.f32 %v779, %v911
  %913 = vmatmul.bf16.gmra.mxu0 %v470
  %v914 = vpop.f32.mrf.mxu0
  %v915 = vadd.f32 %v782, %v914
  %v916 = vpop.f32.mrf.mxu0
  %v917 = vadd.f32 %v784, %v916
  %918 = vmatmul.bf16.gmra.mxu0 %v473
  %v919 = vpop.f32.mrf.mxu0
  %v920 = vadd.f32 %v787, %v919
  %v921 = vpop.f32.mrf.mxu0
  %v922 = vadd.f32 %v789, %v921
  %923 = vmatmul.bf16.gmra.mxu0 %v476
  %v924 = vpop.f32.mrf.mxu0
  %v925 = vadd.f32 %v792, %v924
  %v926 = vpop.f32.mrf.mxu0
  %v927 = vadd.f32 %v794, %v926
  %928 = vmatmul.bf16.gmra.mxu0 %v479
  %v929 = vpop.f32.mrf.mxu0
  %v930 = vadd.f32 %v797, %v929
  %v931 = vpop.f32.mrf.mxu0
  %v932 = vadd.f32 %v799, %v931
  %933 = vmatmul.bf16.gmra.mxu0 %v482
  %v934 = vpop.f32.mrf.mxu0
  %v935 = vadd.f32 %v802, %v934
  %v936 = vpop.f32.mrf.mxu0
  %v937 = vadd.f32 %v804, %v936
  %938 = vmatmul.bf16.gmra.mxu0 %v485
  %v939 = vpop.f32.mrf.mxu0
  %v940 = vadd.f32 %v807, %v939
  %v941 = vpop.f32.mrf.mxu0
  %v942 = vadd.f32 %v809, %v941
  %943 = vmatmul.bf16.gmra.mxu0 %v488
  %v944 = vpop.f32.mrf.mxu0
  %v945 = vadd.f32 %v812, %v944
  %v946 = vpop.f32.mrf.mxu0
  %947 = vdwg.mxu0
  %948 = vmatpush.bf16.msra.mxu0 %v657
  %949 = vmatpush.bf16.msra.mxu0 %v656
  %950 = vmatpush.bf16.msra.mxu0 %v655
  %951 = vmatpush.bf16.msra.mxu0 %v654
  %952 = vmatpush.bf16.msra.mxu0 %v653
  %953 = vmatpush.bf16.msra.mxu0 %v652
  %954 = vmatpush.bf16.msra.mxu0 %v651
  %955 = vmatpush.bf16.msra.mxu0 %v650
  %956 = vmatmul.bf16.gmra.mxu0 %v417
  %v957 = vpop.f32.mrf.mxu0
  %v958 = vadd.f32 %v825, %v957
  %v959 = vpop.f32.mrf.mxu0
  %v960 = vadd.f32 %v827, %v959
  %961 = vmatmul.bf16.gmra.mxu0 %v420
  %v962 = vpop.f32.mrf.mxu0
  %v963 = vadd.f32 %v830, %v962
  %v964 = vpop.f32.mrf.mxu0
  %v965 = vadd.f32 %v832, %v964
  %966 = vmatmul.bf16.gmra.mxu0 %v423
  %v967 = vpop.f32.mrf.mxu0
  %v968 = vadd.f32 %v835, %v967
  %v969 = vpop.f32.mrf.mxu0
  %v970 = vadd.f32 %v837, %v969
  %971 = vmatmul.bf16.gmra.mxu0 %v426
  %v972 = vpop.f32.mrf.mxu0
  %v973 = vadd.f32 %v840, %v972
  %v974 = vpop.f32.mrf.mxu0
  %v975 = vadd.f32 %v842, %v974
  %976 = vmatmul.bf16.gmra.mxu0 %v429
  %v977 = vpop.f32.mrf.mxu0
  %v978 = vadd.f32 %v845, %v977
  %v979 = vpop.f32.mrf.mxu0
  %v980 = vadd.f32 %v847, %v979
  %981 = vmatmul.bf16.gmra.mxu0 %v432
  %v982 = vpop.f32.mrf.mxu0
  %v983 = vadd.f32 %v850, %v982
  %v984 = vpop.f32.mrf.mxu0
  %v985 = vadd.f32 %v852, %v984
  %986 = vmatmul.bf16.gmra.mxu0 %v435
  %v987 = vpop.f32.mrf.mxu0
  %v988 = vadd.f32 %v855, %v987
  %v989 = vpop.f32.mrf.mxu0
  %v990 = vadd.f32 %v857, %v989
  %991 = vmatmul.bf16.gmra.mxu0 %v438
  %v992 = vpop.f32.mrf.mxu0
  %v993 = vadd.f32 %v860, %v992
  %v994 = vpop.f32.mrf.mxu0
  %v995 = vadd.f32 %v862, %v994
  %996 = vmatmul.bf16.gmra.mxu0 %v441
  %v997 = vpop.f32.mrf.mxu0
  %v998 = vadd.f32 %v865, %v997
  %v999 = vpop.f32.mrf.mxu0
  %v1000 = vadd.f32 %v867, %v999
  %1001 = vmatmul.bf16.gmra.mxu0 %v444
  %v1002 = vpop.f32.mrf.mxu0
  %v1003 = vadd.f32 %v870, %v1002
  %v1004 = vpop.f32.mrf.mxu0
  %v1005 = vadd.f32 %v872, %v1004
  %1006 = vmatmul.bf16.gmra.mxu0 %v447
  %v1007 = vpop.f32.mrf.mxu0
  %v1008 = vadd.f32 %v875, %v1007
  %v1009 = vpop.f32.mrf.mxu0
  %v1010 = vadd.f32 %v877, %v1009
  %1011 = vmatmul.bf16.gmra.mxu0 %v450
  %v1012 = vpop.f32.mrf.mxu0
  %v1013 = vadd.f32 %v880, %v1012
  %v1014 = vpop.f32.mrf.mxu0
  %v1015 = vadd.f32 %v882, %v1014
  %1016 = vmatmul.bf16.gmra.mxu0 %v453
  %v1017 = vpop.f32.mrf.mxu0
  %v1018 = vadd.f32 %v885, %v1017
  %v1019 = vpop.f32.mrf.mxu0
  %v1020 = vadd.f32 %v887, %v1019
  %1021 = vmatmul.bf16.gmra.mxu0 %v456
  %v1022 = vpop.f32.mrf.mxu0
  %v1023 = vadd.f32 %v890, %v1022
  %v1024 = vpop.f32.mrf.mxu0
  %v1025 = vadd.f32 %v892, %v1024
  %1026 = vmatmul.bf16.gmra.mxu0 %v459
  %v1027 = vpop.f32.mrf.mxu0
  %v1028 = vadd.f32 %v895, %v1027
  %v1029 = vpop.f32.mrf.mxu0
  %v1030 = vadd.f32 %v897, %v1029
  %1031 = vmatmul.bf16.gmra.mxu0 %v462
  %v1032 = vpop.f32.mrf.mxu0
  %v1033 = vadd.f32 %v900, %v1032
  %v1034 = vpop.f32.mrf.mxu0
  %v1035 = vadd.f32 %v902, %v1034
  %1036 = vmatmul.bf16.gmra.mxu0 %v465
  %v1037 = vpop.f32.mrf.mxu0
  %v1038 = vadd.f32 %v905, %v1037
  %v1039 = vpop.f32.mrf.mxu0
  %v1040 = vadd.f32 %v907, %v1039
  %1041 = vmatmul.bf16.gmra.mxu0 %v468
  %v1042 = vpop.f32.mrf.mxu0
  %v1043 = vadd.f32 %v910, %v1042
  %v1044 = vpop.f32.mrf.mxu0
  %v1045 = vadd.f32 %v912, %v1044
  %1046 = vmatmul.bf16.gmra.mxu0 %v471
  %v1047 = vpop.f32.mrf.mxu0
  %v1048 = vadd.f32 %v915, %v1047
  %v1049 = vpop.f32.mrf.mxu0
  %v1050 = vadd.f32 %v917, %v1049
  %1051 = vmatmul.bf16.gmra.mxu0 %v474
  %v1052 = vpop.f32.mrf.mxu0
  %v1053 = vadd.f32 %v920, %v1052
  %v1054 = vpop.f32.mrf.mxu0
  %v1055 = vadd.f32 %v922, %v1054
  %1056 = vmatmul.bf16.gmra.mxu0 %v477
  %v1057 = vpop.f32.mrf.mxu0
  %v1058 = vadd.f32 %v925, %v1057
  %v1059 = vpop.f32.mrf.mxu0
  %v1060 = vadd.f32 %v927, %v1059
  %1061 = vmatmul.bf16.gmra.mxu0 %v480
  %v1062 = vpop.f32.mrf.mxu0
  %v1063 = vadd.f32 %v930, %v1062
  %v1064 = vpop.f32.mrf.mxu0
  %v1065 = vadd.f32 %v932, %v1064
  %1066 = vmatmul.bf16.gmra.mxu0 %v483
  %v1067 = vpop.f32.mrf.mxu0
  %v1068 = vadd.f32 %v935, %v1067
  %v1069 = vpop.f32.mrf.mxu0
  %v1070 = vadd.f32 %v937, %v1069
  %1071 = vmatmul.bf16.gmra.mxu0 %v486
  %v1072 = vpop.f32.mrf.mxu0
  %v1073 = vadd.f32 %v940, %v1072
  %v1074 = vpop.f32.mrf.mxu0
  %v1075 = vadd.f32 %v942, %v1074
  %1076 = vmatmul.bf16.gmra.mxu0 %v489
  %v1077 = vpop.f32.mrf.mxu0
  %v1078 = vadd.f32 %v945, %v1077
  %v1079 = vpop.f32.mrf.mxu0
  %1080 = vdwg.mxu0
  %v1081 = vadd.f32 %v958, %v960
  %v1082 = vadd.f32 %v1081, %v963
  %v1083 = vadd.f32 %v1082, %v965
  %v1084 = vadd.f32 %v1083, %v968
  %v1085 = vadd.f32 %v1084, %v970
  %v1086 = vadd.f32 %v1085, %v973
  %v1087 = vadd.f32 %v1086, %v975
  %v1088 = vadd.f32 %v1087, %v978
  %v1089 = vadd.f32 %v1088, %v980
  %v1090 = vadd.f32 %v1089, %v983
  %v1091 = vadd.f32 %v1090, %v985
  %v1092 = vadd.f32 %v1091, %v988
  %v1093 = vadd.f32 %v1092, %v990
  %v1094 = vadd.f32 %v1093, %v993
  %v1095 = vadd.f32 %v1094, %v995
  %v1096 = vadd.f32 %v1095, %v998
  %v1097 = vadd.f32 %v1096, %v1000
  %v1098 = vadd.f32 %v1097, %v1003
  %v1099 = vadd.f32 %v1098, %v1005
  %v1100 = vadd.f32 %v1099, %v1008
  %v1101 = vadd.f32 %v1100, %v1010
  %v1102 = vadd.f32 %v1101, %v1013
  %v1103 = vadd.f32 %v1102, %v1015
  %v1104 = vadd.f32 %v1103, %v1018
  %v1105 = vadd.f32 %v1104, %v1020
  %v1106 = vadd.f32 %v1105, %v1023
  %v1107 = vadd.f32 %v1106, %v1025
  %v1108 = vadd.f32 %v1107, %v1028
  %v1109 = vadd.f32 %v1108, %v1030
  %v1110 = vadd.f32 %v1109, %v1033
  %v1111 = vadd.f32 %v1110, %v1035
  %v1112 = vadd.f32 %v1111, %v1038
  %v1113 = vadd.f32 %v1112, %v1040
  %v1114 = vadd.f32 %v1113, %v1043
  %v1115 = vadd.f32 %v1114, %v1045
  %v1116 = vadd.f32 %v1115, %v1048
  %v1117 = vadd.f32 %v1116, %v1050
  %v1118 = vadd.f32 %v1117, %v1053
  %v1119 = vadd.f32 %v1118, %v1055
  %v1120 = vadd.f32 %v1119, %v1058
  %v1121 = vadd.f32 %v1120, %v1060
  %v1122 = vadd.f32 %v1121, %v1063
  %v1123 = vadd.f32 %v1122, %v1065
  %v1124 = vadd.f32 %v1123, %v1068
  %v1125 = vadd.f32 %v1124, %v1070
  %v1126 = vadd.f32 %v1125, %v1073
  %v1127 = vadd.f32 %v1126, %v1075
  %v1128 = vadd.f32 %v1127, %v1078
  %v1129 = vrot.slane %v1128, 4
  %v1130 = vadd.f32 %v1128, %v1129
  %v1131 = vrot.slane %v1130, 2
  %v1132 = vadd.f32 %v1130, %v1131
  %v1133 = vrot.slane %v1132, 1
  %v1134 = vadd.f32 %v1132, %v1133
  %v1135 = vmul.f32 %v1134, 0.0025510204
  %v1136 = vmul.f32 %v958, %v958
  %v1137 = vmul.f32 %v960, %v960
  %v1138 = vmul.f32 %v963, %v963
  %v1139 = vmul.f32 %v965, %v965
  %v1140 = vmul.f32 %v968, %v968
  %v1141 = vmul.f32 %v970, %v970
  %v1142 = vmul.f32 %v973, %v973
  %v1143 = vmul.f32 %v975, %v975
  %v1144 = vmul.f32 %v978, %v978
  %v1145 = vmul.f32 %v980, %v980
  %v1146 = vmul.f32 %v983, %v983
  %v1147 = vmul.f32 %v985, %v985
  %v1148 = vmul.f32 %v988, %v988
  %v1149 = vmul.f32 %v990, %v990
  %v1150 = vmul.f32 %v993, %v993
  %v1151 = vmul.f32 %v995, %v995
  %v1152 = vmul.f32 %v998, %v998
  %v1153 = vmul.f32 %v1000, %v1000
  %v1154 = vmul.f32 %v1003, %v1003
  %v1155 = vmul.f32 %v1005, %v1005
  %v1156 = vmul.f32 %v1008, %v1008
  %v1157 = vmul.f32 %v1010, %v1010
  %v1158 = vmul.f32 %v1013, %v1013
  %v1159 = vmul.f32 %v1015, %v1015
  %v1160 = vmul.f32 %v1018, %v1018
  %v1161 = vmul.f32 %v1020, %v1020
  %v1162 = vmul.f32 %v1023, %v1023
  %v1163 = vmul.f32 %v1025, %v1025
  %v1164 = vmul.f32 %v1028, %v1028
  %v1165 = vmul.f32 %v1030, %v1030
  %v1166 = vmul.f32 %v1033, %v1033
  %v1167 = vmul.f32 %v1035, %v1035
  %v1168 = vmul.f32 %v1038, %v1038
  %v1169 = vmul.f32 %v1040, %v1040
  %v1170 = vmul.f32 %v1043, %v1043
  %v1171 = vmul.f32 %v1045, %v1045
  %v1172 = vmul.f32 %v1048, %v1048
  %v1173 = vmul.f32 %v1050, %v1050
  %v1174 = vmul.f32 %v1053, %v1053
  %v1175 = vmul.f32 %v1055, %v1055
  %v1176 = vmul.f32 %v1058, %v1058
  %v1177 = vmul.f32 %v1060, %v1060
  %v1178 = vmul.f32 %v1063, %v1063
  %v1179 = vmul.f32 %v1065, %v1065
  %v1180 = vmul.f32 %v1068, %v1068
  %v1181 = vmul.f32 %v1070, %v1070
  %v1182 = vmul.f32 %v1073, %v1073
  %v1183 = vmul.f32 %v1075, %v1075
  %v1184 = vmul.f32 %v1078, %v1078
  %v1185 = vadd.f32 %v1136, %v1137
  %v1186 = vadd.f32 %v1185, %v1138
  %v1187 = vadd.f32 %v1186, %v1139
  %v1188 = vadd.f32 %v1187, %v1140
  %v1189 = vadd.f32 %v1188, %v1141
  %v1190 = vadd.f32 %v1189, %v1142
  %v1191 = vadd.f32 %v1190, %v1143
  %v1192 = vadd.f32 %v1191, %v1144
  %v1193 = vadd.f32 %v1192, %v1145
  %v1194 = vadd.f32 %v1193, %v1146
  %v1195 = vadd.f32 %v1194, %v1147
  %v1196 = vadd.f32 %v1195, %v1148
  %v1197 = vadd.f32 %v1196, %v1149
  %v1198 = vadd.f32 %v1197, %v1150
  %v1199 = vadd.f32 %v1198, %v1151
  %v1200 = vadd.f32 %v1199, %v1152
  %v1201 = vadd.f32 %v1200, %v1153
  %v1202 = vadd.f32 %v1201, %v1154
  %v1203 = vadd.f32 %v1202, %v1155
  %v1204 = vadd.f32 %v1203, %v1156
  %v1205 = vadd.f32 %v1204, %v1157
  %v1206 = vadd.f32 %v1205, %v1158
  %v1207 = vadd.f32 %v1206, %v1159
  %v1208 = vadd.f32 %v1207, %v1160
  %v1209 = vadd.f32 %v1208, %v1161
  %v1210 = vadd.f32 %v1209, %v1162
  %v1211 = vadd.f32 %v1210, %v1163
  %v1212 = vadd.f32 %v1211, %v1164
  %v1213 = vadd.f32 %v1212, %v1165
  %v1214 = vadd.f32 %v1213, %v1166
  %v1215 = vadd.f32 %v1214, %v1167
  %v1216 = vadd.f32 %v1215, %v1168
  %v1217 = vadd.f32 %v1216, %v1169
  %v1218 = vadd.f32 %v1217, %v1170
  %v1219 = vadd.f32 %v1218, %v1171
  %v1220 = vadd.f32 %v1219, %v1172
  %v1221 = vadd.f32 %v1220, %v1173
  %v1222 = vadd.f32 %v1221, %v1174
  %v1223 = vadd.f32 %v1222, %v1175
  %v1224 = vadd.f32 %v1223, %v1176
  %v1225 = vadd.f32 %v1224, %v1177
  %v1226 = vadd.f32 %v1225, %v1178
  %v1227 = vadd.f32 %v1226, %v1179
  %v1228 = vadd.f32 %v1227, %v1180
  %v1229 = vadd.f32 %v1228, %v1181
  %v1230 = vadd.f32 %v1229, %v1182
  %v1231 = vadd.f32 %v1230, %v1183
  %v1232 = vadd.f32 %v1231, %v1184
  %v1233 = vrot.slane %v1232, 4
  %v1234 = vadd.f32 %v1232, %v1233
  %v1235 = vrot.slane %v1234, 2
  %v1236 = vadd.f32 %v1234, %v1235
  %v1237 = vrot.slane %v1236, 1
  %v1238 = vadd.f32 %v1236, %v1237
  %v1239 = vmul.f32 %v1238, 0.0025510204
  %v1240 = vmul.f32 %v1135, %v1135
  %v1241 = vsub.f32 %v1239, %v1240
  %v1242 = vld [vmem:[%s2] sm:$0x1]
  %v1243 = vadd.f32 %v1241, 1e-05
  %v1244 = vrsqrt.pop %v1243
  %v1245 = vmul.f32 %v1244, %v1243
  %v1246 = vmul.f32 %v1245, %v1244
  %v1247 = vmul.f32 0.5, %v1246
  %v1248 = vsub.f32 1.5, %v1247
  %v1249 = vmul.f32 %v1244, %v1248
  %vm1250 = vweird.f32 %v1243
  %vm1251 = vweird.f32 %v1244
  %vm1252 = vmor %vm1250, %vm1251
  %v1253 = vsel %vm1252, %v1244, %v1249
  %v1254 = vmul.f32 %v1242, %v1253
  %v1255 = vld [vmem:[%s3] sm:$0x1]
  %v1256 = vmul.f32 %v1135, %v1254
  %v1257 = vsub.f32 %v1255, %v1256
  %v1259 = vperm.slane %v1254, 0
  %v1261 = vmul.f32 %v958, %v1259
  %v1262 = vmul.f32 %v960, %v1259
  %v1263 = vmul.f32 %v963, %v1259
  %v1264 = vmul.f32 %v965, %v1259
  %v1265 = vmul.f32 %v968, %v1259
  %v1266 = vmul.f32 %v970, %v1259
  %v1267 = vmul.f32 %v973, %v1259
  %v1268 = vmul.f32 %v975, %v1259
  %v1269 = vmul.f32 %v978, %v1259
  %v1270 = vmul.f32 %v980, %v1259
  %v1271 = vmul.f32 %v983, %v1259
  %v1272 = vmul.f32 %v985, %v1259
  %v1273 = vmul.f32 %v988, %v1259
  %v1274 = vmul.f32 %v990, %v1259
  %v1275 = vmul.f32 %v993, %v1259
  %v1276 = vmul.f32 %v995, %v1259
  %v1277 = vmul.f32 %v998, %v1259
  %v1278 = vmul.f32 %v1000, %v1259
  %v1279 = vmul.f32 %v1003, %v1259
  %v1280 = vmul.f32 %v1005, %v1259
  %v1281 = vmul.f32 %v1008, %v1259
  %v1282 = vmul.f32 %v1010, %v1259
  %v1283 = vmul.f32 %v1013, %v1259
  %v1284 = vmul.f32 %v1015, %v1259
  %v1285 = vmul.f32 %v1018, %v1259
  %v1286 = vmul.f32 %v1020, %v1259
  %v1287 = vmul.f32 %v1023, %v1259
  %v1288 = vmul.f32 %v1025, %v1259
  %v1289 = vmul.f32 %v1028, %v1259
  %v1290 = vmul.f32 %v1030, %v1259
  %v1291 = vmul.f32 %v1033, %v1259
  %v1292 = vmul.f32 %v1035, %v1259
  %v1293 = vmul.f32 %v1038, %v1259
  %v1294 = vmul.f32 %v1040, %v1259
  %v1295 = vmul.f32 %v1043, %v1259
  %v1296 = vmul.f32 %v1045, %v1259
  %v1297 = vmul.f32 %v1048, %v1259
  %v1298 = vmul.f32 %v1050, %v1259
  %v1299 = vmul.f32 %v1053, %v1259
  %v1300 = vmul.f32 %v1055, %v1259
  %v1301 = vmul.f32 %v1058, %v1259
  %v1302 = vmul.f32 %v1060, %v1259
  %v1303 = vmul.f32 %v1063, %v1259
  %v1304 = vmul.f32 %v1065, %v1259
  %v1305 = vmul.f32 %v1068, %v1259
  %v1306 = vmul.f32 %v1070, %v1259
  %v1307 = vmul.f32 %v1073, %v1259
  %v1308 = vmul.f32 %v1075, %v1259
  %v1309 = vmul.f32 %v1078, %v1259
  %v1311 = vperm.slane %v1257, 0
  %v1313 = vadd.f32 %v1261, %v1311
  %v1314 = vadd.f32 %v1262, %v1311
  %v1315 = vadd.f32 %v1263, %v1311
  %v1316 = vadd.f32 %v1264, %v1311
  %v1317 = vadd.f32 %v1265, %v1311
  %v1318 = vadd.f32 %v1266, %v1311
  %v1319 = vadd.f32 %v1267, %v1311
  %v1320 = vadd.f32 %v1268, %v1311
  %v1321 = vadd.f32 %v1269, %v1311
  %v1322 = vadd.f32 %v1270, %v1311
  %v1323 = vadd.f32 %v1271, %v1311
  %v1324 = vadd.f32 %v1272, %v1311
  %v1325 = vadd.f32 %v1273, %v1311
  %v1326 = vadd.f32 %v1274, %v1311
  %v1327 = vadd.f32 %v1275, %v1311
  %v1328 = vadd.f32 %v1276, %v1311
  %v1329 = vadd.f32 %v1277, %v1311
  %v1330 = vadd.f32 %v1278, %v1311
  %v1331 = vadd.f32 %v1279, %v1311
  %v1332 = vadd.f32 %v1280, %v1311
  %v1333 = vadd.f32 %v1281, %v1311
  %v1334 = vadd.f32 %v1282, %v1311
  %v1335 = vadd.f32 %v1283, %v1311
  %v1336 = vadd.f32 %v1284, %v1311
  %v1337 = vadd.f32 %v1285, %v1311
  %v1338 = vadd.f32 %v1286, %v1311
  %v1339 = vadd.f32 %v1287, %v1311
  %v1340 = vadd.f32 %v1288, %v1311
  %v1341 = vadd.f32 %v1289, %v1311
  %v1342 = vadd.f32 %v1290, %v1311
  %v1343 = vadd.f32 %v1291, %v1311
  %v1344 = vadd.f32 %v1292, %v1311
  %v1345 = vadd.f32 %v1293, %v1311
  %v1346 = vadd.f32 %v1294, %v1311
  %v1347 = vadd.f32 %v1295, %v1311
  %v1348 = vadd.f32 %v1296, %v1311
  %v1349 = vadd.f32 %v1297, %v1311
  %v1350 = vadd.f32 %v1298, %v1311
  %v1351 = vadd.f32 %v1299, %v1311
  %v1352 = vadd.f32 %v1300, %v1311
  %v1353 = vadd.f32 %v1301, %v1311
  %v1354 = vadd.f32 %v1302, %v1311
  %v1355 = vadd.f32 %v1303, %v1311
  %v1356 = vadd.f32 %v1304, %v1311
  %v1357 = vadd.f32 %v1305, %v1311
  %v1358 = vadd.f32 %v1306, %v1311
  %v1359 = vadd.f32 %v1307, %v1311
  %v1360 = vadd.f32 %v1308, %v1311
  %v1361 = vadd.f32 %v1309, %v1311
  %v1362 = vmax.f32 %v1313, 0.0
  %v1363 = vmax.f32 %v1314, 0.0
  %v1364 = vmax.f32 %v1315, 0.0
  %v1365 = vmax.f32 %v1316, 0.0
  %v1366 = vmax.f32 %v1317, 0.0
  %v1367 = vmax.f32 %v1318, 0.0
  %v1368 = vmax.f32 %v1319, 0.0
  %v1369 = vmax.f32 %v1320, 0.0
  %v1370 = vmax.f32 %v1321, 0.0
  %v1371 = vmax.f32 %v1322, 0.0
  %v1372 = vmax.f32 %v1323, 0.0
  %v1373 = vmax.f32 %v1324, 0.0
  %v1374 = vmax.f32 %v1325, 0.0
  %v1375 = vmax.f32 %v1326, 0.0
  %v1376 = vmax.f32 %v1327, 0.0
  %v1377 = vmax.f32 %v1328, 0.0
  %v1378 = vmax.f32 %v1329, 0.0
  %v1379 = vmax.f32 %v1330, 0.0
  %v1380 = vmax.f32 %v1331, 0.0
  %v1381 = vmax.f32 %v1332, 0.0
  %v1382 = vmax.f32 %v1333, 0.0
  %v1383 = vmax.f32 %v1334, 0.0
  %v1384 = vmax.f32 %v1335, 0.0
  %v1385 = vmax.f32 %v1336, 0.0
  %v1386 = vmax.f32 %v1337, 0.0
  %v1387 = vmax.f32 %v1338, 0.0
  %v1388 = vmax.f32 %v1339, 0.0
  %v1389 = vmax.f32 %v1340, 0.0
  %v1390 = vmax.f32 %v1341, 0.0
  %v1391 = vmax.f32 %v1342, 0.0
  %v1392 = vmax.f32 %v1343, 0.0
  %v1393 = vmax.f32 %v1344, 0.0
  %v1394 = vmax.f32 %v1345, 0.0
  %v1395 = vmax.f32 %v1346, 0.0
  %v1396 = vmax.f32 %v1347, 0.0
  %v1397 = vmax.f32 %v1348, 0.0
  %v1398 = vmax.f32 %v1349, 0.0
  %v1399 = vmax.f32 %v1350, 0.0
  %v1400 = vmax.f32 %v1351, 0.0
  %v1401 = vmax.f32 %v1352, 0.0
  %v1402 = vmax.f32 %v1353, 0.0
  %v1403 = vmax.f32 %v1354, 0.0
  %v1404 = vmax.f32 %v1355, 0.0
  %v1405 = vmax.f32 %v1356, 0.0
  %v1406 = vmax.f32 %v1357, 0.0
  %v1407 = vmax.f32 %v1358, 0.0
  %v1408 = vmax.f32 %v1359, 0.0
  %v1409 = vmax.f32 %v1360, 0.0
  %v1410 = vmax.f32 %v1361, 0.0
  %v1411 = vpack.c.bf16 %v1363, %v1362
  %v1412 = vpack.c.bf16 %v1365, %v1364
  %v1413 = vpack.c.bf16 %v1367, %v1366
  %v1414 = vpack.c.bf16 %v1369, %v1368
  %v1415 = vpack.c.bf16 %v1371, %v1370
  %v1416 = vpack.c.bf16 %v1373, %v1372
  %v1417 = vpack.c.bf16 %v1375, %v1374
  %v1418 = vpack.c.bf16 %v1377, %v1376
  %v1419 = vpack.c.bf16 %v1379, %v1378
  %v1420 = vpack.c.bf16 %v1381, %v1380
  %v1421 = vpack.c.bf16 %v1383, %v1382
  %v1422 = vpack.c.bf16 %v1385, %v1384
  %v1423 = vpack.c.bf16 %v1387, %v1386
  %v1424 = vpack.c.bf16 %v1389, %v1388
  %v1425 = vpack.c.bf16 %v1391, %v1390
  %v1426 = vpack.c.bf16 %v1393, %v1392
  %v1427 = vpack.c.bf16 %v1395, %v1394
  %v1428 = vpack.c.bf16 %v1397, %v1396
  %v1429 = vpack.c.bf16 %v1399, %v1398
  %v1430 = vpack.c.bf16 %v1401, %v1400
  %v1431 = vpack.c.bf16 %v1403, %v1402
  %v1432 = vpack.c.bf16 %v1405, %v1404
  %v1433 = vpack.c.bf16 %v1407, %v1406
  %v1434 = vpack.c.bf16 %v1409, %v1408
  %v1435 = vpack.c.bf16 %v1410, %v1410
  %v1436 = vld [vmem:[%s4] sm:$0xff]
  %v1437 = vld [vmem:[%s4 + $0x8] sm:$0xf]
  %v1438 = vld [vmem:[%s4 + $0xc] sm:$0xff]
  %v1439 = vld [vmem:[%s4 + $0x14] sm:$0xf]
  %v1440 = vld [vmem:[%s4 + $0x18] sm:$0xff]
  %v1441 = vld [vmem:[%s4 + $0x20] sm:$0xf]
  %v1442 = vld [vmem:[%s4 + $0x24] sm:$0xff]
  %v1443 = vld [vmem:[%s4 + $0x2c] sm:$0xf]
  %v1444 = vld [vmem:[%s4 + $0x30] sm:$0xff]
  %v1445 = vld [vmem:[%s4 + $0x38] sm:$0xf]
  %v1446 = vld [vmem:[%s4 + $0x3c] sm:$0xff]
  %v1447 = vld [vmem:[%s4 + $0x44] sm:$0xf]
  %v1448 = vld [vmem:[%s4 + $0x48] sm:$0xff]
  %v1449 = vld [vmem:[%s4 + $0x50] sm:$0xf]
  %v1450 = vld [vmem:[%s4 + $0x54] sm:$0xff]
  %v1451 = vld [vmem:[%s4 + $0x5c] sm:$0xf]
  %v1452 = vld [vmem:[%s4 + $0x60] sm:$0xff]
  %v1453 = vld [vmem:[%s4 + $0x68] sm:$0xf]
  %v1454 = vld [vmem:[%s4 + $0x6c] sm:$0xff]
  %v1455 = vld [vmem:[%s4 + $0x74] sm:$0xf]
  %v1456 = vld [vmem:[%s4 + $0x78] sm:$0xff]
  %v1457 = vld [vmem:[%s4 + $0x80] sm:$0xf]
  %v1458 = vld [vmem:[%s4 + $0x84] sm:$0xff]
  %v1459 = vld [vmem:[%s4 + $0x8c] sm:$0xf]
  %v1460 = vld [vmem:[%s4 + $0x90] sm:$0xff]
  %v1461 = vld [vmem:[%s4 + $0x98] sm:$0xf]
  %v1462 = vld [vmem:[%s4 + $0x9c] sm:$0xff]
  %v1463 = vld [vmem:[%s4 + $0xa4] sm:$0xf]
  %v1464 = vld [vmem:[%s4 + $0xa8] sm:$0xff]
  %v1465 = vld [vmem:[%s4 + $0xb0] sm:$0xf]
  %v1466 = vld [vmem:[%s4 + $0xb4] sm:$0xff]
  %v1467 = vld [vmem:[%s4 + $0xbc] sm:$0xf]
  %v1500 = vunpack.c.l.b16 %v1436
  %v1501 = vunpack.c.h.b16 %v1436
  %v1502 = vunpack.c.l.b16 %v1437
  %v1503 = vunpack.c.l.b16 %v1438
  %v1504 = vunpack.c.h.b16 %v1438
  %v1505 = vunpack.c.l.b16 %v1439
  %v1506 = vunpack.c.l.b16 %v1440
  %v1507 = vunpack.c.h.b16 %v1440
  %v1508 = vunpack.c.l.b16 %v1441
  %v1509 = vunpack.c.l.b16 %v1442
  %v1510 = vunpack.c.h.b16 %v1442
  %v1511 = vunpack.c.l.b16 %v1443
  %v1512 = vunpack.c.l.b16 %v1444
  %v1513 = vunpack.c.h.b16 %v1444
  %v1514 = vunpack.c.l.b16 %v1445
  %v1515 = vunpack.c.l.b16 %v1446
  %v1516 = vunpack.c.h.b16 %v1446
  %v1517 = vunpack.c.l.b16 %v1447
  %v1518 = vunpack.c.l.b16 %v1448
  %v1519 = vunpack.c.h.b16 %v1448
  %v1520 = vunpack.c.l.b16 %v1449
  %v1521 = vunpack.c.l.b16 %v1450
  %v1522 = vunpack.c.h.b16 %v1450
  %v1523 = vunpack.c.l.b16 %v1451
  %v1524 = vunpack.c.l.b16 %v1452
  %v1525 = vunpack.c.h.b16 %v1452
  %v1526 = vunpack.c.l.b16 %v1453
  %v1527 = vunpack.c.l.b16 %v1454
  %v1528 = vunpack.c.h.b16 %v1454
  %v1529 = vunpack.c.l.b16 %v1455
  %v1530 = vunpack.c.l.b16 %v1456
  %v1531 = vunpack.c.h.b16 %v1456
  %v1532 = vunpack.c.l.b16 %v1457
  %v1533 = vunpack.c.l.b16 %v1458
  %v1534 = vunpack.c.h.b16 %v1458
  %v1535 = vunpack.c.l.b16 %v1459
  %v1536 = vunpack.c.l.b16 %v1460
  %v1537 = vunpack.c.h.b16 %v1460
  %v1538 = vunpack.c.l.b16 %v1461
  %v1539 = vunpack.c.l.b16 %v1462
  %v1540 = vunpack.c.h.b16 %v1462
  %v1541 = vunpack.c.l.b16 %v1463
  %v1542 = vunpack.c.l.b16 %v1464
  %v1543 = vunpack.c.h.b16 %v1464
  %v1544 = vunpack.c.l.b16 %v1465
  %v1545 = vunpack.c.l.b16 %v1466
  %v1546 = vunpack.c.h.b16 %v1466
  %v1547 = vunpack.c.l.b16 %v1467
  %v1548 = vpack.c.b16 %v1503, %v1500
  %v1549 = vpack.c.b16 %v1504, %v1501
  %v1550 = vpack.c.b16 %v1505, %v1502
  %v1551 = vpack.c.b16 %v1509, %v1506
  %v1552 = vpack.c.b16 %v1510, %v1507
  %v1553 = vpack.c.b16 %v1511, %v1508
  %v1554 = vpack.c.b16 %v1515, %v1512
  %v1555 = vpack.c.b16 %v1516, %v1513
  %v1556 = vpack.c.b16 %v1517, %v1514
  %v1557 = vpack.c.b16 %v1521, %v1518
  %v1558 = vpack.c.b16 %v1522, %v1519
  %v1559 = vpack.c.b16 %v1523, %v1520
  %v1560 = vpack.c.b16 %v1527, %v1524
  %v1561 = vpack.c.b16 %v1528, %v1525
  %v1562 = vpack.c.b16 %v1529, %v1526
  %v1563 = vpack.c.b16 %v1533, %v1530
  %v1564 = vpack.c.b16 %v1534, %v1531
  %v1565 = vpack.c.b16 %v1535, %v1532
  %v1566 = vpack.c.b16 %v1539, %v1536
  %v1567 = vpack.c.b16 %v1540, %v1537
  %v1568 = vpack.c.b16 %v1541, %v1538
  %v1569 = vpack.c.b16 %v1545, %v1542
  %v1570 = vpack.c.b16 %v1546, %v1543
  %v1571 = vpack.c.b16 %v1547, %v1544
  %1596 = vmatpush.bf16.msra.mxu0 %v1569
  %1597 = vmatpush.bf16.msra.mxu0 %v1566
  %1598 = vmatpush.bf16.msra.mxu0 %v1563
  %1599 = vmatpush.bf16.msra.mxu0 %v1560
  %1600 = vmatpush.bf16.msra.mxu0 %v1557
  %1601 = vmatpush.bf16.msra.mxu0 %v1554
  %1602 = vmatpush.bf16.msra.mxu0 %v1551
  %1603 = vmatpush.bf16.msra.mxu0 %v1548
  %1604 = vmatmul.bf16.gmra.mxu0 %v1411
  %v1605 = vpop.f32.mrf.mxu0
  %v1606 = vadd.f32 0.0, %v1605
  %v1607 = vpop.f32.mrf.mxu0
  %v1608 = vadd.f32 0.0, %v1607
  %1609 = vmatmul.bf16.gmra.mxu0 %v1412
  %v1610 = vpop.f32.mrf.mxu0
  %v1611 = vadd.f32 0.0, %v1610
  %v1612 = vpop.f32.mrf.mxu0
  %v1613 = vadd.f32 0.0, %v1612
  %1614 = vmatmul.bf16.gmra.mxu0 %v1413
  %v1615 = vpop.f32.mrf.mxu0
  %v1616 = vadd.f32 0.0, %v1615
  %v1617 = vpop.f32.mrf.mxu0
  %v1618 = vadd.f32 0.0, %v1617
  %1619 = vmatmul.bf16.gmra.mxu0 %v1414
  %v1620 = vpop.f32.mrf.mxu0
  %v1621 = vadd.f32 0.0, %v1620
  %v1622 = vpop.f32.mrf.mxu0
  %v1623 = vadd.f32 0.0, %v1622
  %1624 = vmatmul.bf16.gmra.mxu0 %v1415
  %v1625 = vpop.f32.mrf.mxu0
  %v1626 = vadd.f32 0.0, %v1625
  %v1627 = vpop.f32.mrf.mxu0
  %v1628 = vadd.f32 0.0, %v1627
  %1629 = vmatmul.bf16.gmra.mxu0 %v1416
  %v1630 = vpop.f32.mrf.mxu0
  %v1631 = vadd.f32 0.0, %v1630
  %v1632 = vpop.f32.mrf.mxu0
  %v1633 = vadd.f32 0.0, %v1632
  %1634 = vmatmul.bf16.gmra.mxu0 %v1417
  %v1635 = vpop.f32.mrf.mxu0
  %v1636 = vadd.f32 0.0, %v1635
  %v1637 = vpop.f32.mrf.mxu0
  %v1638 = vadd.f32 0.0, %v1637
  %1639 = vmatmul.bf16.gmra.mxu0 %v1418
  %v1640 = vpop.f32.mrf.mxu0
  %v1641 = vadd.f32 0.0, %v1640
  %v1642 = vpop.f32.mrf.mxu0
  %v1643 = vadd.f32 0.0, %v1642
  %1644 = vmatmul.bf16.gmra.mxu0 %v1419
  %v1645 = vpop.f32.mrf.mxu0
  %v1646 = vadd.f32 0.0, %v1645
  %v1647 = vpop.f32.mrf.mxu0
  %v1648 = vadd.f32 0.0, %v1647
  %1649 = vmatmul.bf16.gmra.mxu0 %v1420
  %v1650 = vpop.f32.mrf.mxu0
  %v1651 = vadd.f32 0.0, %v1650
  %v1652 = vpop.f32.mrf.mxu0
  %v1653 = vadd.f32 0.0, %v1652
  %1654 = vmatmul.bf16.gmra.mxu0 %v1421
  %v1655 = vpop.f32.mrf.mxu0
  %v1656 = vadd.f32 0.0, %v1655
  %v1657 = vpop.f32.mrf.mxu0
  %v1658 = vadd.f32 0.0, %v1657
  %1659 = vmatmul.bf16.gmra.mxu0 %v1422
  %v1660 = vpop.f32.mrf.mxu0
  %v1661 = vadd.f32 0.0, %v1660
  %v1662 = vpop.f32.mrf.mxu0
  %v1663 = vadd.f32 0.0, %v1662
  %1664 = vmatmul.bf16.gmra.mxu0 %v1423
  %v1665 = vpop.f32.mrf.mxu0
  %v1666 = vadd.f32 0.0, %v1665
  %v1667 = vpop.f32.mrf.mxu0
  %v1668 = vadd.f32 0.0, %v1667
  %1669 = vmatmul.bf16.gmra.mxu0 %v1424
  %v1670 = vpop.f32.mrf.mxu0
  %v1671 = vadd.f32 0.0, %v1670
  %v1672 = vpop.f32.mrf.mxu0
  %v1673 = vadd.f32 0.0, %v1672
  %1674 = vmatmul.bf16.gmra.mxu0 %v1425
  %v1675 = vpop.f32.mrf.mxu0
  %v1676 = vadd.f32 0.0, %v1675
  %v1677 = vpop.f32.mrf.mxu0
  %v1678 = vadd.f32 0.0, %v1677
  %1679 = vmatmul.bf16.gmra.mxu0 %v1426
  %v1680 = vpop.f32.mrf.mxu0
  %v1681 = vadd.f32 0.0, %v1680
  %v1682 = vpop.f32.mrf.mxu0
  %v1683 = vadd.f32 0.0, %v1682
  %1684 = vmatmul.bf16.gmra.mxu0 %v1427
  %v1685 = vpop.f32.mrf.mxu0
  %v1686 = vadd.f32 0.0, %v1685
  %v1687 = vpop.f32.mrf.mxu0
  %v1688 = vadd.f32 0.0, %v1687
  %1689 = vmatmul.bf16.gmra.mxu0 %v1428
  %v1690 = vpop.f32.mrf.mxu0
  %v1691 = vadd.f32 0.0, %v1690
  %v1692 = vpop.f32.mrf.mxu0
  %v1693 = vadd.f32 0.0, %v1692
  %1694 = vmatmul.bf16.gmra.mxu0 %v1429
  %v1695 = vpop.f32.mrf.mxu0
  %v1696 = vadd.f32 0.0, %v1695
  %v1697 = vpop.f32.mrf.mxu0
  %v1698 = vadd.f32 0.0, %v1697
  %1699 = vmatmul.bf16.gmra.mxu0 %v1430
  %v1700 = vpop.f32.mrf.mxu0
  %v1701 = vadd.f32 0.0, %v1700
  %v1702 = vpop.f32.mrf.mxu0
  %v1703 = vadd.f32 0.0, %v1702
  %1704 = vmatmul.bf16.gmra.mxu0 %v1431
  %v1705 = vpop.f32.mrf.mxu0
  %v1706 = vadd.f32 0.0, %v1705
  %v1707 = vpop.f32.mrf.mxu0
  %v1708 = vadd.f32 0.0, %v1707
  %1709 = vmatmul.bf16.gmra.mxu0 %v1432
  %v1710 = vpop.f32.mrf.mxu0
  %v1711 = vadd.f32 0.0, %v1710
  %v1712 = vpop.f32.mrf.mxu0
  %v1713 = vadd.f32 0.0, %v1712
  %1714 = vmatmul.bf16.gmra.mxu0 %v1433
  %v1715 = vpop.f32.mrf.mxu0
  %v1716 = vadd.f32 0.0, %v1715
  %v1717 = vpop.f32.mrf.mxu0
  %v1718 = vadd.f32 0.0, %v1717
  %1719 = vmatmul.bf16.gmra.mxu0 %v1434
  %v1720 = vpop.f32.mrf.mxu0
  %v1721 = vadd.f32 0.0, %v1720
  %v1722 = vpop.f32.mrf.mxu0
  %v1723 = vadd.f32 0.0, %v1722
  %1724 = vmatmul.bf16.gmra.mxu0 %v1435
  %v1725 = vpop.f32.mrf.mxu0
  %v1726 = vadd.f32 0.0, %v1725
  %v1727 = vpop.f32.mrf.mxu0
  %1728 = vdwg.mxu0
  %1729 = vmatpush.bf16.msra.mxu0 %v1570
  %1730 = vmatpush.bf16.msra.mxu0 %v1567
  %1731 = vmatpush.bf16.msra.mxu0 %v1564
  %1732 = vmatpush.bf16.msra.mxu0 %v1561
  %1733 = vmatpush.bf16.msra.mxu0 %v1558
  %1734 = vmatpush.bf16.msra.mxu0 %v1555
  %1735 = vmatpush.bf16.msra.mxu0 %v1552
  %1736 = vmatpush.bf16.msra.mxu0 %v1549
  %1737 = vmatmul.bf16.gmra.mxu0 %v1411
  %v1738 = vpop.f32.mrf.mxu0
  %v1739 = vadd.f32 0.0, %v1738
  %v1740 = vpop.f32.mrf.mxu0
  %v1741 = vadd.f32 0.0, %v1740
  %1742 = vmatmul.bf16.gmra.mxu0 %v1412
  %v1743 = vpop.f32.mrf.mxu0
  %v1744 = vadd.f32 0.0, %v1743
  %v1745 = vpop.f32.mrf.mxu0
  %v1746 = vadd.f32 0.0, %v1745
  %1747 = vmatmul.bf16.gmra.mxu0 %v1413
  %v1748 = vpop.f32.mrf.mxu0
  %v1749 = vadd.f32 0.0, %v1748
  %v1750 = vpop.f32.mrf.mxu0
  %v1751 = vadd.f32 0.0, %v1750
  %1752 = vmatmul.bf16.gmra.mxu0 %v1414
  %v1753 = vpop.f32.mrf.mxu0
  %v1754 = vadd.f32 0.0, %v1753
  %v1755 = vpop.f32.mrf.mxu0
  %v1756 = vadd.f32 0.0, %v1755
  %1757 = vmatmul.bf16.gmra.mxu0 %v1415
  %v1758 = vpop.f32.mrf.mxu0
  %v1759 = vadd.f32 0.0, %v1758
  %v1760 = vpop.f32.mrf.mxu0
  %v1761 = vadd.f32 0.0, %v1760
  %1762 = vmatmul.bf16.gmra.mxu0 %v1416
  %v1763 = vpop.f32.mrf.mxu0
  %v1764 = vadd.f32 0.0, %v1763
  %v1765 = vpop.f32.mrf.mxu0
  %v1766 = vadd.f32 0.0, %v1765
  %1767 = vmatmul.bf16.gmra.mxu0 %v1417
  %v1768 = vpop.f32.mrf.mxu0
  %v1769 = vadd.f32 0.0, %v1768
  %v1770 = vpop.f32.mrf.mxu0
  %v1771 = vadd.f32 0.0, %v1770
  %1772 = vmatmul.bf16.gmra.mxu0 %v1418
  %v1773 = vpop.f32.mrf.mxu0
  %v1774 = vadd.f32 0.0, %v1773
  %v1775 = vpop.f32.mrf.mxu0
  %v1776 = vadd.f32 0.0, %v1775
  %1777 = vmatmul.bf16.gmra.mxu0 %v1419
  %v1778 = vpop.f32.mrf.mxu0
  %v1779 = vadd.f32 0.0, %v1778
  %v1780 = vpop.f32.mrf.mxu0
  %v1781 = vadd.f32 0.0, %v1780
  %1782 = vmatmul.bf16.gmra.mxu0 %v1420
  %v1783 = vpop.f32.mrf.mxu0
  %v1784 = vadd.f32 0.0, %v1783
  %v1785 = vpop.f32.mrf.mxu0
  %v1786 = vadd.f32 0.0, %v1785
  %1787 = vmatmul.bf16.gmra.mxu0 %v1421
  %v1788 = vpop.f32.mrf.mxu0
  %v1789 = vadd.f32 0.0, %v1788
  %v1790 = vpop.f32.mrf.mxu0
  %v1791 = vadd.f32 0.0, %v1790
  %1792 = vmatmul.bf16.gmra.mxu0 %v1422
  %v1793 = vpop.f32.mrf.mxu0
  %v1794 = vadd.f32 0.0, %v1793
  %v1795 = vpop.f32.mrf.mxu0
  %v1796 = vadd.f32 0.0, %v1795
  %1797 = vmatmul.bf16.gmra.mxu0 %v1423
  %v1798 = vpop.f32.mrf.mxu0
  %v1799 = vadd.f32 0.0, %v1798
  %v1800 = vpop.f32.mrf.mxu0
  %v1801 = vadd.f32 0.0, %v1800
  %1802 = vmatmul.bf16.gmra.mxu0 %v1424
  %v1803 = vpop.f32.mrf.mxu0
  %v1804 = vadd.f32 0.0, %v1803
  %v1805 = vpop.f32.mrf.mxu0
  %v1806 = vadd.f32 0.0, %v1805
  %1807 = vmatmul.bf16.gmra.mxu0 %v1425
  %v1808 = vpop.f32.mrf.mxu0
  %v1809 = vadd.f32 0.0, %v1808
  %v1810 = vpop.f32.mrf.mxu0
  %v1811 = vadd.f32 0.0, %v1810
  %1812 = vmatmul.bf16.gmra.mxu0 %v1426
  %v1813 = vpop.f32.mrf.mxu0
  %v1814 = vadd.f32 0.0, %v1813
  %v1815 = vpop.f32.mrf.mxu0
  %v1816 = vadd.f32 0.0, %v1815
  %1817 = vmatmul.bf16.gmra.mxu0 %v1427
  %v1818 = vpop.f32.mrf.mxu0
  %v1819 = vadd.f32 0.0, %v1818
  %v1820 = vpop.f32.mrf.mxu0
  %v1821 = vadd.f32 0.0, %v1820
  %1822 = vmatmul.bf16.gmra.mxu0 %v1428
  %v1823 = vpop.f32.mrf.mxu0
  %v1824 = vadd.f32 0.0, %v1823
  %v1825 = vpop.f32.mrf.mxu0
  %v1826 = vadd.f32 0.0, %v1825
  %1827 = vmatmul.bf16.gmra.mxu0 %v1429
  %v1828 = vpop.f32.mrf.mxu0
  %v1829 = vadd.f32 0.0, %v1828
  %v1830 = vpop.f32.mrf.mxu0
  %v1831 = vadd.f32 0.0, %v1830
  %1832 = vmatmul.bf16.gmra.mxu0 %v1430
  %v1833 = vpop.f32.mrf.mxu0
  %v1834 = vadd.f32 0.0, %v1833
  %v1835 = vpop.f32.mrf.mxu0
  %v1836 = vadd.f32 0.0, %v1835
  %1837 = vmatmul.bf16.gmra.mxu0 %v1431
  %v1838 = vpop.f32.mrf.mxu0
  %v1839 = vadd.f32 0.0, %v1838
  %v1840 = vpop.f32.mrf.mxu0
  %v1841 = vadd.f32 0.0, %v1840
  %1842 = vmatmul.bf16.gmra.mxu0 %v1432
  %v1843 = vpop.f32.mrf.mxu0
  %v1844 = vadd.f32 0.0, %v1843
  %v1845 = vpop.f32.mrf.mxu0
  %v1846 = vadd.f32 0.0, %v1845
  %1847 = vmatmul.bf16.gmra.mxu0 %v1433
  %v1848 = vpop.f32.mrf.mxu0
  %v1849 = vadd.f32 0.0, %v1848
  %v1850 = vpop.f32.mrf.mxu0
  %v1851 = vadd.f32 0.0, %v1850
  %1852 = vmatmul.bf16.gmra.mxu0 %v1434
  %v1853 = vpop.f32.mrf.mxu0
  %v1854 = vadd.f32 0.0, %v1853
  %v1855 = vpop.f32.mrf.mxu0
  %v1856 = vadd.f32 0.0, %v1855
  %1857 = vmatmul.bf16.gmra.mxu0 %v1435
  %v1858 = vpop.f32.mrf.mxu0
  %v1859 = vadd.f32 0.0, %v1858
  %v1860 = vpop.f32.mrf.mxu0
  %1861 = vdwg.mxu0
  %1862 = vmatpush.bf16.msra.mxu0 %v1571
  %1863 = vmatpush.bf16.msra.mxu0 %v1568
  %1864 = vmatpush.bf16.msra.mxu0 %v1565
  %1865 = vmatpush.bf16.msra.mxu0 %v1562
  %1866 = vmatpush.bf16.msra.mxu0 %v1559
  %1867 = vmatpush.bf16.msra.mxu0 %v1556
  %1868 = vmatpush.bf16.msra.mxu0 %v1553
  %1869 = vmatpush.bf16.msra.mxu0 %v1550
  %1870 = vmatmul.bf16.gmra.mxu0 %v1411
  %v1871 = vpop.f32.mrf.mxu0
  %v1872 = vadd.f32 0.0, %v1871
  %v1873 = vpop.f32.mrf.mxu0
  %v1874 = vadd.f32 0.0, %v1873
  %1875 = vmatmul.bf16.gmra.mxu0 %v1412
  %v1876 = vpop.f32.mrf.mxu0
  %v1877 = vadd.f32 0.0, %v1876
  %v1878 = vpop.f32.mrf.mxu0
  %v1879 = vadd.f32 0.0, %v1878
  %1880 = vmatmul.bf16.gmra.mxu0 %v1413
  %v1881 = vpop.f32.mrf.mxu0
  %v1882 = vadd.f32 0.0, %v1881
  %v1883 = vpop.f32.mrf.mxu0
  %v1884 = vadd.f32 0.0, %v1883
  %1885 = vmatmul.bf16.gmra.mxu0 %v1414
  %v1886 = vpop.f32.mrf.mxu0
  %v1887 = vadd.f32 0.0, %v1886
  %v1888 = vpop.f32.mrf.mxu0
  %v1889 = vadd.f32 0.0, %v1888
  %1890 = vmatmul.bf16.gmra.mxu0 %v1415
  %v1891 = vpop.f32.mrf.mxu0
  %v1892 = vadd.f32 0.0, %v1891
  %v1893 = vpop.f32.mrf.mxu0
  %v1894 = vadd.f32 0.0, %v1893
  %1895 = vmatmul.bf16.gmra.mxu0 %v1416
  %v1896 = vpop.f32.mrf.mxu0
  %v1897 = vadd.f32 0.0, %v1896
  %v1898 = vpop.f32.mrf.mxu0
  %v1899 = vadd.f32 0.0, %v1898
  %1900 = vmatmul.bf16.gmra.mxu0 %v1417
  %v1901 = vpop.f32.mrf.mxu0
  %v1902 = vadd.f32 0.0, %v1901
  %v1903 = vpop.f32.mrf.mxu0
  %v1904 = vadd.f32 0.0, %v1903
  %1905 = vmatmul.bf16.gmra.mxu0 %v1418
  %v1906 = vpop.f32.mrf.mxu0
  %v1907 = vadd.f32 0.0, %v1906
  %v1908 = vpop.f32.mrf.mxu0
  %v1909 = vadd.f32 0.0, %v1908
  %1910 = vmatmul.bf16.gmra.mxu0 %v1419
  %v1911 = vpop.f32.mrf.mxu0
  %v1912 = vadd.f32 0.0, %v1911
  %v1913 = vpop.f32.mrf.mxu0
  %v1914 = vadd.f32 0.0, %v1913
  %1915 = vmatmul.bf16.gmra.mxu0 %v1420
  %v1916 = vpop.f32.mrf.mxu0
  %v1917 = vadd.f32 0.0, %v1916
  %v1918 = vpop.f32.mrf.mxu0
  %v1919 = vadd.f32 0.0, %v1918
  %1920 = vmatmul.bf16.gmra.mxu0 %v1421
  %v1921 = vpop.f32.mrf.mxu0
  %v1922 = vadd.f32 0.0, %v1921
  %v1923 = vpop.f32.mrf.mxu0
  %v1924 = vadd.f32 0.0, %v1923
  %1925 = vmatmul.bf16.gmra.mxu0 %v1422
  %v1926 = vpop.f32.mrf.mxu0
  %v1927 = vadd.f32 0.0, %v1926
  %v1928 = vpop.f32.mrf.mxu0
  %v1929 = vadd.f32 0.0, %v1928
  %1930 = vmatmul.bf16.gmra.mxu0 %v1423
  %v1931 = vpop.f32.mrf.mxu0
  %v1932 = vadd.f32 0.0, %v1931
  %v1933 = vpop.f32.mrf.mxu0
  %v1934 = vadd.f32 0.0, %v1933
  %1935 = vmatmul.bf16.gmra.mxu0 %v1424
  %v1936 = vpop.f32.mrf.mxu0
  %v1937 = vadd.f32 0.0, %v1936
  %v1938 = vpop.f32.mrf.mxu0
  %v1939 = vadd.f32 0.0, %v1938
  %1940 = vmatmul.bf16.gmra.mxu0 %v1425
  %v1941 = vpop.f32.mrf.mxu0
  %v1942 = vadd.f32 0.0, %v1941
  %v1943 = vpop.f32.mrf.mxu0
  %v1944 = vadd.f32 0.0, %v1943
  %1945 = vmatmul.bf16.gmra.mxu0 %v1426
  %v1946 = vpop.f32.mrf.mxu0
  %v1947 = vadd.f32 0.0, %v1946
  %v1948 = vpop.f32.mrf.mxu0
  %v1949 = vadd.f32 0.0, %v1948
  %1950 = vmatmul.bf16.gmra.mxu0 %v1427
  %v1951 = vpop.f32.mrf.mxu0
  %v1952 = vadd.f32 0.0, %v1951
  %v1953 = vpop.f32.mrf.mxu0
  %v1954 = vadd.f32 0.0, %v1953
  %1955 = vmatmul.bf16.gmra.mxu0 %v1428
  %v1956 = vpop.f32.mrf.mxu0
  %v1957 = vadd.f32 0.0, %v1956
  %v1958 = vpop.f32.mrf.mxu0
  %v1959 = vadd.f32 0.0, %v1958
  %1960 = vmatmul.bf16.gmra.mxu0 %v1429
  %v1961 = vpop.f32.mrf.mxu0
  %v1962 = vadd.f32 0.0, %v1961
  %v1963 = vpop.f32.mrf.mxu0
  %v1964 = vadd.f32 0.0, %v1963
  %1965 = vmatmul.bf16.gmra.mxu0 %v1430
  %v1966 = vpop.f32.mrf.mxu0
  %v1967 = vadd.f32 0.0, %v1966
  %v1968 = vpop.f32.mrf.mxu0
  %v1969 = vadd.f32 0.0, %v1968
  %1970 = vmatmul.bf16.gmra.mxu0 %v1431
  %v1971 = vpop.f32.mrf.mxu0
  %v1972 = vadd.f32 0.0, %v1971
  %v1973 = vpop.f32.mrf.mxu0
  %v1974 = vadd.f32 0.0, %v1973
  %1975 = vmatmul.bf16.gmra.mxu0 %v1432
  %v1976 = vpop.f32.mrf.mxu0
  %v1977 = vadd.f32 0.0, %v1976
  %v1978 = vpop.f32.mrf.mxu0
  %v1979 = vadd.f32 0.0, %v1978
  %1980 = vmatmul.bf16.gmra.mxu0 %v1433
  %v1981 = vpop.f32.mrf.mxu0
  %v1982 = vadd.f32 0.0, %v1981
  %v1983 = vpop.f32.mrf.mxu0
  %v1984 = vadd.f32 0.0, %v1983
  %1985 = vmatmul.bf16.gmra.mxu0 %v1434
  %v1986 = vpop.f32.mrf.mxu0
  %v1987 = vadd.f32 0.0, %v1986
  %v1988 = vpop.f32.mrf.mxu0
  %v1989 = vadd.f32 0.0, %v1988
  %1990 = vmatmul.bf16.gmra.mxu0 %v1435
  %v1991 = vpop.f32.mrf.mxu0
  %v1992 = vadd.f32 0.0, %v1991
  %v1993 = vpop.f32.mrf.mxu0
  %1994 = vdwg.mxu0
  %v1995 = vld [vmem:[%s5] sm:$0xff]
  %v1996 = vld [vmem:[%s5 + $0x8] sm:$0xf]
  %v1997 = vld [vmem:[%s5 + $0xc] sm:$0xff]
  %v1998 = vld [vmem:[%s5 + $0x14] sm:$0xf]
  %v1999 = vld [vmem:[%s5 + $0x18] sm:$0xff]
  %v2000 = vld [vmem:[%s5 + $0x20] sm:$0xf]
  %v2001 = vld [vmem:[%s5 + $0x24] sm:$0xff]
  %v2002 = vld [vmem:[%s5 + $0x2c] sm:$0xf]
  %v2003 = vld [vmem:[%s5 + $0x30] sm:$0xff]
  %v2004 = vld [vmem:[%s5 + $0x38] sm:$0xf]
  %v2005 = vld [vmem:[%s5 + $0x3c] sm:$0xff]
  %v2006 = vld [vmem:[%s5 + $0x44] sm:$0xf]
  %v2007 = vld [vmem:[%s5 + $0x48] sm:$0xff]
  %v2008 = vld [vmem:[%s5 + $0x50] sm:$0xf]
  %v2009 = vld [vmem:[%s5 + $0x54] sm:$0xff]
  %v2010 = vld [vmem:[%s5 + $0x5c] sm:$0xf]
  %v2011 = vld [vmem:[%s5 + $0x60] sm:$0xff]
  %v2012 = vld [vmem:[%s5 + $0x68] sm:$0xf]
  %v2013 = vld [vmem:[%s5 + $0x6c] sm:$0xff]
  %v2014 = vld [vmem:[%s5 + $0x74] sm:$0xf]
  %v2015 = vld [vmem:[%s5 + $0x78] sm:$0xff]
  %v2016 = vld [vmem:[%s5 + $0x80] sm:$0xf]
  %v2017 = vld [vmem:[%s5 + $0x84] sm:$0xff]
  %v2018 = vld [vmem:[%s5 + $0x8c] sm:$0xf]
  %v2019 = vld [vmem:[%s5 + $0x90] sm:$0xff]
  %v2020 = vld [vmem:[%s5 + $0x98] sm:$0xf]
  %v2021 = vld [vmem:[%s5 + $0x9c] sm:$0xff]
  %v2022 = vld [vmem:[%s5 + $0xa4] sm:$0xf]
  %v2023 = vld [vmem:[%s5 + $0xa8] sm:$0xff]
  %v2024 = vld [vmem:[%s5 + $0xb0] sm:$0xf]
  %v2025 = vld [vmem:[%s5 + $0xb4] sm:$0xff]
  %v2026 = vld [vmem:[%s5 + $0xbc] sm:$0xf]
  %v2027 = vld [vmem:[%s5 + $0xc0] sm:$0xff]
  %v2028 = vld [vmem:[%s5 + $0xc8] sm:$0xf]
  %v2029 = vld [vmem:[%s5 + $0xcc] sm:$0xff]
  %v2030 = vld [vmem:[%s5 + $0xd4] sm:$0xf]
  %v2031 = vld [vmem:[%s5 + $0xd8] sm:$0xff]
  %v2032 = vld [vmem:[%s5 + $0xe0] sm:$0xf]
  %v2033 = vld [vmem:[%s5 + $0xe4] sm:$0xff]
  %v2034 = vld [vmem:[%s5 + $0xec] sm:$0xf]
  %v2035 = vld [vmem:[%s5 + $0xf0] sm:$0xff]
  %v2036 = vld [vmem:[%s5 + $0xf8] sm:$0xf]
  %v2037 = vld [vmem:[%s5 + $0xfc] sm:$0xff]
  %v2038 = vld [vmem:[%s5 + $0x104] sm:$0xf]
  %v2039 = vld [vmem:[%s5 + $0x108] sm:$0xff]
  %v2040 = vld [vmem:[%s5 + $0x110] sm:$0xf]
  %v2041 = vld [vmem:[%s5 + $0x114] sm:$0xff]
  %v2042 = vld [vmem:[%s5 + $0x11c] sm:$0xf]
  %v2043 = vld [vmem:[%s5 + $0x120] sm:$0xff]
  %v2044 = vld [vmem:[%s5 + $0x128] sm:$0xf]
  %v2045 = vld [vmem:[%s5 + $0x12c] sm:$0xff]
  %v2046 = vld [vmem:[%s5 + $0x134] sm:$0xf]
  %v2047 = vld [vmem:[%s5 + $0x138] sm:$0xff]
  %v2048 = vld [vmem:[%s5 + $0x140] sm:$0xf]
  %v2049 = vld [vmem:[%s5 + $0x144] sm:$0xff]
  %v2050 = vld [vmem:[%s5 + $0x14c] sm:$0xf]
  %v2051 = vld [vmem:[%s5 + $0x150] sm:$0xff]
  %v2052 = vld [vmem:[%s5 + $0x158] sm:$0xf]
  %v2053 = vld [vmem:[%s5 + $0x15c] sm:$0xff]
  %v2054 = vld [vmem:[%s5 + $0x164] sm:$0xf]
  %v2055 = vld [vmem:[%s5 + $0x168] sm:$0xff]
  %v2056 = vld [vmem:[%s5 + $0x170] sm:$0xf]
  %v2057 = vld [vmem:[%s5 + $0x174] sm:$0xff]
  %v2058 = vld [vmem:[%s5 + $0x17c] sm:$0xf]
  %v2059 = vld [vmem:[%s5 + $0x180] sm:$0xff]
  %v2060 = vld [vmem:[%s5 + $0x188] sm:$0xf]
  %v2061 = vld [vmem:[%s5 + $0x18c] sm:$0xff]
  %v2062 = vld [vmem:[%s5 + $0x194] sm:$0xf]
  %v2063 = vld [vmem:[%s5 + $0x198] sm:$0xff]
  %v2064 = vld [vmem:[%s5 + $0x1a0] sm:$0xf]
  %v2065 = vld [vmem:[%s5 + $0x1a4] sm:$0xff]
  %v2066 = vld [vmem:[%s5 + $0x1ac] sm:$0xf]
  %v2067 = vld [vmem:[%s5 + $0x1b0] sm:$0xff]
  %v2068 = vld [vmem:[%s5 + $0x1b8] sm:$0xf]
  %v2069 = vld [vmem:[%s5 + $0x1bc] sm:$0xff]
  %v2070 = vld [vmem:[%s5 + $0x1c4] sm:$0xf]
  %v2071 = vld [vmem:[%s5 + $0x1c8] sm:$0xff]
  %v2072 = vld [vmem:[%s5 + $0x1d0] sm:$0xf]
  %v2073 = vld [vmem:[%s5 + $0x1d4] sm:$0xff]
  %v2074 = vld [vmem:[%s5 + $0x1dc] sm:$0xf]
  %v2075 = vld [vmem:[%s5 + $0x1e0] sm:$0xff]
  %v2076 = vld [vmem:[%s5 + $0x1e8] sm:$0xf]
  %v2077 = vld [vmem:[%s5 + $0x1ec] sm:$0xff]
  %v2078 = vld [vmem:[%s5 + $0x1f4] sm:$0xf]
  %v2079 = vld [vmem:[%s5 + $0x1f8] sm:$0xff]
  %v2080 = vld [vmem:[%s5 + $0x200] sm:$0xf]
  %v2081 = vld [vmem:[%s5 + $0x204] sm:$0xff]
  %v2082 = vld [vmem:[%s5 + $0x20c] sm:$0xf]
  %v2083 = vld [vmem:[%s5 + $0x210] sm:$0xff]
  %v2084 = vld [vmem:[%s5 + $0x218] sm:$0xf]
  %v2085 = vld [vmem:[%s5 + $0x21c] sm:$0xff]
  %v2086 = vld [vmem:[%s5 + $0x224] sm:$0xf]
  %v2087 = vld [vmem:[%s5 + $0x228] sm:$0xff]
  %v2088 = vld [vmem:[%s5 + $0x230] sm:$0xf]
  %v2089 = vld [vmem:[%s5 + $0x234] sm:$0xff]
  %v2090 = vld [vmem:[%s5 + $0x23c] sm:$0xf]
  %v2091 = vld [vmem:[%s5 + $0x240] sm:$0xff]
  %v2092 = vld [vmem:[%s5 + $0x248] sm:$0xf]
  %v2093 = vunpack.c.l.bf16 %v1995
  %v2094 = vunpack.c.h.bf16 %v1995
  %v2095 = vunpack.c.l.bf16 %v1996
  %v2096 = vunpack.c.l.bf16 %v1997
  %v2097 = vunpack.c.h.bf16 %v1997
  %v2098 = vunpack.c.l.bf16 %v1998
  %v2099 = vunpack.c.l.bf16 %v1999
  %v2100 = vunpack.c.h.bf16 %v1999
  %v2101 = vunpack.c.l.bf16 %v2000
  %v2102 = vunpack.c.l.bf16 %v2001
  %v2103 = vunpack.c.h.bf16 %v2001
  %v2104 = vunpack.c.l.bf16 %v2002
  %v2105 = vunpack.c.l.bf16 %v2003
  %v2106 = vunpack.c.h.bf16 %v2003
  %v2107 = vunpack.c.l.bf16 %v2004
  %v2108 = vunpack.c.l.bf16 %v2005
  %v2109 = vunpack.c.h.bf16 %v2005
  %v2110 = vunpack.c.l.bf16 %v2006
  %v2111 = vunpack.c.l.bf16 %v2007
  %v2112 = vunpack.c.h.bf16 %v2007
  %v2113 = vunpack.c.l.bf16 %v2008
  %v2114 = vunpack.c.l.bf16 %v2009
  %v2115 = vunpack.c.h.bf16 %v2009
  %v2116 = vunpack.c.l.bf16 %v2010
  %v2117 = vunpack.c.l.bf16 %v2011
  %v2118 = vunpack.c.h.bf16 %v2011
  %v2119 = vunpack.c.l.bf16 %v2012
  %v2120 = vunpack.c.l.bf16 %v2013
  %v2121 = vunpack.c.h.bf16 %v2013
  %v2122 = vunpack.c.l.bf16 %v2014
  %v2123 = vunpack.c.l.bf16 %v2015
  %v2124 = vunpack.c.h.bf16 %v2015
  %v2125 = vunpack.c.l.bf16 %v2016
  %v2126 = vunpack.c.l.bf16 %v2017
  %v2127 = vunpack.c.h.bf16 %v2017
  %v2128 = vunpack.c.l.bf16 %v2018
  %v2129 = vunpack.c.l.bf16 %v2019
  %v2130 = vunpack.c.h.bf16 %v2019
  %v2131 = vunpack.c.l.bf16 %v2020
  %v2132 = vunpack.c.l.bf16 %v2021
  %v2133 = vunpack.c.h.bf16 %v2021
  %v2134 = vunpack.c.l.bf16 %v2022
  %v2135 = vunpack.c.l.bf16 %v2023
  %v2136 = vunpack.c.h.bf16 %v2023
  %v2137 = vunpack.c.l.bf16 %v2024
  %v2138 = vunpack.c.l.bf16 %v2025
  %v2139 = vunpack.c.h.bf16 %v2025
  %v2140 = vunpack.c.l.bf16 %v2026
  %v2141 = vunpack.c.l.bf16 %v2027
  %v2142 = vunpack.c.h.bf16 %v2027
  %v2143 = vunpack.c.l.bf16 %v2028
  %v2144 = vunpack.c.l.bf16 %v2029
  %v2145 = vunpack.c.h.bf16 %v2029
  %v2146 = vunpack.c.l.bf16 %v2030
  %v2147 = vunpack.c.l.bf16 %v2031
  %v2148 = vunpack.c.h.bf16 %v2031
  %v2149 = vunpack.c.l.bf16 %v2032
  %v2150 = vunpack.c.l.bf16 %v2033
  %v2151 = vunpack.c.h.bf16 %v2033
  %v2152 = vunpack.c.l.bf16 %v2034
  %v2153 = vunpack.c.l.bf16 %v2035
  %v2154 = vunpack.c.h.bf16 %v2035
  %v2155 = vunpack.c.l.bf16 %v2036
  %v2156 = vunpack.c.l.bf16 %v2037
  %v2157 = vunpack.c.h.bf16 %v2037
  %v2158 = vunpack.c.l.bf16 %v2038
  %v2159 = vunpack.c.l.bf16 %v2039
  %v2160 = vunpack.c.h.bf16 %v2039
  %v2161 = vunpack.c.l.bf16 %v2040
  %v2162 = vunpack.c.l.bf16 %v2041
  %v2163 = vunpack.c.h.bf16 %v2041
  %v2164 = vunpack.c.l.bf16 %v2042
  %v2165 = vunpack.c.l.bf16 %v2043
  %v2166 = vunpack.c.h.bf16 %v2043
  %v2167 = vunpack.c.l.bf16 %v2044
  %v2168 = vunpack.c.l.bf16 %v2045
  %v2169 = vunpack.c.h.bf16 %v2045
  %v2170 = vunpack.c.l.bf16 %v2046
  %v2171 = vunpack.c.l.bf16 %v2047
  %v2172 = vunpack.c.h.bf16 %v2047
  %v2173 = vunpack.c.l.bf16 %v2048
  %v2174 = vunpack.c.l.bf16 %v2049
  %v2175 = vunpack.c.h.bf16 %v2049
  %v2176 = vunpack.c.l.bf16 %v2050
  %v2177 = vunpack.c.l.bf16 %v2051
  %v2178 = vunpack.c.h.bf16 %v2051
  %v2179 = vunpack.c.l.bf16 %v2052
  %v2180 = vunpack.c.l.bf16 %v2053
  %v2181 = vunpack.c.h.bf16 %v2053
  %v2182 = vunpack.c.l.bf16 %v2054
  %v2183 = vunpack.c.l.bf16 %v2055
  %v2184 = vunpack.c.h.bf16 %v2055
  %v2185 = vunpack.c.l.bf16 %v2056
  %v2186 = vunpack.c.l.bf16 %v2057
  %v2187 = vunpack.c.h.bf16 %v2057
  %v2188 = vunpack.c.l.bf16 %v2058
  %v2189 = vunpack.c.l.bf16 %v2059
  %v2190 = vunpack.c.h.bf16 %v2059
  %v2191 = vunpack.c.l.bf16 %v2060
  %v2192 = vunpack.c.l.bf16 %v2061
  %v2193 = vunpack.c.h.bf16 %v2061
  %v2194 = vunpack.c.l.bf16 %v2062
  %v2195 = vunpack.c.l.bf16 %v2063
  %v2196 = vunpack.c.h.bf16 %v2063
  %v2197 = vunpack.c.l.bf16 %v2064
  %v2198 = vunpack.c.l.bf16 %v2065
  %v2199 = vunpack.c.h.bf16 %v2065
  %v2200 = vunpack.c.l.bf16 %v2066
  %v2201 = vunpack.c.l.bf16 %v2067
  %v2202 = vunpack.c.h.bf16 %v2067
  %v2203 = vunpack.c.l.bf16 %v2068
  %v2204 = vunpack.c.l.bf16 %v2069
  %v2205 = vunpack.c.h.bf16 %v2069
  %v2206 = vunpack.c.l.bf16 %v2070
  %v2207 = vunpack.c.l.bf16 %v2071
  %v2208 = vunpack.c.h.bf16 %v2071
  %v2209 = vunpack.c.l.bf16 %v2072
  %v2210 = vunpack.c.l.bf16 %v2073
  %v2211 = vunpack.c.h.bf16 %v2073
  %v2212 = vunpack.c.l.bf16 %v2074
  %v2213 = vunpack.c.l.bf16 %v2075
  %v2214 = vunpack.c.h.bf16 %v2075
  %v2215 = vunpack.c.l.bf16 %v2076
  %v2216 = vunpack.c.l.bf16 %v2077
  %v2217 = vunpack.c.h.bf16 %v2077
  %v2218 = vunpack.c.l.bf16 %v2078
  %v2219 = vunpack.c.l.bf16 %v2079
  %v2220 = vunpack.c.h.bf16 %v2079
  %v2221 = vunpack.c.l.bf16 %v2080
  %v2222 = vunpack.c.l.bf16 %v2081
  %v2223 = vunpack.c.h.bf16 %v2081
  %v2224 = vunpack.c.l.bf16 %v2082
  %v2225 = vunpack.c.l.bf16 %v2083
  %v2226 = vunpack.c.h.bf16 %v2083
  %v2227 = vunpack.c.l.bf16 %v2084
  %v2228 = vunpack.c.l.bf16 %v2085
  %v2229 = vunpack.c.h.bf16 %v2085
  %v2230 = vunpack.c.l.bf16 %v2086
  %v2231 = vunpack.c.l.bf16 %v2087
  %v2232 = vunpack.c.h.bf16 %v2087
  %v2233 = vunpack.c.l.bf16 %v2088
  %v2234 = vunpack.c.l.bf16 %v2089
  %v2235 = vunpack.c.h.bf16 %v2089
  %v2236 = vunpack.c.l.bf16 %v2090
  %v2237 = vunpack.c.l.bf16 %v2091
  %v2238 = vunpack.c.h.bf16 %v2091
  %v2239 = vunpack.c.l.bf16 %v2092
  %v2240 = vmul.f32 %v1606, %v2093
  %v2241 = vmul.f32 %v1739, %v2094
  %v2242 = vmul.f32 %v1872, %v2095
  %v2243 = vmul.f32 %v1608, %v2096
  %v2244 = vmul.f32 %v1741, %v2097
  %v2245 = vmul.f32 %v1874, %v2098
  %v2246 = vmul.f32 %v1611, %v2099
  %v2247 = vmul.f32 %v1744, %v2100
  %v2248 = vmul.f32 %v1877, %v2101
  %v2249 = vmul.f32 %v1613, %v2102
  %v2250 = vmul.f32 %v1746, %v2103
  %v2251 = vmul.f32 %v1879, %v2104
  %v2252 = vmul.f32 %v1616, %v2105
  %v2253 = vmul.f32 %v1749, %v2106
  %v2254 = vmul.f32 %v1882, %v2107
  %v2255 = vmul.f32 %v1618, %v2108
  %v2256 = vmul.f32 %v1751, %v2109
  %v2257 = vmul.f32 %v1884, %v2110
  %v2258 = vmul.f32 %v1621, %v2111
  %v2259 = vmul.f32 %v1754, %v2112
  %v2260 = vmul.f32 %v1887, %v2113
  %v2261 = vmul.f32 %v1623, %v2114
  %v2262 = vmul.f32 %v1756, %v2115
  %v2263 = vmul.f32 %v1889, %v2116
  %v2264 = vmul.f32 %v1626, %v2117
  %v2265 = vmul.f32 %v1759, %v2118
  %v2266 = vmul.f32 %v1892, %v2119
  %v2267 = vmul.f32 %v1628, %v2120
  %v2268 = vmul.f32 %v1761, %v2121
  %v2269 = vmul.f32 %v1894, %v2122
  %v2270 = vmul.f32 %v1631, %v2123
  %v2271 = vmul.f32 %v1764, %v2124
  %v2272 = vmul.f32 %v1897, %v2125
  %v2273 = vmul.f32 %v1633, %v2126
  %v2274 = vmul.f32 %v1766, %v2127
  %v2275 = vmul.f32 %v1899, %v2128
  %v2276 = vmul.f32 %v1636, %v2129
  %v2277 = vmul.f32 %v1769, %v2130
  %v2278 = vmul.f32 %v1902, %v2131
  %v2279 = vmul.f32 %v1638, %v2132
  %v2280 = vmul.f32 %v1771, %v2133
  %v2281 = vmul.f32 %v1904, %v2134
  %v2282 = vmul.f32 %v1641, %v2135
  %v2283 = vmul.f32 %v1774, %v2136
  %v2284 = vmul.f32 %v1907, %v2137
  %v2285 = vmul.f32 %v1643, %v2138
  %v2286 = vmul.f32 %v1776, %v2139
  %v2287 = vmul.f32 %v1909, %v2140
  %v2288 = vmul.f32 %v1646, %v2141
  %v2289 = vmul.f32 %v1779, %v2142
  %v2290 = vmul.f32 %v1912, %v2143
  %v2291 = vmul.f32 %v1648, %v2144
  %v2292 = vmul.f32 %v1781, %v2145
  %v2293 = vmul.f32 %v1914, %v2146
  %v2294 = vmul.f32 %v1651, %v2147
  %v2295 = vmul.f32 %v1784, %v2148
  %v2296 = vmul.f32 %v1917, %v2149
  %v2297 = vmul.f32 %v1653, %v2150
  %v2298 = vmul.f32 %v1786, %v2151
  %v2299 = vmul.f32 %v1919, %v2152
  %v2300 = vmul.f32 %v1656, %v2153
  %v2301 = vmul.f32 %v1789, %v2154
  %v2302 = vmul.f32 %v1922, %v2155
  %v2303 = vmul.f32 %v1658, %v2156
  %v2304 = vmul.f32 %v1791, %v2157
  %v2305 = vmul.f32 %v1924, %v2158
  %v2306 = vmul.f32 %v1661, %v2159
  %v2307 = vmul.f32 %v1794, %v2160
  %v2308 = vmul.f32 %v1927, %v2161
  %v2309 = vmul.f32 %v1663, %v2162
  %v2310 = vmul.f32 %v1796, %v2163
  %v2311 = vmul.f32 %v1929, %v2164
  %v2312 = vmul.f32 %v1666, %v2165
  %v2313 = vmul.f32 %v1799, %v2166
  %v2314 = vmul.f32 %v1932, %v2167
  %v2315 = vmul.f32 %v1668, %v2168
  %v2316 = vmul.f32 %v1801, %v2169
  %v2317 = vmul.f32 %v1934, %v2170
  %v2318 = vmul.f32 %v1671, %v2171
  %v2319 = vmul.f32 %v1804, %v2172
  %v2320 = vmul.f32 %v1937, %v2173
  %v2321 = vmul.f32 %v1673, %v2174
  %v2322 = vmul.f32 %v1806, %v2175
  %v2323 = vmul.f32 %v1939, %v2176
  %v2324 = vmul.f32 %v1676, %v2177
  %v2325 = vmul.f32 %v1809, %v2178
  %v2326 = vmul.f32 %v1942, %v2179
  %v2327 = vmul.f32 %v1678, %v2180
  %v2328 = vmul.f32 %v1811, %v2181
  %v2329 = vmul.f32 %v1944, %v2182
  %v2330 = vmul.f32 %v1681, %v2183
  %v2331 = vmul.f32 %v1814, %v2184
  %v2332 = vmul.f32 %v1947, %v2185
  %v2333 = vmul.f32 %v1683, %v2186
  %v2334 = vmul.f32 %v1816, %v2187
  %v2335 = vmul.f32 %v1949, %v2188
  %v2336 = vmul.f32 %v1686, %v2189
  %v2337 = vmul.f32 %v1819, %v2190
  %v2338 = vmul.f32 %v1952, %v2191
  %v2339 = vmul.f32 %v1688, %v2192
  %v2340 = vmul.f32 %v1821, %v2193
  %v2341 = vmul.f32 %v1954, %v2194
  %v2342 = vmul.f32 %v1691, %v2195
  %v2343 = vmul.f32 %v1824, %v2196
  %v2344 = vmul.f32 %v1957, %v2197
  %v2345 = vmul.f32 %v1693, %v2198
  %v2346 = vmul.f32 %v1826, %v2199
  %v2347 = vmul.f32 %v1959, %v2200
  %v2348 = vmul.f32 %v1696, %v2201
  %v2349 = vmul.f32 %v1829, %v2202
  %v2350 = vmul.f32 %v1962, %v2203
  %v2351 = vmul.f32 %v1698, %v2204
  %v2352 = vmul.f32 %v1831, %v2205
  %v2353 = vmul.f32 %v1964, %v2206
  %v2354 = vmul.f32 %v1701, %v2207
  %v2355 = vmul.f32 %v1834, %v2208
  %v2356 = vmul.f32 %v1967, %v2209
  %v2357 = vmul.f32 %v1703, %v2210
  %v2358 = vmul.f32 %v1836, %v2211
  %v2359 = vmul.f32 %v1969, %v2212
  %v2360 = vmul.f32 %v1706, %v2213
  %v2361 = vmul.f32 %v1839, %v2214
  %v2362 = vmul.f32 %v1972, %v2215
  %v2363 = vmul.f32 %v1708, %v2216
  %v2364 = vmul.f32 %v1841, %v2217
  %v2365 = vmul.f32 %v1974, %v2218
  %v2366 = vmul.f32 %v1711, %v2219
  %v2367 = vmul.f32 %v1844, %v2220
  %v2368 = vmul.f32 %v1977, %v2221
  %v2369 = vmul.f32 %v1713, %v2222
  %v2370 = vmul.f32 %v1846, %v2223
  %v2371 = vmul.f32 %v1979, %v2224
  %v2372 = vmul.f32 %v1716, %v2225
  %v2373 = vmul.f32 %v1849, %v2226
  %v2374 = vmul.f32 %v1982, %v2227
  %v2375 = vmul.f32 %v1718, %v2228
  %v2376 = vmul.f32 %v1851, %v2229
  %v2377 = vmul.f32 %v1984, %v2230
  %v2378 = vmul.f32 %v1721, %v2231
  %v2379 = vmul.f32 %v1854, %v2232
  %v2380 = vmul.f32 %v1987, %v2233
  %v2381 = vmul.f32 %v1723, %v2234
  %v2382 = vmul.f32 %v1856, %v2235
  %v2383 = vmul.f32 %v1989, %v2236
  %v2384 = vmul.f32 %v1726, %v2237
  %v2385 = vmul.f32 %v1859, %v2238
  %v2386 = vmul.f32 %v1992, %v2239
  %v2387 = vrot.slane %v2240, 1
  %v2388 = vrot.slane %v2243, 1
  %v2389 = vrot.slane %v2246, 1
  %v2390 = vrot.slane %v2249, 1
  %v2391 = vrot.slane %v2252, 1
  %v2392 = vrot.slane %v2255, 1
  %v2393 = vrot.slane %v2258, 1
  %v2394 = vrot.slane %v2261, 1
  %v2395 = vrot.slane %v2264, 1
  %v2396 = vrot.slane %v2267, 1
  %v2397 = vrot.slane %v2270, 1
  %v2398 = vrot.slane %v2273, 1
  %v2399 = vrot.slane %v2276, 1
  %v2400 = vrot.slane %v2279, 1
  %v2401 = vrot.slane %v2282, 1
  %v2402 = vrot.slane %v2285, 1
  %v2403 = vrot.slane %v2288, 1
  %v2404 = vrot.slane %v2291, 1
  %v2405 = vrot.slane %v2294, 1
  %v2406 = vrot.slane %v2297, 1
  %v2407 = vrot.slane %v2300, 1
  %v2408 = vrot.slane %v2303, 1
  %v2409 = vrot.slane %v2306, 1
  %v2410 = vrot.slane %v2309, 1
  %v2411 = vrot.slane %v2312, 1
  %v2412 = vrot.slane %v2315, 1
  %v2413 = vrot.slane %v2318, 1
  %v2414 = vrot.slane %v2321, 1
  %v2415 = vrot.slane %v2324, 1
  %v2416 = vrot.slane %v2327, 1
  %v2417 = vrot.slane %v2330, 1
  %v2418 = vrot.slane %v2333, 1
  %v2419 = vrot.slane %v2336, 1
  %v2420 = vrot.slane %v2339, 1
  %v2421 = vrot.slane %v2342, 1
  %v2422 = vrot.slane %v2345, 1
  %v2423 = vrot.slane %v2348, 1
  %v2424 = vrot.slane %v2351, 1
  %v2425 = vrot.slane %v2354, 1
  %v2426 = vrot.slane %v2357, 1
  %v2427 = vrot.slane %v2360, 1
  %v2428 = vrot.slane %v2363, 1
  %v2429 = vrot.slane %v2366, 1
  %v2430 = vrot.slane %v2369, 1
  %v2431 = vrot.slane %v2372, 1
  %v2432 = vrot.slane %v2375, 1
  %v2433 = vrot.slane %v2378, 1
  %v2434 = vrot.slane %v2381, 1
  %v2435 = vrot.slane %v2384, 1
  %v2436 = vlaneseq
  %v2437 = vshrl.u32 %v2436, 7
  %vm2438 = vcmp.lt.s32.totalorder %v2437, 7
  %v2439 = vsel %vm2438, %v2434, %v2435
  %v2440 = vsel %vm2438, %v2433, %v2434
  %v2441 = vsel %vm2438, %v2432, %v2433
  %v2442 = vsel %vm2438, %v2431, %v2432
  %v2443 = vsel %vm2438, %v2430, %v2431
  %v2444 = vsel %vm2438, %v2429, %v2430
  %v2445 = vsel %vm2438, %v2428, %v2429
  %v2446 = vsel %vm2438, %v2427, %v2428
  %v2447 = vsel %vm2438, %v2426, %v2427
  %v2448 = vsel %vm2438, %v2425, %v2426
  %v2449 = vsel %vm2438, %v2424, %v2425
  %v2450 = vsel %vm2438, %v2423, %v2424
  %v2451 = vsel %vm2438, %v2422, %v2423
  %v2452 = vsel %vm2438, %v2421, %v2422
  %v2453 = vsel %vm2438, %v2420, %v2421
  %v2454 = vsel %vm2438, %v2419, %v2420
  %v2455 = vsel %vm2438, %v2418, %v2419
  %v2456 = vsel %vm2438, %v2417, %v2418
  %v2457 = vsel %vm2438, %v2416, %v2417
  %v2458 = vsel %vm2438, %v2415, %v2416
  %v2459 = vsel %vm2438, %v2414, %v2415
  %v2460 = vsel %vm2438, %v2413, %v2414
  %v2461 = vsel %vm2438, %v2412, %v2413
  %v2462 = vsel %vm2438, %v2411, %v2412
  %v2463 = vsel %vm2438, %v2410, %v2411
  %v2464 = vsel %vm2438, %v2409, %v2410
  %v2465 = vsel %vm2438, %v2408, %v2409
  %v2466 = vsel %vm2438, %v2407, %v2408
  %v2467 = vsel %vm2438, %v2406, %v2407
  %v2468 = vsel %vm2438, %v2405, %v2406
  %v2469 = vsel %vm2438, %v2404, %v2405
  %v2470 = vsel %vm2438, %v2403, %v2404
  %v2471 = vsel %vm2438, %v2402, %v2403
  %v2472 = vsel %vm2438, %v2401, %v2402
  %v2473 = vsel %vm2438, %v2400, %v2401
  %v2474 = vsel %vm2438, %v2399, %v2400
  %v2475 = vsel %vm2438, %v2398, %v2399
  %v2476 = vsel %vm2438, %v2397, %v2398
  %v2477 = vsel %vm2438, %v2396, %v2397
  %v2478 = vsel %vm2438, %v2395, %v2396
  %v2479 = vsel %vm2438, %v2394, %v2395
  %v2480 = vsel %vm2438, %v2393, %v2394
  %v2481 = vsel %vm2438, %v2392, %v2393
  %v2482 = vsel %vm2438, %v2391, %v2392
  %v2483 = vsel %vm2438, %v2390, %v2391
  %v2484 = vsel %vm2438, %v2389, %v2390
  %v2485 = vsel %vm2438, %v2388, %v2389
  %v2486 = vsel %vm2438, %v2387, %v2388
  %v2487 = vsel %vm2438, %v2435, %v2387
  %v2488 = vadd.f32 %v2241, %v2439
  %v2489 = vadd.f32 %v2244, %v2487
  %v2490 = vadd.f32 %v2247, %v2486
  %v2491 = vadd.f32 %v2250, %v2485
  %v2492 = vadd.f32 %v2253, %v2484
  %v2493 = vadd.f32 %v2256, %v2483
  %v2494 = vadd.f32 %v2259, %v2482
  %v2495 = vadd.f32 %v2262, %v2481
  %v2496 = vadd.f32 %v2265, %v2480
  %v2497 = vadd.f32 %v2268, %v2479
  %v2498 = vadd.f32 %v2271, %v2478
  %v2499 = vadd.f32 %v2274, %v2477
  %v2500 = vadd.f32 %v2277, %v2476
  %v2501 = vadd.f32 %v2280, %v2475
  %v2502 = vadd.f32 %v2283, %v2474
  %v2503 = vadd.f32 %v2286, %v2473
  %v2504 = vadd.f32 %v2289, %v2472
  %v2505 = vadd.f32 %v2292, %v2471
  %v2506 = vadd.f32 %v2295, %v2470
  %v2507 = vadd.f32 %v2298, %v2469
  %v2508 = vadd.f32 %v2301, %v2468
  %v2509 = vadd.f32 %v2304, %v2467
  %v2510 = vadd.f32 %v2307, %v2466
  %v2511 = vadd.f32 %v2310, %v2465
  %v2512 = vadd.f32 %v2313, %v2464
  %v2513 = vadd.f32 %v2316, %v2463
  %v2514 = vadd.f32 %v2319, %v2462
  %v2515 = vadd.f32 %v2322, %v2461
  %v2516 = vadd.f32 %v2325, %v2460
  %v2517 = vadd.f32 %v2328, %v2459
  %v2518 = vadd.f32 %v2331, %v2458
  %v2519 = vadd.f32 %v2334, %v2457
  %v2520 = vadd.f32 %v2337, %v2456
  %v2521 = vadd.f32 %v2340, %v2455
  %v2522 = vadd.f32 %v2343, %v2454
  %v2523 = vadd.f32 %v2346, %v2453
  %v2524 = vadd.f32 %v2349, %v2452
  %v2525 = vadd.f32 %v2352, %v2451
  %v2526 = vadd.f32 %v2355, %v2450
  %v2527 = vadd.f32 %v2358, %v2449
  %v2528 = vadd.f32 %v2361, %v2448
  %v2529 = vadd.f32 %v2364, %v2447
  %v2530 = vadd.f32 %v2367, %v2446
  %v2531 = vadd.f32 %v2370, %v2445
  %v2532 = vadd.f32 %v2373, %v2444
  %v2533 = vadd.f32 %v2376, %v2443
  %v2534 = vadd.f32 %v2379, %v2442
  %v2535 = vadd.f32 %v2382, %v2441
  %v2536 = vadd.f32 %v2385, %v2440
  %2586 = vrot.lane.b32.xlu0 %v2240, 96
  %v2587 = vpop.permute.xlu0 %2586
  %2588 = vrot.lane.b32.xlu0 %v2243, 96
  %v2589 = vpop.permute.xlu0 %2588
  %2590 = vrot.lane.b32.xlu0 %v2246, 96
  %v2591 = vpop.permute.xlu0 %2590
  %2592 = vrot.lane.b32.xlu0 %v2249, 96
  %v2593 = vpop.permute.xlu0 %2592
  %2594 = vrot.lane.b32.xlu0 %v2252, 96
  %v2595 = vpop.permute.xlu0 %2594
  %2596 = vrot.lane.b32.xlu0 %v2255, 96
  %v2597 = vpop.permute.xlu0 %2596
  %2598 = vrot.lane.b32.xlu0 %v2258, 96
  %v2599 = vpop.permute.xlu0 %2598
  %2600 = vrot.lane.b32.xlu0 %v2261, 96
  %v2601 = vpop.permute.xlu0 %2600
  %2602 = vrot.lane.b32.xlu0 %v2264, 96
  %v2603 = vpop.permute.xlu0 %2602
  %2604 = vrot.lane.b32.xlu0 %v2267, 96
  %v2605 = vpop.permute.xlu0 %2604
  %2606 = vrot.lane.b32.xlu0 %v2270, 96
  %v2607 = vpop.permute.xlu0 %2606
  %2608 = vrot.lane.b32.xlu0 %v2273, 96
  %v2609 = vpop.permute.xlu0 %2608
  %2610 = vrot.lane.b32.xlu0 %v2276, 96
  %v2611 = vpop.permute.xlu0 %2610
  %2612 = vrot.lane.b32.xlu0 %v2279, 96
  %v2613 = vpop.permute.xlu0 %2612
  %2614 = vrot.lane.b32.xlu0 %v2282, 96
  %v2615 = vpop.permute.xlu0 %2614
  %2616 = vrot.lane.b32.xlu0 %v2285, 96
  %v2617 = vpop.permute.xlu0 %2616
  %2618 = vrot.lane.b32.xlu0 %v2288, 96
  %v2619 = vpop.permute.xlu0 %2618
  %2620 = vrot.lane.b32.xlu0 %v2291, 96
  %v2621 = vpop.permute.xlu0 %2620
  %2622 = vrot.lane.b32.xlu0 %v2294, 96
  %v2623 = vpop.permute.xlu0 %2622
  %2624 = vrot.lane.b32.xlu0 %v2297, 96
  %v2625 = vpop.permute.xlu0 %2624
  %2626 = vrot.lane.b32.xlu0 %v2300, 96
  %v2627 = vpop.permute.xlu0 %2626
  %2628 = vrot.lane.b32.xlu0 %v2303, 96
  %v2629 = vpop.permute.xlu0 %2628
  %2630 = vrot.lane.b32.xlu0 %v2306, 96
  %v2631 = vpop.permute.xlu0 %2630
  %2632 = vrot.lane.b32.xlu0 %v2309, 96
  %v2633 = vpop.permute.xlu0 %2632
  %2634 = vrot.lane.b32.xlu0 %v2312, 96
  %v2635 = vpop.permute.xlu0 %2634
  %2636 = vrot.lane.b32.xlu0 %v2315, 96
  %v2637 = vpop.permute.xlu0 %2636
  %2638 = vrot.lane.b32.xlu0 %v2318, 96
  %v2639 = vpop.permute.xlu0 %2638
  %2640 = vrot.lane.b32.xlu0 %v2321, 96
  %v2641 = vpop.permute.xlu0 %2640
  %2642 = vrot.lane.b32.xlu0 %v2324, 96
  %v2643 = vpop.permute.xlu0 %2642
  %2644 = vrot.lane.b32.xlu0 %v2327, 96
  %v2645 = vpop.permute.xlu0 %2644
  %2646 = vrot.lane.b32.xlu0 %v2330, 96
  %v2647 = vpop.permute.xlu0 %2646
  %2648 = vrot.lane.b32.xlu0 %v2333, 96
  %v2649 = vpop.permute.xlu0 %2648
  %2650 = vrot.lane.b32.xlu0 %v2336, 96
  %v2651 = vpop.permute.xlu0 %2650
  %2652 = vrot.lane.b32.xlu0 %v2339, 96
  %v2653 = vpop.permute.xlu0 %2652
  %2654 = vrot.lane.b32.xlu0 %v2342, 96
  %v2655 = vpop.permute.xlu0 %2654
  %2656 = vrot.lane.b32.xlu0 %v2345, 96
  %v2657 = vpop.permute.xlu0 %2656
  %2658 = vrot.lane.b32.xlu0 %v2348, 96
  %v2659 = vpop.permute.xlu0 %2658
  %2660 = vrot.lane.b32.xlu0 %v2351, 96
  %v2661 = vpop.permute.xlu0 %2660
  %2662 = vrot.lane.b32.xlu0 %v2354, 96
  %v2663 = vpop.permute.xlu0 %2662
  %2664 = vrot.lane.b32.xlu0 %v2357, 96
  %v2665 = vpop.permute.xlu0 %2664
  %2666 = vrot.lane.b32.xlu0 %v2360, 96
  %v2667 = vpop.permute.xlu0 %2666
  %2668 = vrot.lane.b32.xlu0 %v2363, 96
  %v2669 = vpop.permute.xlu0 %2668
  %2670 = vrot.lane.b32.xlu0 %v2366, 96
  %v2671 = vpop.permute.xlu0 %2670
  %2672 = vrot.lane.b32.xlu0 %v2369, 96
  %v2673 = vpop.permute.xlu0 %2672
  %2674 = vrot.lane.b32.xlu0 %v2372, 96
  %v2675 = vpop.permute.xlu0 %2674
  %2676 = vrot.lane.b32.xlu0 %v2375, 96
  %v2677 = vpop.permute.xlu0 %2676
  %2678 = vrot.lane.b32.xlu0 %v2378, 96
  %v2679 = vpop.permute.xlu0 %2678
  %2680 = vrot.lane.b32.xlu0 %v2381, 96
  %v2681 = vpop.permute.xlu0 %2680
  %2682 = vrot.lane.b32.xlu0 %v2384, 96
  %v2683 = vpop.permute.xlu0 %2682
  %v2733 = vrot.slane %v2587, 2
  %v2734 = vrot.slane %v2589, 2
  %v2735 = vrot.slane %v2591, 2
  %v2736 = vrot.slane %v2593, 2
  %v2737 = vrot.slane %v2595, 2
  %v2738 = vrot.slane %v2597, 2
  %v2739 = vrot.slane %v2599, 2
  %v2740 = vrot.slane %v2601, 2
  %v2741 = vrot.slane %v2603, 2
  %v2742 = vrot.slane %v2605, 2
  %v2743 = vrot.slane %v2607, 2
  %v2744 = vrot.slane %v2609, 2
  %v2745 = vrot.slane %v2611, 2
  %v2746 = vrot.slane %v2613, 2
  %v2747 = vrot.slane %v2615, 2
  %v2748 = vrot.slane %v2617, 2
  %v2749 = vrot.slane %v2619, 2
  %v2750 = vrot.slane %v2621, 2
  %v2751 = vrot.slane %v2623, 2
  %v2752 = vrot.slane %v2625, 2
  %v2753 = vrot.slane %v2627, 2
  %v2754 = vrot.slane %v2629, 2
  %v2755 = vrot.slane %v2631, 2
  %v2756 = vrot.slane %v2633, 2
  %v2757 = vrot.slane %v2635, 2
  %v2758 = vrot.slane %v2637, 2
  %v2759 = vrot.slane %v2639, 2
  %v2760 = vrot.slane %v2641, 2
  %v2761 = vrot.slane %v2643, 2
  %v2762 = vrot.slane %v2645, 2
  %v2763 = vrot.slane %v2647, 2
  %v2764 = vrot.slane %v2649, 2
  %v2765 = vrot.slane %v2651, 2
  %v2766 = vrot.slane %v2653, 2
  %v2767 = vrot.slane %v2655, 2
  %v2768 = vrot.slane %v2657, 2
  %v2769 = vrot.slane %v2659, 2
  %v2770 = vrot.slane %v2661, 2
  %v2771 = vrot.slane %v2663, 2
  %v2772 = vrot.slane %v2665, 2
  %v2773 = vrot.slane %v2667, 2
  %v2774 = vrot.slane %v2669, 2
  %v2775 = vrot.slane %v2671, 2
  %v2776 = vrot.slane %v2673, 2
  %v2777 = vrot.slane %v2675, 2
  %v2778 = vrot.slane %v2677, 2
  %v2779 = vrot.slane %v2679, 2
  %v2780 = vrot.slane %v2681, 2
  %v2781 = vrot.slane %v2683, 2
  %vm2782 = vcmp.lt.s32.totalorder %v2437, 6
  %v2783 = vsel %vm2782, %v2780, %v2781
  %v2784 = vsel %vm2782, %v2779, %v2780
  %v2785 = vsel %vm2782, %v2778, %v2779
  %v2786 = vsel %vm2782, %v2777, %v2778
  %v2787 = vsel %vm2782, %v2776, %v2777
  %v2788 = vsel %vm2782, %v2775, %v2776
  %v2789 = vsel %vm2782, %v2774, %v2775
  %v2790 = vsel %vm2782, %v2773, %v2774
  %v2791 = vsel %vm2782, %v2772, %v2773
  %v2792 = vsel %vm2782, %v2771, %v2772
  %v2793 = vsel %vm2782, %v2770, %v2771
  %v2794 = vsel %vm2782, %v2769, %v2770
  %v2795 = vsel %vm2782, %v2768, %v2769
  %v2796 = vsel %vm2782, %v2767, %v2768
  %v2797 = vsel %vm2782, %v2766, %v2767
  %v2798 = vsel %vm2782, %v2765, %v2766
  %v2799 = vsel %vm2782, %v2764, %v2765
  %v2800 = vsel %vm2782, %v2763, %v2764
  %v2801 = vsel %vm2782, %v2762, %v2763
  %v2802 = vsel %vm2782, %v2761, %v2762
  %v2803 = vsel %vm2782, %v2760, %v2761
  %v2804 = vsel %vm2782, %v2759, %v2760
  %v2805 = vsel %vm2782, %v2758, %v2759
  %v2806 = vsel %vm2782, %v2757, %v2758
  %v2807 = vsel %vm2782, %v2756, %v2757
  %v2808 = vsel %vm2782, %v2755, %v2756
  %v2809 = vsel %vm2782, %v2754, %v2755
  %v2810 = vsel %vm2782, %v2753, %v2754
  %v2811 = vsel %vm2782, %v2752, %v2753
  %v2812 = vsel %vm2782, %v2751, %v2752
  %v2813 = vsel %vm2782, %v2750, %v2751
  %v2814 = vsel %vm2782, %v2749, %v2750
  %v2815 = vsel %vm2782, %v2748, %v2749
  %v2816 = vsel %vm2782, %v2747, %v2748
  %v2817 = vsel %vm2782, %v2746, %v2747
  %v2818 = vsel %vm2782, %v2745, %v2746
  %v2819 = vsel %vm2782, %v2744, %v2745
  %v2820 = vsel %vm2782, %v2743, %v2744
  %v2821 = vsel %vm2782, %v2742, %v2743
  %v2822 = vsel %vm2782, %v2741, %v2742
  %v2823 = vsel %vm2782, %v2740, %v2741
  %v2824 = vsel %vm2782, %v2739, %v2740
  %v2825 = vsel %vm2782, %v2738, %v2739
  %v2826 = vsel %vm2782, %v2737, %v2738
  %v2827 = vsel %vm2782, %v2736, %v2737
  %v2828 = vsel %vm2782, %v2735, %v2736
  %v2829 = vsel %vm2782, %v2734, %v2735
  %v2830 = vsel %vm2782, %v2733, %v2734
  %v2831 = vsel %vm2782, %v2781, %v2733
  %v2832 = vadd.f32 %v2488, %v2783
  %v2833 = vadd.f32 %v2489, %v2831
  %v2834 = vadd.f32 %v2490, %v2830
  %v2835 = vadd.f32 %v2491, %v2829
  %v2836 = vadd.f32 %v2492, %v2828
  %v2837 = vadd.f32 %v2493, %v2827
  %v2838 = vadd.f32 %v2494, %v2826
  %v2839 = vadd.f32 %v2495, %v2825
  %v2840 = vadd.f32 %v2496, %v2824
  %v2841 = vadd.f32 %v2497, %v2823
  %v2842 = vadd.f32 %v2498, %v2822
  %v2843 = vadd.f32 %v2499, %v2821
  %v2844 = vadd.f32 %v2500, %v2820
  %v2845 = vadd.f32 %v2501, %v2819
  %v2846 = vadd.f32 %v2502, %v2818
  %v2847 = vadd.f32 %v2503, %v2817
  %v2848 = vadd.f32 %v2504, %v2816
  %v2849 = vadd.f32 %v2505, %v2815
  %v2850 = vadd.f32 %v2506, %v2814
  %v2851 = vadd.f32 %v2507, %v2813
  %v2852 = vadd.f32 %v2508, %v2812
  %v2853 = vadd.f32 %v2509, %v2811
  %v2854 = vadd.f32 %v2510, %v2810
  %v2855 = vadd.f32 %v2511, %v2809
  %v2856 = vadd.f32 %v2512, %v2808
  %v2857 = vadd.f32 %v2513, %v2807
  %v2858 = vadd.f32 %v2514, %v2806
  %v2859 = vadd.f32 %v2515, %v2805
  %v2860 = vadd.f32 %v2516, %v2804
  %v2861 = vadd.f32 %v2517, %v2803
  %v2862 = vadd.f32 %v2518, %v2802
  %v2863 = vadd.f32 %v2519, %v2801
  %v2864 = vadd.f32 %v2520, %v2800
  %v2865 = vadd.f32 %v2521, %v2799
  %v2866 = vadd.f32 %v2522, %v2798
  %v2867 = vadd.f32 %v2523, %v2797
  %v2868 = vadd.f32 %v2524, %v2796
  %v2869 = vadd.f32 %v2525, %v2795
  %v2870 = vadd.f32 %v2526, %v2794
  %v2871 = vadd.f32 %v2527, %v2793
  %v2872 = vadd.f32 %v2528, %v2792
  %v2873 = vadd.f32 %v2529, %v2791
  %v2874 = vadd.f32 %v2530, %v2790
  %v2875 = vadd.f32 %v2531, %v2789
  %v2876 = vadd.f32 %v2532, %v2788
  %v2877 = vadd.f32 %v2533, %v2787
  %v2878 = vadd.f32 %v2534, %v2786
  %v2879 = vadd.f32 %v2535, %v2785
  %v2880 = vadd.f32 %v2536, %v2784
  %2881 = vrot.lane.b32.xlu0 %v2240, 64
  %v2882 = vpop.permute.xlu0 %2881
  %2883 = vrot.lane.b32.xlu0 %v2243, 64
  %v2884 = vpop.permute.xlu0 %2883
  %2885 = vrot.lane.b32.xlu0 %v2246, 64
  %v2886 = vpop.permute.xlu0 %2885
  %2887 = vrot.lane.b32.xlu0 %v2249, 64
  %v2888 = vpop.permute.xlu0 %2887
  %2889 = vrot.lane.b32.xlu0 %v2252, 64
  %v2890 = vpop.permute.xlu0 %2889
  %2891 = vrot.lane.b32.xlu0 %v2255, 64
  %v2892 = vpop.permute.xlu0 %2891
  %2893 = vrot.lane.b32.xlu0 %v2258, 64
  %v2894 = vpop.permute.xlu0 %2893
  %2895 = vrot.lane.b32.xlu0 %v2261, 64
  %v2896 = vpop.permute.xlu0 %2895
  %2897 = vrot.lane.b32.xlu0 %v2264, 64
  %v2898 = vpop.permute.xlu0 %2897
  %2899 = vrot.lane.b32.xlu0 %v2267, 64
  %v2900 = vpop.permute.xlu0 %2899
  %2901 = vrot.lane.b32.xlu0 %v2270, 64
  %v2902 = vpop.permute.xlu0 %2901
  %2903 = vrot.lane.b32.xlu0 %v2273, 64
  %v2904 = vpop.permute.xlu0 %2903
  %2905 = vrot.lane.b32.xlu0 %v2276, 64
  %v2906 = vpop.permute.xlu0 %2905
  %2907 = vrot.lane.b32.xlu0 %v2279, 64
  %v2908 = vpop.permute.xlu0 %2907
  %2909 = vrot.lane.b32.xlu0 %v2282, 64
  %v2910 = vpop.permute.xlu0 %2909
  %2911 = vrot.lane.b32.xlu0 %v2285, 64
  %v2912 = vpop.permute.xlu0 %2911
  %2913 = vrot.lane.b32.xlu0 %v2288, 64
  %v2914 = vpop.permute.xlu0 %2913
  %2915 = vrot.lane.b32.xlu0 %v2291, 64
  %v2916 = vpop.permute.xlu0 %2915
  %2917 = vrot.lane.b32.xlu0 %v2294, 64
  %v2918 = vpop.permute.xlu0 %2917
  %2919 = vrot.lane.b32.xlu0 %v2297, 64
  %v2920 = vpop.permute.xlu0 %2919
  %2921 = vrot.lane.b32.xlu0 %v2300, 64
  %v2922 = vpop.permute.xlu0 %2921
  %2923 = vrot.lane.b32.xlu0 %v2303, 64
  %v2924 = vpop.permute.xlu0 %2923
  %2925 = vrot.lane.b32.xlu0 %v2306, 64
  %v2926 = vpop.permute.xlu0 %2925
  %2927 = vrot.lane.b32.xlu0 %v2309, 64
  %v2928 = vpop.permute.xlu0 %2927
  %2929 = vrot.lane.b32.xlu0 %v2312, 64
  %v2930 = vpop.permute.xlu0 %2929
  %2931 = vrot.lane.b32.xlu0 %v2315, 64
  %v2932 = vpop.permute.xlu0 %2931
  %2933 = vrot.lane.b32.xlu0 %v2318, 64
  %v2934 = vpop.permute.xlu0 %2933
  %2935 = vrot.lane.b32.xlu0 %v2321, 64
  %v2936 = vpop.permute.xlu0 %2935
  %2937 = vrot.lane.b32.xlu0 %v2324, 64
  %v2938 = vpop.permute.xlu0 %2937
  %2939 = vrot.lane.b32.xlu0 %v2327, 64
  %v2940 = vpop.permute.xlu0 %2939
  %2941 = vrot.lane.b32.xlu0 %v2330, 64
  %v2942 = vpop.permute.xlu0 %2941
  %2943 = vrot.lane.b32.xlu0 %v2333, 64
  %v2944 = vpop.permute.xlu0 %2943
  %2945 = vrot.lane.b32.xlu0 %v2336, 64
  %v2946 = vpop.permute.xlu0 %2945
  %2947 = vrot.lane.b32.xlu0 %v2339, 64
  %v2948 = vpop.permute.xlu0 %2947
  %2949 = vrot.lane.b32.xlu0 %v2342, 64
  %v2950 = vpop.permute.xlu0 %2949
  %2951 = vrot.lane.b32.xlu0 %v2345, 64
  %v2952 = vpop.permute.xlu0 %2951
  %2953 = vrot.lane.b32.xlu0 %v2348, 64
  %v2954 = vpop.permute.xlu0 %2953
  %2955 = vrot.lane.b32.xlu0 %v2351, 64
  %v2956 = vpop.permute.xlu0 %2955
  %2957 = vrot.lane.b32.xlu0 %v2354, 64
  %v2958 = vpop.permute.xlu0 %2957
  %2959 = vrot.lane.b32.xlu0 %v2357, 64
  %v2960 = vpop.permute.xlu0 %2959
  %2961 = vrot.lane.b32.xlu0 %v2360, 64
  %v2962 = vpop.permute.xlu0 %2961
  %2963 = vrot.lane.b32.xlu0 %v2363, 64
  %v2964 = vpop.permute.xlu0 %2963
  %2965 = vrot.lane.b32.xlu0 %v2366, 64
  %v2966 = vpop.permute.xlu0 %2965
  %2967 = vrot.lane.b32.xlu0 %v2369, 64
  %v2968 = vpop.permute.xlu0 %2967
  %2969 = vrot.lane.b32.xlu0 %v2372, 64
  %v2970 = vpop.permute.xlu0 %2969
  %2971 = vrot.lane.b32.xlu0 %v2375, 64
  %v2972 = vpop.permute.xlu0 %2971
  %2973 = vrot.lane.b32.xlu0 %v2378, 64
  %v2974 = vpop.permute.xlu0 %2973
  %2975 = vrot.lane.b32.xlu0 %v2381, 64
  %v2976 = vpop.permute.xlu0 %2975
  %2977 = vrot.lane.b32.xlu0 %v2384, 64
  %v2978 = vpop.permute.xlu0 %2977
  %v3028 = vrot.slane %v2882, 3
  %v3029 = vrot.slane %v2884, 3
  %v3030 = vrot.slane %v2886, 3
  %v3031 = vrot.slane %v2888, 3
  %v3032 = vrot.slane %v2890, 3
  %v3033 = vrot.slane %v2892, 3
  %v3034 = vrot.slane %v2894, 3
  %v3035 = vrot.slane %v2896, 3
  %v3036 = vrot.slane %v2898, 3
  %v3037 = vrot.slane %v2900, 3
  %v3038 = vrot.slane %v2902, 3
  %v3039 = vrot.slane %v2904, 3
  %v3040 = vrot.slane %v2906, 3
  %v3041 = vrot.slane %v2908, 3
  %v3042 = vrot.slane %v2910, 3
  %v3043 = vrot.slane %v2912, 3
  %v3044 = vrot.slane %v2914, 3
  %v3045 = vrot.slane %v2916, 3
  %v3046 = vrot.slane %v2918, 3
  %v3047 = vrot.slane %v2920, 3
  %v3048 = vrot.slane %v2922, 3
  %v3049 = vrot.slane %v2924, 3
  %v3050 = vrot.slane %v2926, 3
  %v3051 = vrot.slane %v2928, 3
  %v3052 = vrot.slane %v2930, 3
  %v3053 = vrot.slane %v2932, 3
  %v3054 = vrot.slane %v2934, 3
  %v3055 = vrot.slane %v2936, 3
  %v3056 = vrot.slane %v2938, 3
  %v3057 = vrot.slane %v2940, 3
  %v3058 = vrot.slane %v2942, 3
  %v3059 = vrot.slane %v2944, 3
  %v3060 = vrot.slane %v2946, 3
  %v3061 = vrot.slane %v2948, 3
  %v3062 = vrot.slane %v2950, 3
  %v3063 = vrot.slane %v2952, 3
  %v3064 = vrot.slane %v2954, 3
  %v3065 = vrot.slane %v2956, 3
  %v3066 = vrot.slane %v2958, 3
  %v3067 = vrot.slane %v2960, 3
  %v3068 = vrot.slane %v2962, 3
  %v3069 = vrot.slane %v2964, 3
  %v3070 = vrot.slane %v2966, 3
  %v3071 = vrot.slane %v2968, 3
  %v3072 = vrot.slane %v2970, 3
  %v3073 = vrot.slane %v2972, 3
  %v3074 = vrot.slane %v2974, 3
  %v3075 = vrot.slane %v2976, 3
  %v3076 = vrot.slane %v2978, 3
  %vm3077 = vcmp.lt.s32.totalorder %v2437, 5
  %v3078 = vsel %vm3077, %v3075, %v3076
  %v3079 = vsel %vm3077, %v3074, %v3075
  %v3080 = vsel %vm3077, %v3073, %v3074
  %v3081 = vsel %vm3077, %v3072, %v3073
  %v3082 = vsel %vm3077, %v3071, %v3072
  %v3083 = vsel %vm3077, %v3070, %v3071
  %v3084 = vsel %vm3077, %v3069, %v3070
  %v3085 = vsel %vm3077, %v3068, %v3069
  %v3086 = vsel %vm3077, %v3067, %v3068
  %v3087 = vsel %vm3077, %v3066, %v3067
  %v3088 = vsel %vm3077, %v3065, %v3066
  %v3089 = vsel %vm3077, %v3064, %v3065
  %v3090 = vsel %vm3077, %v3063, %v3064
  %v3091 = vsel %vm3077, %v3062, %v3063
  %v3092 = vsel %vm3077, %v3061, %v3062
  %v3093 = vsel %vm3077, %v3060, %v3061
  %v3094 = vsel %vm3077, %v3059, %v3060
  %v3095 = vsel %vm3077, %v3058, %v3059
  %v3096 = vsel %vm3077, %v3057, %v3058
  %v3097 = vsel %vm3077, %v3056, %v3057
  %v3098 = vsel %vm3077, %v3055, %v3056
  %v3099 = vsel %vm3077, %v3054, %v3055
  %v3100 = vsel %vm3077, %v3053, %v3054
  %v3101 = vsel %vm3077, %v3052, %v3053
  %v3102 = vsel %vm3077, %v3051, %v3052
  %v3103 = vsel %vm3077, %v3050, %v3051
  %v3104 = vsel %vm3077, %v3049, %v3050
  %v3105 = vsel %vm3077, %v3048, %v3049
  %v3106 = vsel %vm3077, %v3047, %v3048
  %v3107 = vsel %vm3077, %v3046, %v3047
  %v3108 = vsel %vm3077, %v3045, %v3046
  %v3109 = vsel %vm3077, %v3044, %v3045
  %v3110 = vsel %vm3077, %v3043, %v3044
  %v3111 = vsel %vm3077, %v3042, %v3043
  %v3112 = vsel %vm3077, %v3041, %v3042
  %v3113 = vsel %vm3077, %v3040, %v3041
  %v3114 = vsel %vm3077, %v3039, %v3040
  %v3115 = vsel %vm3077, %v3038, %v3039
  %v3116 = vsel %vm3077, %v3037, %v3038
  %v3117 = vsel %vm3077, %v3036, %v3037
  %v3118 = vsel %vm3077, %v3035, %v3036
  %v3119 = vsel %vm3077, %v3034, %v3035
  %v3120 = vsel %vm3077, %v3033, %v3034
  %v3121 = vsel %vm3077, %v3032, %v3033
  %v3122 = vsel %vm3077, %v3031, %v3032
  %v3123 = vsel %vm3077, %v3030, %v3031
  %v3124 = vsel %vm3077, %v3029, %v3030
  %v3125 = vsel %vm3077, %v3028, %v3029
  %v3126 = vsel %vm3077, %v3076, %v3028
  %v3127 = vadd.f32 %v2832, %v3078
  %v3128 = vadd.f32 %v2833, %v3126
  %v3129 = vadd.f32 %v2834, %v3125
  %v3130 = vadd.f32 %v2835, %v3124
  %v3131 = vadd.f32 %v2836, %v3123
  %v3132 = vadd.f32 %v2837, %v3122
  %v3133 = vadd.f32 %v2838, %v3121
  %v3134 = vadd.f32 %v2839, %v3120
  %v3135 = vadd.f32 %v2840, %v3119
  %v3136 = vadd.f32 %v2841, %v3118
  %v3137 = vadd.f32 %v2842, %v3117
  %v3138 = vadd.f32 %v2843, %v3116
  %v3139 = vadd.f32 %v2844, %v3115
  %v3140 = vadd.f32 %v2845, %v3114
  %v3141 = vadd.f32 %v2846, %v3113
  %v3142 = vadd.f32 %v2847, %v3112
  %v3143 = vadd.f32 %v2848, %v3111
  %v3144 = vadd.f32 %v2849, %v3110
  %v3145 = vadd.f32 %v2850, %v3109
  %v3146 = vadd.f32 %v2851, %v3108
  %v3147 = vadd.f32 %v2852, %v3107
  %v3148 = vadd.f32 %v2853, %v3106
  %v3149 = vadd.f32 %v2854, %v3105
  %v3150 = vadd.f32 %v2855, %v3104
  %v3151 = vadd.f32 %v2856, %v3103
  %v3152 = vadd.f32 %v2857, %v3102
  %v3153 = vadd.f32 %v2858, %v3101
  %v3154 = vadd.f32 %v2859, %v3100
  %v3155 = vadd.f32 %v2860, %v3099
  %v3156 = vadd.f32 %v2861, %v3098
  %v3157 = vadd.f32 %v2862, %v3097
  %v3158 = vadd.f32 %v2863, %v3096
  %v3159 = vadd.f32 %v2864, %v3095
  %v3160 = vadd.f32 %v2865, %v3094
  %v3161 = vadd.f32 %v2866, %v3093
  %v3162 = vadd.f32 %v2867, %v3092
  %v3163 = vadd.f32 %v2868, %v3091
  %v3164 = vadd.f32 %v2869, %v3090
  %v3165 = vadd.f32 %v2870, %v3089
  %v3166 = vadd.f32 %v2871, %v3088
  %v3167 = vadd.f32 %v2872, %v3087
  %v3168 = vadd.f32 %v2873, %v3086
  %v3169 = vadd.f32 %v2874, %v3085
  %v3170 = vadd.f32 %v2875, %v3084
  %v3171 = vadd.f32 %v2876, %v3083
  %v3172 = vadd.f32 %v2877, %v3082
  %v3173 = vadd.f32 %v2878, %v3081
  %v3174 = vadd.f32 %v2879, %v3080
  %v3175 = vadd.f32 %v2880, %v3079
  %3176 = vrot.lane.b32.xlu0 %v2240, 32
  %v3177 = vpop.permute.xlu0 %3176
  %3178 = vrot.lane.b32.xlu0 %v2243, 32
  %v3179 = vpop.permute.xlu0 %3178
  %3180 = vrot.lane.b32.xlu0 %v2246, 32
  %v3181 = vpop.permute.xlu0 %3180
  %3182 = vrot.lane.b32.xlu0 %v2249, 32
  %v3183 = vpop.permute.xlu0 %3182
  %3184 = vrot.lane.b32.xlu0 %v2252, 32
  %v3185 = vpop.permute.xlu0 %3184
  %3186 = vrot.lane.b32.xlu0 %v2255, 32
  %v3187 = vpop.permute.xlu0 %3186
  %3188 = vrot.lane.b32.xlu0 %v2258, 32
  %v3189 = vpop.permute.xlu0 %3188
  %3190 = vrot.lane.b32.xlu0 %v2261, 32
  %v3191 = vpop.permute.xlu0 %3190
  %3192 = vrot.lane.b32.xlu0 %v2264, 32
  %v3193 = vpop.permute.xlu0 %3192
  %3194 = vrot.lane.b32.xlu0 %v2267, 32
  %v3195 = vpop.permute.xlu0 %3194
  %3196 = vrot.lane.b32.xlu0 %v2270, 32
  %v3197 = vpop.permute.xlu0 %3196
  %3198 = vrot.lane.b32.xlu0 %v2273, 32
  %v3199 = vpop.permute.xlu0 %3198
  %3200 = vrot.lane.b32.xlu0 %v2276, 32
  %v3201 = vpop.permute.xlu0 %3200
  %3202 = vrot.lane.b32.xlu0 %v2279, 32
  %v3203 = vpop.permute.xlu0 %3202
  %3204 = vrot.lane.b32.xlu0 %v2282, 32
  %v3205 = vpop.permute.xlu0 %3204
  %3206 = vrot.lane.b32.xlu0 %v2285, 32
  %v3207 = vpop.permute.xlu0 %3206
  %3208 = vrot.lane.b32.xlu0 %v2288, 32
  %v3209 = vpop.permute.xlu0 %3208
  %3210 = vrot.lane.b32.xlu0 %v2291, 32
  %v3211 = vpop.permute.xlu0 %3210
  %3212 = vrot.lane.b32.xlu0 %v2294, 32
  %v3213 = vpop.permute.xlu0 %3212
  %3214 = vrot.lane.b32.xlu0 %v2297, 32
  %v3215 = vpop.permute.xlu0 %3214
  %3216 = vrot.lane.b32.xlu0 %v2300, 32
  %v3217 = vpop.permute.xlu0 %3216
  %3218 = vrot.lane.b32.xlu0 %v2303, 32
  %v3219 = vpop.permute.xlu0 %3218
  %3220 = vrot.lane.b32.xlu0 %v2306, 32
  %v3221 = vpop.permute.xlu0 %3220
  %3222 = vrot.lane.b32.xlu0 %v2309, 32
  %v3223 = vpop.permute.xlu0 %3222
  %3224 = vrot.lane.b32.xlu0 %v2312, 32
  %v3225 = vpop.permute.xlu0 %3224
  %3226 = vrot.lane.b32.xlu0 %v2315, 32
  %v3227 = vpop.permute.xlu0 %3226
  %3228 = vrot.lane.b32.xlu0 %v2318, 32
  %v3229 = vpop.permute.xlu0 %3228
  %3230 = vrot.lane.b32.xlu0 %v2321, 32
  %v3231 = vpop.permute.xlu0 %3230
  %3232 = vrot.lane.b32.xlu0 %v2324, 32
  %v3233 = vpop.permute.xlu0 %3232
  %3234 = vrot.lane.b32.xlu0 %v2327, 32
  %v3235 = vpop.permute.xlu0 %3234
  %3236 = vrot.lane.b32.xlu0 %v2330, 32
  %v3237 = vpop.permute.xlu0 %3236
  %3238 = vrot.lane.b32.xlu0 %v2333, 32
  %v3239 = vpop.permute.xlu0 %3238
  %3240 = vrot.lane.b32.xlu0 %v2336, 32
  %v3241 = vpop.permute.xlu0 %3240
  %3242 = vrot.lane.b32.xlu0 %v2339, 32
  %v3243 = vpop.permute.xlu0 %3242
  %3244 = vrot.lane.b32.xlu0 %v2342, 32
  %v3245 = vpop.permute.xlu0 %3244
  %3246 = vrot.lane.b32.xlu0 %v2345, 32
  %v3247 = vpop.permute.xlu0 %3246
  %3248 = vrot.lane.b32.xlu0 %v2348, 32
  %v3249 = vpop.permute.xlu0 %3248
  %3250 = vrot.lane.b32.xlu0 %v2351, 32
  %v3251 = vpop.permute.xlu0 %3250
  %3252 = vrot.lane.b32.xlu0 %v2354, 32
  %v3253 = vpop.permute.xlu0 %3252
  %3254 = vrot.lane.b32.xlu0 %v2357, 32
  %v3255 = vpop.permute.xlu0 %3254
  %3256 = vrot.lane.b32.xlu0 %v2360, 32
  %v3257 = vpop.permute.xlu0 %3256
  %3258 = vrot.lane.b32.xlu0 %v2363, 32
  %v3259 = vpop.permute.xlu0 %3258
  %3260 = vrot.lane.b32.xlu0 %v2366, 32
  %v3261 = vpop.permute.xlu0 %3260
  %3262 = vrot.lane.b32.xlu0 %v2369, 32
  %v3263 = vpop.permute.xlu0 %3262
  %3264 = vrot.lane.b32.xlu0 %v2372, 32
  %v3265 = vpop.permute.xlu0 %3264
  %3266 = vrot.lane.b32.xlu0 %v2375, 32
  %v3267 = vpop.permute.xlu0 %3266
  %3268 = vrot.lane.b32.xlu0 %v2378, 32
  %v3269 = vpop.permute.xlu0 %3268
  %3270 = vrot.lane.b32.xlu0 %v2381, 32
  %v3271 = vpop.permute.xlu0 %3270
  %3272 = vrot.lane.b32.xlu0 %v2384, 32
  %v3273 = vpop.permute.xlu0 %3272
  %v3323 = vrot.slane %v3177, 7
  %v3324 = vrot.slane %v3179, 7
  %v3325 = vrot.slane %v3181, 7
  %v3326 = vrot.slane %v3183, 7
  %v3327 = vrot.slane %v3185, 7
  %v3328 = vrot.slane %v3187, 7
  %v3329 = vrot.slane %v3189, 7
  %v3330 = vrot.slane %v3191, 7
  %v3331 = vrot.slane %v3193, 7
  %v3332 = vrot.slane %v3195, 7
  %v3333 = vrot.slane %v3197, 7
  %v3334 = vrot.slane %v3199, 7
  %v3335 = vrot.slane %v3201, 7
  %v3336 = vrot.slane %v3203, 7
  %v3337 = vrot.slane %v3205, 7
  %v3338 = vrot.slane %v3207, 7
  %v3339 = vrot.slane %v3209, 7
  %v3340 = vrot.slane %v3211, 7
  %v3341 = vrot.slane %v3213, 7
  %v3342 = vrot.slane %v3215, 7
  %v3343 = vrot.slane %v3217, 7
  %v3344 = vrot.slane %v3219, 7
  %v3345 = vrot.slane %v3221, 7
  %v3346 = vrot.slane %v3223, 7
  %v3347 = vrot.slane %v3225, 7
  %v3348 = vrot.slane %v3227, 7
  %v3349 = vrot.slane %v3229, 7
  %v3350 = vrot.slane %v3231, 7
  %v3351 = vrot.slane %v3233, 7
  %v3352 = vrot.slane %v3235, 7
  %v3353 = vrot.slane %v3237, 7
  %v3354 = vrot.slane %v3239, 7
  %v3355 = vrot.slane %v3241, 7
  %v3356 = vrot.slane %v3243, 7
  %v3357 = vrot.slane %v3245, 7
  %v3358 = vrot.slane %v3247, 7
  %v3359 = vrot.slane %v3249, 7
  %v3360 = vrot.slane %v3251, 7
  %v3361 = vrot.slane %v3253, 7
  %v3362 = vrot.slane %v3255, 7
  %v3363 = vrot.slane %v3257, 7
  %v3364 = vrot.slane %v3259, 7
  %v3365 = vrot.slane %v3261, 7
  %v3366 = vrot.slane %v3263, 7
  %v3367 = vrot.slane %v3265, 7
  %v3368 = vrot.slane %v3267, 7
  %v3369 = vrot.slane %v3269, 7
  %v3370 = vrot.slane %v3271, 7
  %v3371 = vrot.slane %v3273, 7
  %vm3372 = vcmp.lt.s32.totalorder %v2437, 1
  %v3373 = vsel %vm3372, %v3370, %v3371
  %v3374 = vsel %vm3372, %v3369, %v3370
  %v3375 = vsel %vm3372, %v3368, %v3369
  %v3376 = vsel %vm3372, %v3367, %v3368
  %v3377 = vsel %vm3372, %v3366, %v3367
  %v3378 = vsel %vm3372, %v3365, %v3366
  %v3379 = vsel %vm3372, %v3364, %v3365
  %v3380 = vsel %vm3372, %v3363, %v3364
  %v3381 = vsel %vm3372, %v3362, %v3363
  %v3382 = vsel %vm3372, %v3361, %v3362
  %v3383 = vsel %vm3372, %v3360, %v3361
  %v3384 = vsel %vm3372, %v3359, %v3360
  %v3385 = vsel %vm3372, %v3358, %v3359
  %v3386 = vsel %vm3372, %v3357, %v3358
  %v3387 = vsel %vm3372, %v3356, %v3357
  %v3388 = vsel %vm3372, %v3355, %v3356
  %v3389 = vsel %vm3372, %v3354, %v3355
  %v3390 = vsel %vm3372, %v3353, %v3354
  %v3391 = vsel %vm3372, %v3352, %v3353
  %v3392 = vsel %vm3372, %v3351, %v3352
  %v3393 = vsel %vm3372, %v3350, %v3351
  %v3394 = vsel %vm3372, %v3349, %v3350
  %v3395 = vsel %vm3372, %v3348, %v3349
  %v3396 = vsel %vm3372, %v3347, %v3348
  %v3397 = vsel %vm3372, %v3346, %v3347
  %v3398 = vsel %vm3372, %v3345, %v3346
  %v3399 = vsel %vm3372, %v3344, %v3345
  %v3400 = vsel %vm3372, %v3343, %v3344
  %v3401 = vsel %vm3372, %v3342, %v3343
  %v3402 = vsel %vm3372, %v3341, %v3342
  %v3403 = vsel %vm3372, %v3340, %v3341
  %v3404 = vsel %vm3372, %v3339, %v3340
  %v3405 = vsel %vm3372, %v3338, %v3339
  %v3406 = vsel %vm3372, %v3337, %v3338
  %v3407 = vsel %vm3372, %v3336, %v3337
  %v3408 = vsel %vm3372, %v3335, %v3336
  %v3409 = vsel %vm3372, %v3334, %v3335
  %v3410 = vsel %vm3372, %v3333, %v3334
  %v3411 = vsel %vm3372, %v3332, %v3333
  %v3412 = vsel %vm3372, %v3331, %v3332
  %v3413 = vsel %vm3372, %v3330, %v3331
  %v3414 = vsel %vm3372, %v3329, %v3330
  %v3415 = vsel %vm3372, %v3328, %v3329
  %v3416 = vsel %vm3372, %v3327, %v3328
  %v3417 = vsel %vm3372, %v3326, %v3327
  %v3418 = vsel %vm3372, %v3325, %v3326
  %v3419 = vsel %vm3372, %v3324, %v3325
  %v3420 = vsel %vm3372, %v3323, %v3324
  %v3421 = vsel %vm3372, %v3371, %v3323
  %v3422 = vadd.f32 %v3127, %v3421
  %v3423 = vadd.f32 %v3128, %v3420
  %v3424 = vadd.f32 %v3129, %v3419
  %v3425 = vadd.f32 %v3130, %v3418
  %v3426 = vadd.f32 %v3131, %v3417
  %v3427 = vadd.f32 %v3132, %v3416
  %v3428 = vadd.f32 %v3133, %v3415
  %v3429 = vadd.f32 %v3134, %v3414
  %v3430 = vadd.f32 %v3135, %v3413
  %v3431 = vadd.f32 %v3136, %v3412
  %v3432 = vadd.f32 %v3137, %v3411
  %v3433 = vadd.f32 %v3138, %v3410
  %v3434 = vadd.f32 %v3139, %v3409
  %v3435 = vadd.f32 %v3140, %v3408
  %v3436 = vadd.f32 %v3141, %v3407
  %v3437 = vadd.f32 %v3142, %v3406
  %v3438 = vadd.f32 %v3143, %v3405
  %v3439 = vadd.f32 %v3144, %v3404
  %v3440 = vadd.f32 %v3145, %v3403
  %v3441 = vadd.f32 %v3146, %v3402
  %v3442 = vadd.f32 %v3147, %v3401
  %v3443 = vadd.f32 %v3148, %v3400
  %v3444 = vadd.f32 %v3149, %v3399
  %v3445 = vadd.f32 %v3150, %v3398
  %v3446 = vadd.f32 %v3151, %v3397
  %v3447 = vadd.f32 %v3152, %v3396
  %v3448 = vadd.f32 %v3153, %v3395
  %v3449 = vadd.f32 %v3154, %v3394
  %v3450 = vadd.f32 %v3155, %v3393
  %v3451 = vadd.f32 %v3156, %v3392
  %v3452 = vadd.f32 %v3157, %v3391
  %v3453 = vadd.f32 %v3158, %v3390
  %v3454 = vadd.f32 %v3159, %v3389
  %v3455 = vadd.f32 %v3160, %v3388
  %v3456 = vadd.f32 %v3161, %v3387
  %v3457 = vadd.f32 %v3162, %v3386
  %v3458 = vadd.f32 %v3163, %v3385
  %v3459 = vadd.f32 %v3164, %v3384
  %v3460 = vadd.f32 %v3165, %v3383
  %v3461 = vadd.f32 %v3166, %v3382
  %v3462 = vadd.f32 %v3167, %v3381
  %v3463 = vadd.f32 %v3168, %v3380
  %v3464 = vadd.f32 %v3169, %v3379
  %v3465 = vadd.f32 %v3170, %v3378
  %v3466 = vadd.f32 %v3171, %v3377
  %v3467 = vadd.f32 %v3172, %v3376
  %v3468 = vadd.f32 %v3173, %v3375
  %v3469 = vadd.f32 %v3174, %v3374
  %v3470 = vadd.f32 %v3175, %v3373
  %3520 = vrot.lane.b32.xlu0 %v2241, 96
  %v3521 = vpop.permute.xlu0 %3520
  %3522 = vrot.lane.b32.xlu0 %v2244, 96
  %v3523 = vpop.permute.xlu0 %3522
  %3524 = vrot.lane.b32.xlu0 %v2247, 96
  %v3525 = vpop.permute.xlu0 %3524
  %3526 = vrot.lane.b32.xlu0 %v2250, 96
  %v3527 = vpop.permute.xlu0 %3526
  %3528 = vrot.lane.b32.xlu0 %v2253, 96
  %v3529 = vpop.permute.xlu0 %3528
  %3530 = vrot.lane.b32.xlu0 %v2256, 96
  %v3531 = vpop.permute.xlu0 %3530
  %3532 = vrot.lane.b32.xlu0 %v2259, 96
  %v3533 = vpop.permute.xlu0 %3532
  %3534 = vrot.lane.b32.xlu0 %v2262, 96
  %v3535 = vpop.permute.xlu0 %3534
  %3536 = vrot.lane.b32.xlu0 %v2265, 96
  %v3537 = vpop.permute.xlu0 %3536
  %3538 = vrot.lane.b32.xlu0 %v2268, 96
  %v3539 = vpop.permute.xlu0 %3538
  %3540 = vrot.lane.b32.xlu0 %v2271, 96
  %v3541 = vpop.permute.xlu0 %3540
  %3542 = vrot.lane.b32.xlu0 %v2274, 96
  %v3543 = vpop.permute.xlu0 %3542
  %3544 = vrot.lane.b32.xlu0 %v2277, 96
  %v3545 = vpop.permute.xlu0 %3544
  %3546 = vrot.lane.b32.xlu0 %v2280, 96
  %v3547 = vpop.permute.xlu0 %3546
  %3548 = vrot.lane.b32.xlu0 %v2283, 96
  %v3549 = vpop.permute.xlu0 %3548
  %3550 = vrot.lane.b32.xlu0 %v2286, 96
  %v3551 = vpop.permute.xlu0 %3550
  %3552 = vrot.lane.b32.xlu0 %v2289, 96
  %v3553 = vpop.permute.xlu0 %3552
  %3554 = vrot.lane.b32.xlu0 %v2292, 96
  %v3555 = vpop.permute.xlu0 %3554
  %3556 = vrot.lane.b32.xlu0 %v2295, 96
  %v3557 = vpop.permute.xlu0 %3556
  %3558 = vrot.lane.b32.xlu0 %v2298, 96
  %v3559 = vpop.permute.xlu0 %3558
  %3560 = vrot.lane.b32.xlu0 %v2301, 96
  %v3561 = vpop.permute.xlu0 %3560
  %3562 = vrot.lane.b32.xlu0 %v2304, 96
  %v3563 = vpop.permute.xlu0 %3562
  %3564 = vrot.lane.b32.xlu0 %v2307, 96
  %v3565 = vpop.permute.xlu0 %3564
  %3566 = vrot.lane.b32.xlu0 %v2310, 96
  %v3567 = vpop.permute.xlu0 %3566
  %3568 = vrot.lane.b32.xlu0 %v2313, 96
  %v3569 = vpop.permute.xlu0 %3568
  %3570 = vrot.lane.b32.xlu0 %v2316, 96
  %v3571 = vpop.permute.xlu0 %3570
  %3572 = vrot.lane.b32.xlu0 %v2319, 96
  %v3573 = vpop.permute.xlu0 %3572
  %3574 = vrot.lane.b32.xlu0 %v2322, 96
  %v3575 = vpop.permute.xlu0 %3574
  %3576 = vrot.lane.b32.xlu0 %v2325, 96
  %v3577 = vpop.permute.xlu0 %3576
  %3578 = vrot.lane.b32.xlu0 %v2328, 96
  %v3579 = vpop.permute.xlu0 %3578
  %3580 = vrot.lane.b32.xlu0 %v2331, 96
  %v3581 = vpop.permute.xlu0 %3580
  %3582 = vrot.lane.b32.xlu0 %v2334, 96
  %v3583 = vpop.permute.xlu0 %3582
  %3584 = vrot.lane.b32.xlu0 %v2337, 96
  %v3585 = vpop.permute.xlu0 %3584
  %3586 = vrot.lane.b32.xlu0 %v2340, 96
  %v3587 = vpop.permute.xlu0 %3586
  %3588 = vrot.lane.b32.xlu0 %v2343, 96
  %v3589 = vpop.permute.xlu0 %3588
  %3590 = vrot.lane.b32.xlu0 %v2346, 96
  %v3591 = vpop.permute.xlu0 %3590
  %3592 = vrot.lane.b32.xlu0 %v2349, 96
  %v3593 = vpop.permute.xlu0 %3592
  %3594 = vrot.lane.b32.xlu0 %v2352, 96
  %v3595 = vpop.permute.xlu0 %3594
  %3596 = vrot.lane.b32.xlu0 %v2355, 96
  %v3597 = vpop.permute.xlu0 %3596
  %3598 = vrot.lane.b32.xlu0 %v2358, 96
  %v3599 = vpop.permute.xlu0 %3598
  %3600 = vrot.lane.b32.xlu0 %v2361, 96
  %v3601 = vpop.permute.xlu0 %3600
  %3602 = vrot.lane.b32.xlu0 %v2364, 96
  %v3603 = vpop.permute.xlu0 %3602
  %3604 = vrot.lane.b32.xlu0 %v2367, 96
  %v3605 = vpop.permute.xlu0 %3604
  %3606 = vrot.lane.b32.xlu0 %v2370, 96
  %v3607 = vpop.permute.xlu0 %3606
  %3608 = vrot.lane.b32.xlu0 %v2373, 96
  %v3609 = vpop.permute.xlu0 %3608
  %3610 = vrot.lane.b32.xlu0 %v2376, 96
  %v3611 = vpop.permute.xlu0 %3610
  %3612 = vrot.lane.b32.xlu0 %v2379, 96
  %v3613 = vpop.permute.xlu0 %3612
  %3614 = vrot.lane.b32.xlu0 %v2382, 96
  %v3615 = vpop.permute.xlu0 %3614
  %3616 = vrot.lane.b32.xlu0 %v2385, 96
  %v3617 = vpop.permute.xlu0 %3616
  %v3667 = vrot.slane %v3521, 1
  %v3668 = vrot.slane %v3523, 1
  %v3669 = vrot.slane %v3525, 1
  %v3670 = vrot.slane %v3527, 1
  %v3671 = vrot.slane %v3529, 1
  %v3672 = vrot.slane %v3531, 1
  %v3673 = vrot.slane %v3533, 1
  %v3674 = vrot.slane %v3535, 1
  %v3675 = vrot.slane %v3537, 1
  %v3676 = vrot.slane %v3539, 1
  %v3677 = vrot.slane %v3541, 1
  %v3678 = vrot.slane %v3543, 1
  %v3679 = vrot.slane %v3545, 1
  %v3680 = vrot.slane %v3547, 1
  %v3681 = vrot.slane %v3549, 1
  %v3682 = vrot.slane %v3551, 1
  %v3683 = vrot.slane %v3553, 1
  %v3684 = vrot.slane %v3555, 1
  %v3685 = vrot.slane %v3557, 1
  %v3686 = vrot.slane %v3559, 1
  %v3687 = vrot.slane %v3561, 1
  %v3688 = vrot.slane %v3563, 1
  %v3689 = vrot.slane %v3565, 1
  %v3690 = vrot.slane %v3567, 1
  %v3691 = vrot.slane %v3569, 1
  %v3692 = vrot.slane %v3571, 1
  %v3693 = vrot.slane %v3573, 1
  %v3694 = vrot.slane %v3575, 1
  %v3695 = vrot.slane %v3577, 1
  %v3696 = vrot.slane %v3579, 1
  %v3697 = vrot.slane %v3581, 1
  %v3698 = vrot.slane %v3583, 1
  %v3699 = vrot.slane %v3585, 1
  %v3700 = vrot.slane %v3587, 1
  %v3701 = vrot.slane %v3589, 1
  %v3702 = vrot.slane %v3591, 1
  %v3703 = vrot.slane %v3593, 1
  %v3704 = vrot.slane %v3595, 1
  %v3705 = vrot.slane %v3597, 1
  %v3706 = vrot.slane %v3599, 1
  %v3707 = vrot.slane %v3601, 1
  %v3708 = vrot.slane %v3603, 1
  %v3709 = vrot.slane %v3605, 1
  %v3710 = vrot.slane %v3607, 1
  %v3711 = vrot.slane %v3609, 1
  %v3712 = vrot.slane %v3611, 1
  %v3713 = vrot.slane %v3613, 1
  %v3714 = vrot.slane %v3615, 1
  %v3715 = vrot.slane %v3617, 1
  %v3716 = vsel %vm2438, %v3714, %v3715
  %v3717 = vsel %vm2438, %v3713, %v3714
  %v3718 = vsel %vm2438, %v3712, %v3713
  %v3719 = vsel %vm2438, %v3711, %v3712
  %v3720 = vsel %vm2438, %v3710, %v3711
  %v3721 = vsel %vm2438, %v3709, %v3710
  %v3722 = vsel %vm2438, %v3708, %v3709
  %v3723 = vsel %vm2438, %v3707, %v3708
  %v3724 = vsel %vm2438, %v3706, %v3707
  %v3725 = vsel %vm2438, %v3705, %v3706
  %v3726 = vsel %vm2438, %v3704, %v3705
  %v3727 = vsel %vm2438, %v3703, %v3704
  %v3728 = vsel %vm2438, %v3702, %v3703
  %v3729 = vsel %vm2438, %v3701, %v3702
  %v3730 = vsel %vm2438, %v3700, %v3701
  %v3731 = vsel %vm2438, %v3699, %v3700
  %v3732 = vsel %vm2438, %v3698, %v3699
  %v3733 = vsel %vm2438, %v3697, %v3698
  %v3734 = vsel %vm2438, %v3696, %v3697
  %v3735 = vsel %vm2438, %v3695, %v3696
  %v3736 = vsel %vm2438, %v3694, %v3695
  %v3737 = vsel %vm2438, %v3693, %v3694
  %v3738 = vsel %vm2438, %v3692, %v3693
  %v3739 = vsel %vm2438, %v3691, %v3692
  %v3740 = vsel %vm2438, %v3690, %v3691
  %v3741 = vsel %vm2438, %v3689, %v3690
  %v3742 = vsel %vm2438, %v3688, %v3689
  %v3743 = vsel %vm2438, %v3687, %v3688
  %v3744 = vsel %vm2438, %v3686, %v3687
  %v3745 = vsel %vm2438, %v3685, %v3686
  %v3746 = vsel %vm2438, %v3684, %v3685
  %v3747 = vsel %vm2438, %v3683, %v3684
  %v3748 = vsel %vm2438, %v3682, %v3683
  %v3749 = vsel %vm2438, %v3681, %v3682
  %v3750 = vsel %vm2438, %v3680, %v3681
  %v3751 = vsel %vm2438, %v3679, %v3680
  %v3752 = vsel %vm2438, %v3678, %v3679
  %v3753 = vsel %vm2438, %v3677, %v3678
  %v3754 = vsel %vm2438, %v3676, %v3677
  %v3755 = vsel %vm2438, %v3675, %v3676
  %v3756 = vsel %vm2438, %v3674, %v3675
  %v3757 = vsel %vm2438, %v3673, %v3674
  %v3758 = vsel %vm2438, %v3672, %v3673
  %v3759 = vsel %vm2438, %v3671, %v3672
  %v3760 = vsel %vm2438, %v3670, %v3671
  %v3761 = vsel %vm2438, %v3669, %v3670
  %v3762 = vsel %vm2438, %v3668, %v3669
  %v3763 = vsel %vm2438, %v3667, %v3668
  %v3764 = vsel %vm2438, %v3715, %v3667
  %v3765 = vadd.f32 %v3422, %v3763
  %v3766 = vadd.f32 %v3423, %v3762
  %v3767 = vadd.f32 %v3424, %v3761
  %v3768 = vadd.f32 %v3425, %v3760
  %v3769 = vadd.f32 %v3426, %v3759
  %v3770 = vadd.f32 %v3427, %v3758
  %v3771 = vadd.f32 %v3428, %v3757
  %v3772 = vadd.f32 %v3429, %v3756
  %v3773 = vadd.f32 %v3430, %v3755
  %v3774 = vadd.f32 %v3431, %v3754
  %v3775 = vadd.f32 %v3432, %v3753
  %v3776 = vadd.f32 %v3433, %v3752
  %v3777 = vadd.f32 %v3434, %v3751
  %v3778 = vadd.f32 %v3435, %v3750
  %v3779 = vadd.f32 %v3436, %v3749
  %v3780 = vadd.f32 %v3437, %v3748
  %v3781 = vadd.f32 %v3438, %v3747
  %v3782 = vadd.f32 %v3439, %v3746
  %v3783 = vadd.f32 %v3440, %v3745
  %v3784 = vadd.f32 %v3441, %v3744
  %v3785 = vadd.f32 %v3442, %v3743
  %v3786 = vadd.f32 %v3443, %v3742
  %v3787 = vadd.f32 %v3444, %v3741
  %v3788 = vadd.f32 %v3445, %v3740
  %v3789 = vadd.f32 %v3446, %v3739
  %v3790 = vadd.f32 %v3447, %v3738
  %v3791 = vadd.f32 %v3448, %v3737
  %v3792 = vadd.f32 %v3449, %v3736
  %v3793 = vadd.f32 %v3450, %v3735
  %v3794 = vadd.f32 %v3451, %v3734
  %v3795 = vadd.f32 %v3452, %v3733
  %v3796 = vadd.f32 %v3453, %v3732
  %v3797 = vadd.f32 %v3454, %v3731
  %v3798 = vadd.f32 %v3455, %v3730
  %v3799 = vadd.f32 %v3456, %v3729
  %v3800 = vadd.f32 %v3457, %v3728
  %v3801 = vadd.f32 %v3458, %v3727
  %v3802 = vadd.f32 %v3459, %v3726
  %v3803 = vadd.f32 %v3460, %v3725
  %v3804 = vadd.f32 %v3461, %v3724
  %v3805 = vadd.f32 %v3462, %v3723
  %v3806 = vadd.f32 %v3463, %v3722
  %v3807 = vadd.f32 %v3464, %v3721
  %v3808 = vadd.f32 %v3465, %v3720
  %v3809 = vadd.f32 %v3466, %v3719
  %v3810 = vadd.f32 %v3467, %v3718
  %v3811 = vadd.f32 %v3468, %v3717
  %v3812 = vadd.f32 %v3469, %v3716
  %v3813 = vadd.f32 %v3470, %v3764
  %3814 = vrot.lane.b32.xlu0 %v2241, 64
  %v3815 = vpop.permute.xlu0 %3814
  %3816 = vrot.lane.b32.xlu0 %v2244, 64
  %v3817 = vpop.permute.xlu0 %3816
  %3818 = vrot.lane.b32.xlu0 %v2247, 64
  %v3819 = vpop.permute.xlu0 %3818
  %3820 = vrot.lane.b32.xlu0 %v2250, 64
  %v3821 = vpop.permute.xlu0 %3820
  %3822 = vrot.lane.b32.xlu0 %v2253, 64
  %v3823 = vpop.permute.xlu0 %3822
  %3824 = vrot.lane.b32.xlu0 %v2256, 64
  %v3825 = vpop.permute.xlu0 %3824
  %3826 = vrot.lane.b32.xlu0 %v2259, 64
  %v3827 = vpop.permute.xlu0 %3826
  %3828 = vrot.lane.b32.xlu0 %v2262, 64
  %v3829 = vpop.permute.xlu0 %3828
  %3830 = vrot.lane.b32.xlu0 %v2265, 64
  %v3831 = vpop.permute.xlu0 %3830
  %3832 = vrot.lane.b32.xlu0 %v2268, 64
  %v3833 = vpop.permute.xlu0 %3832
  %3834 = vrot.lane.b32.xlu0 %v2271, 64
  %v3835 = vpop.permute.xlu0 %3834
  %3836 = vrot.lane.b32.xlu0 %v2274, 64
  %v3837 = vpop.permute.xlu0 %3836
  %3838 = vrot.lane.b32.xlu0 %v2277, 64
  %v3839 = vpop.permute.xlu0 %3838
  %3840 = vrot.lane.b32.xlu0 %v2280, 64
  %v3841 = vpop.permute.xlu0 %3840
  %3842 = vrot.lane.b32.xlu0 %v2283, 64
  %v3843 = vpop.permute.xlu0 %3842
  %3844 = vrot.lane.b32.xlu0 %v2286, 64
  %v3845 = vpop.permute.xlu0 %3844
  %3846 = vrot.lane.b32.xlu0 %v2289, 64
  %v3847 = vpop.permute.xlu0 %3846
  %3848 = vrot.lane.b32.xlu0 %v2292, 64
  %v3849 = vpop.permute.xlu0 %3848
  %3850 = vrot.lane.b32.xlu0 %v2295, 64
  %v3851 = vpop.permute.xlu0 %3850
  %3852 = vrot.lane.b32.xlu0 %v2298, 64
  %v3853 = vpop.permute.xlu0 %3852
  %3854 = vrot.lane.b32.xlu0 %v2301, 64
  %v3855 = vpop.permute.xlu0 %3854
  %3856 = vrot.lane.b32.xlu0 %v2304, 64
  %v3857 = vpop.permute.xlu0 %3856
  %3858 = vrot.lane.b32.xlu0 %v2307, 64
  %v3859 = vpop.permute.xlu0 %3858
  %3860 = vrot.lane.b32.xlu0 %v2310, 64
  %v3861 = vpop.permute.xlu0 %3860
  %3862 = vrot.lane.b32.xlu0 %v2313, 64
  %v3863 = vpop.permute.xlu0 %3862
  %3864 = vrot.lane.b32.xlu0 %v2316, 64
  %v3865 = vpop.permute.xlu0 %3864
  %3866 = vrot.lane.b32.xlu0 %v2319, 64
  %v3867 = vpop.permute.xlu0 %3866
  %3868 = vrot.lane.b32.xlu0 %v2322, 64
  %v3869 = vpop.permute.xlu0 %3868
  %3870 = vrot.lane.b32.xlu0 %v2325, 64
  %v3871 = vpop.permute.xlu0 %3870
  %3872 = vrot.lane.b32.xlu0 %v2328, 64
  %v3873 = vpop.permute.xlu0 %3872
  %3874 = vrot.lane.b32.xlu0 %v2331, 64
  %v3875 = vpop.permute.xlu0 %3874
  %3876 = vrot.lane.b32.xlu0 %v2334, 64
  %v3877 = vpop.permute.xlu0 %3876
  %3878 = vrot.lane.b32.xlu0 %v2337, 64
  %v3879 = vpop.permute.xlu0 %3878
  %3880 = vrot.lane.b32.xlu0 %v2340, 64
  %v3881 = vpop.permute.xlu0 %3880
  %3882 = vrot.lane.b32.xlu0 %v2343, 64
  %v3883 = vpop.permute.xlu0 %3882
  %3884 = vrot.lane.b32.xlu0 %v2346, 64
  %v3885 = vpop.permute.xlu0 %3884
  %3886 = vrot.lane.b32.xlu0 %v2349, 64
  %v3887 = vpop.permute.xlu0 %3886
  %3888 = vrot.lane.b32.xlu0 %v2352, 64
  %v3889 = vpop.permute.xlu0 %3888
  %3890 = vrot.lane.b32.xlu0 %v2355, 64
  %v3891 = vpop.permute.xlu0 %3890
  %3892 = vrot.lane.b32.xlu0 %v2358, 64
  %v3893 = vpop.permute.xlu0 %3892
  %3894 = vrot.lane.b32.xlu0 %v2361, 64
  %v3895 = vpop.permute.xlu0 %3894
  %3896 = vrot.lane.b32.xlu0 %v2364, 64
  %v3897 = vpop.permute.xlu0 %3896
  %3898 = vrot.lane.b32.xlu0 %v2367, 64
  %v3899 = vpop.permute.xlu0 %3898
  %3900 = vrot.lane.b32.xlu0 %v2370, 64
  %v3901 = vpop.permute.xlu0 %3900
  %3902 = vrot.lane.b32.xlu0 %v2373, 64
  %v3903 = vpop.permute.xlu0 %3902
  %3904 = vrot.lane.b32.xlu0 %v2376, 64
  %v3905 = vpop.permute.xlu0 %3904
  %3906 = vrot.lane.b32.xlu0 %v2379, 64
  %v3907 = vpop.permute.xlu0 %3906
  %3908 = vrot.lane.b32.xlu0 %v2382, 64
  %v3909 = vpop.permute.xlu0 %3908
  %3910 = vrot.lane.b32.xlu0 %v2385, 64
  %v3911 = vpop.permute.xlu0 %3910
  %v3961 = vrot.slane %v3815, 5
  %v3962 = vrot.slane %v3817, 5
  %v3963 = vrot.slane %v3819, 5
  %v3964 = vrot.slane %v3821, 5
  %v3965 = vrot.slane %v3823, 5
  %v3966 = vrot.slane %v3825, 5
  %v3967 = vrot.slane %v3827, 5
  %v3968 = vrot.slane %v3829, 5
  %v3969 = vrot.slane %v3831, 5
  %v3970 = vrot.slane %v3833, 5
  %v3971 = vrot.slane %v3835, 5
  %v3972 = vrot.slane %v3837, 5
  %v3973 = vrot.slane %v3839, 5
  %v3974 = vrot.slane %v3841, 5
  %v3975 = vrot.slane %v3843, 5
  %v3976 = vrot.slane %v3845, 5
  %v3977 = vrot.slane %v3847, 5
  %v3978 = vrot.slane %v3849, 5
  %v3979 = vrot.slane %v3851, 5
  %v3980 = vrot.slane %v3853, 5
  %v3981 = vrot.slane %v3855, 5
  %v3982 = vrot.slane %v3857, 5
  %v3983 = vrot.slane %v3859, 5
  %v3984 = vrot.slane %v3861, 5
  %v3985 = vrot.slane %v3863, 5
  %v3986 = vrot.slane %v3865, 5
  %v3987 = vrot.slane %v3867, 5
  %v3988 = vrot.slane %v3869, 5
  %v3989 = vrot.slane %v3871, 5
  %v3990 = vrot.slane %v3873, 5
  %v3991 = vrot.slane %v3875, 5
  %v3992 = vrot.slane %v3877, 5
  %v3993 = vrot.slane %v3879, 5
  %v3994 = vrot.slane %v3881, 5
  %v3995 = vrot.slane %v3883, 5
  %v3996 = vrot.slane %v3885, 5
  %v3997 = vrot.slane %v3887, 5
  %v3998 = vrot.slane %v3889, 5
  %v3999 = vrot.slane %v3891, 5
  %v4000 = vrot.slane %v3893, 5
  %v4001 = vrot.slane %v3895, 5
  %v4002 = vrot.slane %v3897, 5
  %v4003 = vrot.slane %v3899, 5
  %v4004 = vrot.slane %v3901, 5
  %v4005 = vrot.slane %v3903, 5
  %v4006 = vrot.slane %v3905, 5
  %v4007 = vrot.slane %v3907, 5
  %v4008 = vrot.slane %v3909, 5
  %v4009 = vrot.slane %v3911, 5
  %vm4010 = vcmp.lt.s32.totalorder %v2437, 3
  %v4011 = vsel %vm4010, %v4008, %v4009
  %v4012 = vsel %vm4010, %v4007, %v4008
  %v4013 = vsel %vm4010, %v4006, %v4007
  %v4014 = vsel %vm4010, %v4005, %v4006
  %v4015 = vsel %vm4010, %v4004, %v4005
  %v4016 = vsel %vm4010, %v4003, %v4004
  %v4017 = vsel %vm4010, %v4002, %v4003
  %v4018 = vsel %vm4010, %v4001, %v4002
  %v4019 = vsel %vm4010, %v4000, %v4001
  %v4020 = vsel %vm4010, %v3999, %v4000
  %v4021 = vsel %vm4010, %v3998, %v3999
  %v4022 = vsel %vm4010, %v3997, %v3998
  %v4023 = vsel %vm4010, %v3996, %v3997
  %v4024 = vsel %vm4010, %v3995, %v3996
  %v4025 = vsel %vm4010, %v3994, %v3995
  %v4026 = vsel %vm4010, %v3993, %v3994
  %v4027 = vsel %vm4010, %v3992, %v3993
  %v4028 = vsel %vm4010, %v3991, %v3992
  %v4029 = vsel %vm4010, %v3990, %v3991
  %v4030 = vsel %vm4010, %v3989, %v3990
  %v4031 = vsel %vm4010, %v3988, %v3989
  %v4032 = vsel %vm4010, %v3987, %v3988
  %v4033 = vsel %vm4010, %v3986, %v3987
  %v4034 = vsel %vm4010, %v3985, %v3986
  %v4035 = vsel %vm4010, %v3984, %v3985
  %v4036 = vsel %vm4010, %v3983, %v3984
  %v4037 = vsel %vm4010, %v3982, %v3983
  %v4038 = vsel %vm4010, %v3981, %v3982
  %v4039 = vsel %vm4010, %v3980, %v3981
  %v4040 = vsel %vm4010, %v3979, %v3980
  %v4041 = vsel %vm4010, %v3978, %v3979
  %v4042 = vsel %vm4010, %v3977, %v3978
  %v4043 = vsel %vm4010, %v3976, %v3977
  %v4044 = vsel %vm4010, %v3975, %v3976
  %v4045 = vsel %vm4010, %v3974, %v3975
  %v4046 = vsel %vm4010, %v3973, %v3974
  %v4047 = vsel %vm4010, %v3972, %v3973
  %v4048 = vsel %vm4010, %v3971, %v3972
  %v4049 = vsel %vm4010, %v3970, %v3971
  %v4050 = vsel %vm4010, %v3969, %v3970
  %v4051 = vsel %vm4010, %v3968, %v3969
  %v4052 = vsel %vm4010, %v3967, %v3968
  %v4053 = vsel %vm4010, %v3966, %v3967
  %v4054 = vsel %vm4010, %v3965, %v3966
  %v4055 = vsel %vm4010, %v3964, %v3965
  %v4056 = vsel %vm4010, %v3963, %v3964
  %v4057 = vsel %vm4010, %v3962, %v3963
  %v4058 = vsel %vm4010, %v3961, %v3962
  %v4059 = vsel %vm4010, %v4009, %v3961
  %v4060 = vadd.f32 %v3765, %v4057
  %v4061 = vadd.f32 %v3766, %v4056
  %v4062 = vadd.f32 %v3767, %v4055
  %v4063 = vadd.f32 %v3768, %v4054
  %v4064 = vadd.f32 %v3769, %v4053
  %v4065 = vadd.f32 %v3770, %v4052
  %v4066 = vadd.f32 %v3771, %v4051
  %v4067 = vadd.f32 %v3772, %v4050
  %v4068 = vadd.f32 %v3773, %v4049
  %v4069 = vadd.f32 %v3774, %v4048
  %v4070 = vadd.f32 %v3775, %v4047
  %v4071 = vadd.f32 %v3776, %v4046
  %v4072 = vadd.f32 %v3777, %v4045
  %v4073 = vadd.f32 %v3778, %v4044
  %v4074 = vadd.f32 %v3779, %v4043
  %v4075 = vadd.f32 %v3780, %v4042
  %v4076 = vadd.f32 %v3781, %v4041
  %v4077 = vadd.f32 %v3782, %v4040
  %v4078 = vadd.f32 %v3783, %v4039
  %v4079 = vadd.f32 %v3784, %v4038
  %v4080 = vadd.f32 %v3785, %v4037
  %v4081 = vadd.f32 %v3786, %v4036
  %v4082 = vadd.f32 %v3787, %v4035
  %v4083 = vadd.f32 %v3788, %v4034
  %v4084 = vadd.f32 %v3789, %v4033
  %v4085 = vadd.f32 %v3790, %v4032
  %v4086 = vadd.f32 %v3791, %v4031
  %v4087 = vadd.f32 %v3792, %v4030
  %v4088 = vadd.f32 %v3793, %v4029
  %v4089 = vadd.f32 %v3794, %v4028
  %v4090 = vadd.f32 %v3795, %v4027
  %v4091 = vadd.f32 %v3796, %v4026
  %v4092 = vadd.f32 %v3797, %v4025
  %v4093 = vadd.f32 %v3798, %v4024
  %v4094 = vadd.f32 %v3799, %v4023
  %v4095 = vadd.f32 %v3800, %v4022
  %v4096 = vadd.f32 %v3801, %v4021
  %v4097 = vadd.f32 %v3802, %v4020
  %v4098 = vadd.f32 %v3803, %v4019
  %v4099 = vadd.f32 %v3804, %v4018
  %v4100 = vadd.f32 %v3805, %v4017
  %v4101 = vadd.f32 %v3806, %v4016
  %v4102 = vadd.f32 %v3807, %v4015
  %v4103 = vadd.f32 %v3808, %v4014
  %v4104 = vadd.f32 %v3809, %v4013
  %v4105 = vadd.f32 %v3810, %v4012
  %v4106 = vadd.f32 %v3811, %v4011
  %v4107 = vadd.f32 %v3812, %v4059
  %v4108 = vadd.f32 %v3813, %v4058
  %4109 = vrot.lane.b32.xlu0 %v2241, 32
  %v4110 = vpop.permute.xlu0 %4109
  %4111 = vrot.lane.b32.xlu0 %v2244, 32
  %v4112 = vpop.permute.xlu0 %4111
  %4113 = vrot.lane.b32.xlu0 %v2247, 32
  %v4114 = vpop.permute.xlu0 %4113
  %4115 = vrot.lane.b32.xlu0 %v2250, 32
  %v4116 = vpop.permute.xlu0 %4115
  %4117 = vrot.lane.b32.xlu0 %v2253, 32
  %v4118 = vpop.permute.xlu0 %4117
  %4119 = vrot.lane.b32.xlu0 %v2256, 32
  %v4120 = vpop.permute.xlu0 %4119
  %4121 = vrot.lane.b32.xlu0 %v2259, 32
  %v4122 = vpop.permute.xlu0 %4121
  %4123 = vrot.lane.b32.xlu0 %v2262, 32
  %v4124 = vpop.permute.xlu0 %4123
  %4125 = vrot.lane.b32.xlu0 %v2265, 32
  %v4126 = vpop.permute.xlu0 %4125
  %4127 = vrot.lane.b32.xlu0 %v2268, 32
  %v4128 = vpop.permute.xlu0 %4127
  %4129 = vrot.lane.b32.xlu0 %v2271, 32
  %v4130 = vpop.permute.xlu0 %4129
  %4131 = vrot.lane.b32.xlu0 %v2274, 32
  %v4132 = vpop.permute.xlu0 %4131
  %4133 = vrot.lane.b32.xlu0 %v2277, 32
  %v4134 = vpop.permute.xlu0 %4133
  %4135 = vrot.lane.b32.xlu0 %v2280, 32
  %v4136 = vpop.permute.xlu0 %4135
  %4137 = vrot.lane.b32.xlu0 %v2283, 32
  %v4138 = vpop.permute.xlu0 %4137
  %4139 = vrot.lane.b32.xlu0 %v2286, 32
  %v4140 = vpop.permute.xlu0 %4139
  %4141 = vrot.lane.b32.xlu0 %v2289, 32
  %v4142 = vpop.permute.xlu0 %4141
  %4143 = vrot.lane.b32.xlu0 %v2292, 32
  %v4144 = vpop.permute.xlu0 %4143
  %4145 = vrot.lane.b32.xlu0 %v2295, 32
  %v4146 = vpop.permute.xlu0 %4145
  %4147 = vrot.lane.b32.xlu0 %v2298, 32
  %v4148 = vpop.permute.xlu0 %4147
  %4149 = vrot.lane.b32.xlu0 %v2301, 32
  %v4150 = vpop.permute.xlu0 %4149
  %4151 = vrot.lane.b32.xlu0 %v2304, 32
  %v4152 = vpop.permute.xlu0 %4151
  %4153 = vrot.lane.b32.xlu0 %v2307, 32
  %v4154 = vpop.permute.xlu0 %4153
  %4155 = vrot.lane.b32.xlu0 %v2310, 32
  %v4156 = vpop.permute.xlu0 %4155
  %4157 = vrot.lane.b32.xlu0 %v2313, 32
  %v4158 = vpop.permute.xlu0 %4157
  %4159 = vrot.lane.b32.xlu0 %v2316, 32
  %v4160 = vpop.permute.xlu0 %4159
  %4161 = vrot.lane.b32.xlu0 %v2319, 32
  %v4162 = vpop.permute.xlu0 %4161
  %4163 = vrot.lane.b32.xlu0 %v2322, 32
  %v4164 = vpop.permute.xlu0 %4163
  %4165 = vrot.lane.b32.xlu0 %v2325, 32
  %v4166 = vpop.permute.xlu0 %4165
  %4167 = vrot.lane.b32.xlu0 %v2328, 32
  %v4168 = vpop.permute.xlu0 %4167
  %4169 = vrot.lane.b32.xlu0 %v2331, 32
  %v4170 = vpop.permute.xlu0 %4169
  %4171 = vrot.lane.b32.xlu0 %v2334, 32
  %v4172 = vpop.permute.xlu0 %4171
  %4173 = vrot.lane.b32.xlu0 %v2337, 32
  %v4174 = vpop.permute.xlu0 %4173
  %4175 = vrot.lane.b32.xlu0 %v2340, 32
  %v4176 = vpop.permute.xlu0 %4175
  %4177 = vrot.lane.b32.xlu0 %v2343, 32
  %v4178 = vpop.permute.xlu0 %4177
  %4179 = vrot.lane.b32.xlu0 %v2346, 32
  %v4180 = vpop.permute.xlu0 %4179
  %4181 = vrot.lane.b32.xlu0 %v2349, 32
  %v4182 = vpop.permute.xlu0 %4181
  %4183 = vrot.lane.b32.xlu0 %v2352, 32
  %v4184 = vpop.permute.xlu0 %4183
  %4185 = vrot.lane.b32.xlu0 %v2355, 32
  %v4186 = vpop.permute.xlu0 %4185
  %4187 = vrot.lane.b32.xlu0 %v2358, 32
  %v4188 = vpop.permute.xlu0 %4187
  %4189 = vrot.lane.b32.xlu0 %v2361, 32
  %v4190 = vpop.permute.xlu0 %4189
  %4191 = vrot.lane.b32.xlu0 %v2364, 32
  %v4192 = vpop.permute.xlu0 %4191
  %4193 = vrot.lane.b32.xlu0 %v2367, 32
  %v4194 = vpop.permute.xlu0 %4193
  %4195 = vrot.lane.b32.xlu0 %v2370, 32
  %v4196 = vpop.permute.xlu0 %4195
  %4197 = vrot.lane.b32.xlu0 %v2373, 32
  %v4198 = vpop.permute.xlu0 %4197
  %4199 = vrot.lane.b32.xlu0 %v2376, 32
  %v4200 = vpop.permute.xlu0 %4199
  %4201 = vrot.lane.b32.xlu0 %v2379, 32
  %v4202 = vpop.permute.xlu0 %4201
  %4203 = vrot.lane.b32.xlu0 %v2382, 32
  %v4204 = vpop.permute.xlu0 %4203
  %4205 = vrot.lane.b32.xlu0 %v2385, 32
  %v4206 = vpop.permute.xlu0 %4205
  %v4256 = vrot.slane %v4110, 6
  %v4257 = vrot.slane %v4112, 6
  %v4258 = vrot.slane %v4114, 6
  %v4259 = vrot.slane %v4116, 6
  %v4260 = vrot.slane %v4118, 6
  %v4261 = vrot.slane %v4120, 6
  %v4262 = vrot.slane %v4122, 6
  %v4263 = vrot.slane %v4124, 6
  %v4264 = vrot.slane %v4126, 6
  %v4265 = vrot.slane %v4128, 6
  %v4266 = vrot.slane %v4130, 6
  %v4267 = vrot.slane %v4132, 6
  %v4268 = vrot.slane %v4134, 6
  %v4269 = vrot.slane %v4136, 6
  %v4270 = vrot.slane %v4138, 6
  %v4271 = vrot.slane %v4140, 6
  %v4272 = vrot.slane %v4142, 6
  %v4273 = vrot.slane %v4144, 6
  %v4274 = vrot.slane %v4146, 6
  %v4275 = vrot.slane %v4148, 6
  %v4276 = vrot.slane %v4150, 6
  %v4277 = vrot.slane %v4152, 6
  %v4278 = vrot.slane %v4154, 6
  %v4279 = vrot.slane %v4156, 6
  %v4280 = vrot.slane %v4158, 6
  %v4281 = vrot.slane %v4160, 6
  %v4282 = vrot.slane %v4162, 6
  %v4283 = vrot.slane %v4164, 6
  %v4284 = vrot.slane %v4166, 6
  %v4285 = vrot.slane %v4168, 6
  %v4286 = vrot.slane %v4170, 6
  %v4287 = vrot.slane %v4172, 6
  %v4288 = vrot.slane %v4174, 6
  %v4289 = vrot.slane %v4176, 6
  %v4290 = vrot.slane %v4178, 6
  %v4291 = vrot.slane %v4180, 6
  %v4292 = vrot.slane %v4182, 6
  %v4293 = vrot.slane %v4184, 6
  %v4294 = vrot.slane %v4186, 6
  %v4295 = vrot.slane %v4188, 6
  %v4296 = vrot.slane %v4190, 6
  %v4297 = vrot.slane %v4192, 6
  %v4298 = vrot.slane %v4194, 6
  %v4299 = vrot.slane %v4196, 6
  %v4300 = vrot.slane %v4198, 6
  %v4301 = vrot.slane %v4200, 6
  %v4302 = vrot.slane %v4202, 6
  %v4303 = vrot.slane %v4204, 6
  %v4304 = vrot.slane %v4206, 6
  %vm4305 = vcmp.lt.s32.totalorder %v2437, 2
  %v4306 = vsel %vm4305, %v4303, %v4304
  %v4307 = vsel %vm4305, %v4302, %v4303
  %v4308 = vsel %vm4305, %v4301, %v4302
  %v4309 = vsel %vm4305, %v4300, %v4301
  %v4310 = vsel %vm4305, %v4299, %v4300
  %v4311 = vsel %vm4305, %v4298, %v4299
  %v4312 = vsel %vm4305, %v4297, %v4298
  %v4313 = vsel %vm4305, %v4296, %v4297
  %v4314 = vsel %vm4305, %v4295, %v4296
  %v4315 = vsel %vm4305, %v4294, %v4295
  %v4316 = vsel %vm4305, %v4293, %v4294
  %v4317 = vsel %vm4305, %v4292, %v4293
  %v4318 = vsel %vm4305, %v4291, %v4292
  %v4319 = vsel %vm4305, %v4290, %v4291
  %v4320 = vsel %vm4305, %v4289, %v4290
  %v4321 = vsel %vm4305, %v4288, %v4289
  %v4322 = vsel %vm4305, %v4287, %v4288
  %v4323 = vsel %vm4305, %v4286, %v4287
  %v4324 = vsel %vm4305, %v4285, %v4286
  %v4325 = vsel %vm4305, %v4284, %v4285
  %v4326 = vsel %vm4305, %v4283, %v4284
  %v4327 = vsel %vm4305, %v4282, %v4283
  %v4328 = vsel %vm4305, %v4281, %v4282
  %v4329 = vsel %vm4305, %v4280, %v4281
  %v4330 = vsel %vm4305, %v4279, %v4280
  %v4331 = vsel %vm4305, %v4278, %v4279
  %v4332 = vsel %vm4305, %v4277, %v4278
  %v4333 = vsel %vm4305, %v4276, %v4277
  %v4334 = vsel %vm4305, %v4275, %v4276
  %v4335 = vsel %vm4305, %v4274, %v4275
  %v4336 = vsel %vm4305, %v4273, %v4274
  %v4337 = vsel %vm4305, %v4272, %v4273
  %v4338 = vsel %vm4305, %v4271, %v4272
  %v4339 = vsel %vm4305, %v4270, %v4271
  %v4340 = vsel %vm4305, %v4269, %v4270
  %v4341 = vsel %vm4305, %v4268, %v4269
  %v4342 = vsel %vm4305, %v4267, %v4268
  %v4343 = vsel %vm4305, %v4266, %v4267
  %v4344 = vsel %vm4305, %v4265, %v4266
  %v4345 = vsel %vm4305, %v4264, %v4265
  %v4346 = vsel %vm4305, %v4263, %v4264
  %v4347 = vsel %vm4305, %v4262, %v4263
  %v4348 = vsel %vm4305, %v4261, %v4262
  %v4349 = vsel %vm4305, %v4260, %v4261
  %v4350 = vsel %vm4305, %v4259, %v4260
  %v4351 = vsel %vm4305, %v4258, %v4259
  %v4352 = vsel %vm4305, %v4257, %v4258
  %v4353 = vsel %vm4305, %v4256, %v4257
  %v4354 = vsel %vm4305, %v4304, %v4256
  %v4355 = vadd.f32 %v4060, %v4352
  %v4356 = vadd.f32 %v4061, %v4351
  %v4357 = vadd.f32 %v4062, %v4350
  %v4358 = vadd.f32 %v4063, %v4349
  %v4359 = vadd.f32 %v4064, %v4348
  %v4360 = vadd.f32 %v4065, %v4347
  %v4361 = vadd.f32 %v4066, %v4346
  %v4362 = vadd.f32 %v4067, %v4345
  %v4363 = vadd.f32 %v4068, %v4344
  %v4364 = vadd.f32 %v4069, %v4343
  %v4365 = vadd.f32 %v4070, %v4342
  %v4366 = vadd.f32 %v4071, %v4341
  %v4367 = vadd.f32 %v4072, %v4340
  %v4368 = vadd.f32 %v4073, %v4339
  %v4369 = vadd.f32 %v4074, %v4338
  %v4370 = vadd.f32 %v4075, %v4337
  %v4371 = vadd.f32 %v4076, %v4336
  %v4372 = vadd.f32 %v4077, %v4335
  %v4373 = vadd.f32 %v4078, %v4334
  %v4374 = vadd.f32 %v4079, %v4333
  %v4375 = vadd.f32 %v4080, %v4332
  %v4376 = vadd.f32 %v4081, %v4331
  %v4377 = vadd.f32 %v4082, %v4330
  %v4378 = vadd.f32 %v4083, %v4329
  %v4379 = vadd.f32 %v4084, %v4328
  %v4380 = vadd.f32 %v4085, %v4327
  %v4381 = vadd.f32 %v4086, %v4326
  %v4382 = vadd.f32 %v4087, %v4325
  %v4383 = vadd.f32 %v4088, %v4324
  %v4384 = vadd.f32 %v4089, %v4323
  %v4385 = vadd.f32 %v4090, %v4322
  %v4386 = vadd.f32 %v4091, %v4321
  %v4387 = vadd.f32 %v4092, %v4320
  %v4388 = vadd.f32 %v4093, %v4319
  %v4389 = vadd.f32 %v4094, %v4318
  %v4390 = vadd.f32 %v4095, %v4317
  %v4391 = vadd.f32 %v4096, %v4316
  %v4392 = vadd.f32 %v4097, %v4315
  %v4393 = vadd.f32 %v4098, %v4314
  %v4394 = vadd.f32 %v4099, %v4313
  %v4395 = vadd.f32 %v4100, %v4312
  %v4396 = vadd.f32 %v4101, %v4311
  %v4397 = vadd.f32 %v4102, %v4310
  %v4398 = vadd.f32 %v4103, %v4309
  %v4399 = vadd.f32 %v4104, %v4308
  %v4400 = vadd.f32 %v4105, %v4307
  %v4401 = vadd.f32 %v4106, %v4306
  %v4402 = vadd.f32 %v4107, %v4354
  %v4403 = vadd.f32 %v4108, %v4353
  %v4404 = vrot.slane %v2242, 7
  %v4405 = vrot.slane %v2245, 7
  %v4406 = vrot.slane %v2248, 7
  %v4407 = vrot.slane %v2251, 7
  %v4408 = vrot.slane %v2254, 7
  %v4409 = vrot.slane %v2257, 7
  %v4410 = vrot.slane %v2260, 7
  %v4411 = vrot.slane %v2263, 7
  %v4412 = vrot.slane %v2266, 7
  %v4413 = vrot.slane %v2269, 7
  %v4414 = vrot.slane %v2272, 7
  %v4415 = vrot.slane %v2275, 7
  %v4416 = vrot.slane %v2278, 7
  %v4417 = vrot.slane %v2281, 7
  %v4418 = vrot.slane %v2284, 7
  %v4419 = vrot.slane %v2287, 7
  %v4420 = vrot.slane %v2290, 7
  %v4421 = vrot.slane %v2293, 7
  %v4422 = vrot.slane %v2296, 7
  %v4423 = vrot.slane %v2299, 7
  %v4424 = vrot.slane %v2302, 7
  %v4425 = vrot.slane %v2305, 7
  %v4426 = vrot.slane %v2308, 7
  %v4427 = vrot.slane %v2311, 7
  %v4428 = vrot.slane %v2314, 7
  %v4429 = vrot.slane %v2317, 7
  %v4430 = vrot.slane %v2320, 7
  %v4431 = vrot.slane %v2323, 7
  %v4432 = vrot.slane %v2326, 7
  %v4433 = vrot.slane %v2329, 7
  %v4434 = vrot.slane %v2332, 7
  %v4435 = vrot.slane %v2335, 7
  %v4436 = vrot.slane %v2338, 7
  %v4437 = vrot.slane %v2341, 7
  %v4438 = vrot.slane %v2344, 7
  %v4439 = vrot.slane %v2347, 7
  %v4440 = vrot.slane %v2350, 7
  %v4441 = vrot.slane %v2353, 7
  %v4442 = vrot.slane %v2356, 7
  %v4443 = vrot.slane %v2359, 7
  %v4444 = vrot.slane %v2362, 7
  %v4445 = vrot.slane %v2365, 7
  %v4446 = vrot.slane %v2368, 7
  %v4447 = vrot.slane %v2371, 7
  %v4448 = vrot.slane %v2374, 7
  %v4449 = vrot.slane %v2377, 7
  %v4450 = vrot.slane %v2380, 7
  %v4451 = vrot.slane %v2383, 7
  %v4452 = vrot.slane %v2386, 7
  %v4453 = vsel %vm3372, %v4451, %v4452
  %v4454 = vsel %vm3372, %v4450, %v4451
  %v4455 = vsel %vm3372, %v4449, %v4450
  %v4456 = vsel %vm3372, %v4448, %v4449
  %v4457 = vsel %vm3372, %v4447, %v4448
  %v4458 = vsel %vm3372, %v4446, %v4447
  %v4459 = vsel %vm3372, %v4445, %v4446
  %v4460 = vsel %vm3372, %v4444, %v4445
  %v4461 = vsel %vm3372, %v4443, %v4444
  %v4462 = vsel %vm3372, %v4442, %v4443
  %v4463 = vsel %vm3372, %v4441, %v4442
  %v4464 = vsel %vm3372, %v4440, %v4441
  %v4465 = vsel %vm3372, %v4439, %v4440
  %v4466 = vsel %vm3372, %v4438, %v4439
  %v4467 = vsel %vm3372, %v4437, %v4438
  %v4468 = vsel %vm3372, %v4436, %v4437
  %v4469 = vsel %vm3372, %v4435, %v4436
  %v4470 = vsel %vm3372, %v4434, %v4435
  %v4471 = vsel %vm3372, %v4433, %v4434
  %v4472 = vsel %vm3372, %v4432, %v4433
  %v4473 = vsel %vm3372, %v4431, %v4432
  %v4474 = vsel %vm3372, %v4430, %v4431
  %v4475 = vsel %vm3372, %v4429, %v4430
  %v4476 = vsel %vm3372, %v4428, %v4429
  %v4477 = vsel %vm3372, %v4427, %v4428
  %v4478 = vsel %vm3372, %v4426, %v4427
  %v4479 = vsel %vm3372, %v4425, %v4426
  %v4480 = vsel %vm3372, %v4424, %v4425
  %v4481 = vsel %vm3372, %v4423, %v4424
  %v4482 = vsel %vm3372, %v4422, %v4423
  %v4483 = vsel %vm3372, %v4421, %v4422
  %v4484 = vsel %vm3372, %v4420, %v4421
  %v4485 = vsel %vm3372, %v4419, %v4420
  %v4486 = vsel %vm3372, %v4418, %v4419
  %v4487 = vsel %vm3372, %v4417, %v4418
  %v4488 = vsel %vm3372, %v4416, %v4417
  %v4489 = vsel %vm3372, %v4415, %v4416
  %v4490 = vsel %vm3372, %v4414, %v4415
  %v4491 = vsel %vm3372, %v4413, %v4414
  %v4492 = vsel %vm3372, %v4412, %v4413
  %v4493 = vsel %vm3372, %v4411, %v4412
  %v4494 = vsel %vm3372, %v4410, %v4411
  %v4495 = vsel %vm3372, %v4409, %v4410
  %v4496 = vsel %vm3372, %v4408, %v4409
  %v4497 = vsel %vm3372, %v4407, %v4408
  %v4498 = vsel %vm3372, %v4406, %v4407
  %v4499 = vsel %vm3372, %v4405, %v4406
  %v4500 = vsel %vm3372, %v4404, %v4405
  %v4501 = vsel %vm3372, %v4452, %v4404
  %v4502 = vadd.f32 %v4355, %v4499
  %v4503 = vadd.f32 %v4356, %v4498
  %v4504 = vadd.f32 %v4357, %v4497
  %v4505 = vadd.f32 %v4358, %v4496
  %v4506 = vadd.f32 %v4359, %v4495
  %v4507 = vadd.f32 %v4360, %v4494
  %v4508 = vadd.f32 %v4361, %v4493
  %v4509 = vadd.f32 %v4362, %v4492
  %v4510 = vadd.f32 %v4363, %v4491
  %v4511 = vadd.f32 %v4364, %v4490
  %v4512 = vadd.f32 %v4365, %v4489
  %v4513 = vadd.f32 %v4366, %v4488
  %v4514 = vadd.f32 %v4367, %v4487
  %v4515 = vadd.f32 %v4368, %v4486
  %v4516 = vadd.f32 %v4369, %v4485
  %v4517 = vadd.f32 %v4370, %v4484
  %v4518 = vadd.f32 %v4371, %v4483
  %v4519 = vadd.f32 %v4372, %v4482
  %v4520 = vadd.f32 %v4373, %v4481
  %v4521 = vadd.f32 %v4374, %v4480
  %v4522 = vadd.f32 %v4375, %v4479
  %v4523 = vadd.f32 %v4376, %v4478
  %v4524 = vadd.f32 %v4377, %v4477
  %v4525 = vadd.f32 %v4378, %v4476
  %v4526 = vadd.f32 %v4379, %v4475
  %v4527 = vadd.f32 %v4380, %v4474
  %v4528 = vadd.f32 %v4381, %v4473
  %v4529 = vadd.f32 %v4382, %v4472
  %v4530 = vadd.f32 %v4383, %v4471
  %v4531 = vadd.f32 %v4384, %v4470
  %v4532 = vadd.f32 %v4385, %v4469
  %v4533 = vadd.f32 %v4386, %v4468
  %v4534 = vadd.f32 %v4387, %v4467
  %v4535 = vadd.f32 %v4388, %v4466
  %v4536 = vadd.f32 %v4389, %v4465
  %v4537 = vadd.f32 %v4390, %v4464
  %v4538 = vadd.f32 %v4391, %v4463
  %v4539 = vadd.f32 %v4392, %v4462
  %v4540 = vadd.f32 %v4393, %v4461
  %v4541 = vadd.f32 %v4394, %v4460
  %v4542 = vadd.f32 %v4395, %v4459
  %v4543 = vadd.f32 %v4396, %v4458
  %v4544 = vadd.f32 %v4397, %v4457
  %v4545 = vadd.f32 %v4398, %v4456
  %v4546 = vadd.f32 %v4399, %v4455
  %v4547 = vadd.f32 %v4400, %v4454
  %v4548 = vadd.f32 %v4401, %v4453
  %v4549 = vadd.f32 %v4402, %v4501
  %v4550 = vadd.f32 %v4403, %v4500
  %vm4551 = vcmask 261120
  %4552 = vst.msk [vmem:[%s6] sm:$0xff] %vm4551, %v4502
  %4553 = vst.msk [vmem:[%s6 + $0x8] sm:$0xff] %vm4551, %v4503
  %4554 = vst.msk [vmem:[%s6 + $0x10] sm:$0xff] %vm4551, %v4504
  %4555 = vst.msk [vmem:[%s6 + $0x18] sm:$0xff] %vm4551, %v4505
  %4556 = vst.msk [vmem:[%s6 + $0x20] sm:$0xff] %vm4551, %v4506
  %4557 = vst.msk [vmem:[%s6 + $0x28] sm:$0xff] %vm4551, %v4507
  %4558 = vst.msk [vmem:[%s6 + $0x30] sm:$0xff] %vm4551, %v4508
  %4559 = vst.msk [vmem:[%s6 + $0x38] sm:$0xff] %vm4551, %v4509
  %4560 = vst.msk [vmem:[%s6 + $0x40] sm:$0xff] %vm4551, %v4510
  %4561 = vst.msk [vmem:[%s6 + $0x48] sm:$0xff] %vm4551, %v4511
  %4562 = vst.msk [vmem:[%s6 + $0x50] sm:$0xff] %vm4551, %v4512
  %4563 = vst.msk [vmem:[%s6 + $0x58] sm:$0xff] %vm4551, %v4513
  %4564 = vst.msk [vmem:[%s6 + $0x60] sm:$0xff] %vm4551, %v4514
  %4565 = vst.msk [vmem:[%s6 + $0x68] sm:$0xff] %vm4551, %v4515
  %4566 = vst.msk [vmem:[%s6 + $0x70] sm:$0xff] %vm4551, %v4516
  %4567 = vst.msk [vmem:[%s6 + $0x78] sm:$0xff] %vm4551, %v4517
  %4568 = vst.msk [vmem:[%s6 + $0x80] sm:$0xff] %vm4551, %v4518
  %4569 = vst.msk [vmem:[%s6 + $0x88] sm:$0xff] %vm4551, %v4519
  %4570 = vst.msk [vmem:[%s6 + $0x90] sm:$0xff] %vm4551, %v4520
  %4571 = vst.msk [vmem:[%s6 + $0x98] sm:$0xff] %vm4551, %v4521
  %4572 = vst.msk [vmem:[%s6 + $0xa0] sm:$0xff] %vm4551, %v4522
  %4573 = vst.msk [vmem:[%s6 + $0xa8] sm:$0xff] %vm4551, %v4523
  %4574 = vst.msk [vmem:[%s6 + $0xb0] sm:$0xff] %vm4551, %v4524
  %4575 = vst.msk [vmem:[%s6 + $0xb8] sm:$0xff] %vm4551, %v4525
  %4576 = vst.msk [vmem:[%s6 + $0xc0] sm:$0xff] %vm4551, %v4526
  %4577 = vst.msk [vmem:[%s6 + $0xc8] sm:$0xff] %vm4551, %v4527
  %4578 = vst.msk [vmem:[%s6 + $0xd0] sm:$0xff] %vm4551, %v4528
  %4579 = vst.msk [vmem:[%s6 + $0xd8] sm:$0xff] %vm4551, %v4529
  %4580 = vst.msk [vmem:[%s6 + $0xe0] sm:$0xff] %vm4551, %v4530
  %4581 = vst.msk [vmem:[%s6 + $0xe8] sm:$0xff] %vm4551, %v4531
  %4582 = vst.msk [vmem:[%s6 + $0xf0] sm:$0xff] %vm4551, %v4532
  %4583 = vst.msk [vmem:[%s6 + $0xf8] sm:$0xff] %vm4551, %v4533
  %4584 = vst.msk [vmem:[%s6 + $0x100] sm:$0xff] %vm4551, %v4534
  %4585 = vst.msk [vmem:[%s6 + $0x108] sm:$0xff] %vm4551, %v4535
  %4586 = vst.msk [vmem:[%s6 + $0x110] sm:$0xff] %vm4551, %v4536
  %4587 = vst.msk [vmem:[%s6 + $0x118] sm:$0xff] %vm4551, %v4537
  %4588 = vst.msk [vmem:[%s6 + $0x120] sm:$0xff] %vm4551, %v4538
  %4589 = vst.msk [vmem:[%s6 + $0x128] sm:$0xff] %vm4551, %v4539
  %4590 = vst.msk [vmem:[%s6 + $0x130] sm:$0xff] %vm4551, %v4540
  %4591 = vst.msk [vmem:[%s6 + $0x138] sm:$0xff] %vm4551, %v4541
  %4592 = vst.msk [vmem:[%s6 + $0x140] sm:$0xff] %vm4551, %v4542
  %4593 = vst.msk [vmem:[%s6 + $0x148] sm:$0xff] %vm4551, %v4543
  %4594 = vst.msk [vmem:[%s6 + $0x150] sm:$0xff] %vm4551, %v4544
  %4595 = vst.msk [vmem:[%s6 + $0x158] sm:$0xff] %vm4551, %v4545
  %4596 = vst.msk [vmem:[%s6 + $0x160] sm:$0xff] %vm4551, %v4546
  %4597 = vst.msk [vmem:[%s6 + $0x168] sm:$0xff] %vm4551, %v4547
  %4598 = vst.msk [vmem:[%s6 + $0x170] sm:$0xff] %vm4551, %v4548
  %4599 = vst.msk [vmem:[%s6 + $0x178] sm:$0xff] %vm4551, %v4549
  %4600 = vst.msk [vmem:[%s6 + $0x180] sm:$0xff] %vm4551, %v4550
  // Predicated region
  $region26: #{m_forward_nhwc.1} parent=0 // pred_check
    _
  $region27: #{m_forward_nhwc.1} parent=0 // pred_check_branch
    %4602 = sbr.rel (0) target = $region29
  $region28: #{m_forward_nhwc.1} parent=0 // pred_region
    _
  $region29: #{m_forward_nhwc.1} parent=0 // pred_fallthru
    _
  // Predicated region
  $region30: #{m_forward_nhwc.1} parent=0 // pred_check
    _
  $region31: #{m_forward_nhwc.1} parent=0 // pred_check_branch
    %4604 = sbr.rel (0) target = $region33
  $region32: #{m_forward_nhwc.1} parent=0 // pred_region
    _
  $region33: #{m_forward_nhwc.1} parent=0 // pred_fallthru
    _

</llo_original>
